<compile_context>
chip_gen: v7x
topology: tpu7x:2x2x1
jax: 0.10.0
libtpu: 0.0.40
codegen_flags: <defaults>
</compile_context>

<pallas_src>
import functools
import math

import jax
import jax.numpy as jnp
import numpy as np
from jax.experimental import pallas as pl
from jax.experimental.pallas import tpu as pltpu


# ----------------------------------------------------------------------------- helpers

def _layernorm(y, gamma, beta, eps=1e-5):
    mu = jnp.mean(y, axis=-1, keepdims=True)
    var = jnp.mean((y - mu) ** 2, axis=-1, keepdims=True)
    return (y - mu) * jax.lax.rsqrt(var + eps) * gamma + beta


def _vmem_capacity_bytes():
    """Physical VMEM of the local chip; conservative 64 MiB (v7x) if unknown."""
    try:
        return int(pltpu.get_tpu_info().vmem_capacity_bytes)
    except Exception:
        return 64 << 20


def _pick_bt(B, S, *, h, vmem_cap, return_score, score_bytes):
    """Batch-tile size: big slabs amortize per-step overhead (target 1024 rows on
    128-MiB parts, 512 on 64-MiB v7x), keep >= 2 grid steps so both v7x TensorCores
    receive work, and cap the (double-buffered) score output block at 1/4 of VMEM."""
    target_rows = 1024 if vmem_cap > (64 << 20) else 512
    best = 1
    for cand in range(1, B + 1):
        if B % cand:
            continue
        if B > 1 and B // cand < 2:          # leave work for the second v7x TC
            continue
        if cand * S > max(target_rows, S):
            continue
        if return_score:
            score_block = 2 * h * cand * S * S * score_bytes   # double-buffered output
            if score_block > vmem_cap // 4:
                continue
        best = max(best, cand)
    return best


def _vmem_budget(Bt, S, d_model, d_hidden, h, q_dim, v_dim,
                 return_score, score_bytes, vmem_cap):
    """Explicit VMEM budget -> vmem_limit_bytes (footprint + headroom, capped at 90%)."""
    bf16_w = 2 * (2 * d_model * q_dim * h + 2 * d_model * v_dim * h
                  + 2 * d_model * d_hidden)                       # wq/wk/wv/wo/w1/w2
    small = 4 * (2 * q_dim * h + v_dim * h + 5 * d_model + d_hidden)
    io = 2 * 2 * Bt * S * d_model * 4 + 2 * Bt * S * 4           # x + out + pm (dbl-buf)
    score = 2 * h * Bt * S * S * score_bytes if return_score else 0
    tmp = (4 * h * Bt * S * S * 4                                  # f32 scores / probs
           + 4 * Bt * S * (2 * q_dim * h + v_dim * h + 2 * d_model + d_hidden))
    footprint = 2 * (bf16_w + small) + io + score + tmp            # consts worst-case x2
    return int(min(int(0.9 * vmem_cap), max(32 << 20, footprint + (8 << 20))))


_BF16_WEIGHTS = ("wq", "wk", "wv", "wo", "w1", "w2")


def prepare_params(params):
    """Cast the big matmul weights to bf16 once (cache outside the per-call wrapper)."""
    out = dict(params)
    for k in _BF16_WEIGHTS:
        out[k] = params[k].astype(jnp.bfloat16)
    return out


# ----------------------------------------------------------------------------- kernel

def encoder_kernel(x_ref, pm_ref,
                   wq_ref, bq_ref, wk_ref, bk_ref, wv_ref, bv_ref,
                   wo_ref, bo_ref,
                   g1_ref, be1_ref,
                   w1_ref, b1_ref, w2_ref, b2_ref,
                   g2_ref, be2_ref,
                   out_ref, *maybe_score,
                   h, q_dim, v_dim, causal, with_score, batched_heads):
    score_ref = maybe_score[0] if with_score else None

    Bt, S, d_model = x_ref.shape
    x = x_ref[...]                                   # (Bt, S, d_model) f32
    x2 = x.reshape(Bt * S, d_model)                  # big-M slab -> good MXU occupancy
    xb = x2.astype(jnp.bfloat16)

    # QKV projections: bf16 MXU operands, f32 accumulation, f32 bias add.
    Q = jnp.dot(xb, wq_ref[...], preferred_element_type=jnp.float32) + bq_ref[...]
    K = jnp.dot(xb, wk_ref[...], preferred_element_type=jnp.float32) + bk_ref[...]
    V = jnp.dot(xb, wv_ref[...], preferred_element_type=jnp.float32) + bv_ref[...]

    inv_sqrt_q = jnp.float32(1.0 / math.sqrt(q_dim))
    neg_fill = jnp.float32(-2 ** 32 + 1)

    # Padding mask: masked_fill(mask == 0, -inf); unmasked entries keep their literal
    # value (1.0) and are ADDED to the logits -- faithful to the PyTorch reference.
    pm = pm_ref[...]                                 # (Bt, 1, S)
    pm_add = jnp.where(pm == 0.0, -jnp.inf, pm)

    if causal:
        row = jax.lax.broadcasted_iota(jnp.int32, (S, S), 0)
        col = jax.lax.broadcasted_iota(jnp.int32, (S, S), 1)
        causal_ok = row >= col                       # built in-kernel, no HBM traffic

    if batched_heads:
        # --- heads-batched attention: one score einsum + one PV einsum --------------
        Q4 = (Q * inv_sqrt_q).astype(jnp.bfloat16).reshape(Bt, S, h, q_dim)
        K4 = K.astype(jnp.bfloat16).reshape(Bt, S, h, q_dim)
        V4 = V.astype(jnp.bfloat16).reshape(Bt, S, h, v_dim)

        s = jnp.einsum('bihd,bjhd->bhij', Q4, K4,
                       preferred_element_type=jnp.float32)        # (Bt, h, S, S)
        if with_score:
            # raw (pre-mask, post-scale) score, emitted head-major (leading-dims swap).
            score_ref[...] = jnp.swapaxes(s, 0, 1).astype(score_ref.dtype)
        if causal:
            s = jnp.where(causal_ok[None, None, :, :], s, neg_fill)
        s = s + pm_add[:, None, :, :]                              # (Bt,1,1,S) broadcast
        s = s - jnp.max(s, axis=-1, keepdims=True)
        p = jnp.exp(s)
        p = p * pl.reciprocal(jnp.sum(p, axis=-1, keepdims=True), approx=True)
        att = jnp.einsum('bhij,bjhd->bihd', p.astype(jnp.bfloat16), V4,
                         preferred_element_type=jnp.float32)       # (Bt, S, h, v)
        att2 = att.reshape(Bt * S, h * v_dim).astype(jnp.bfloat16)
    else:
        # --- fallback: per-head loop (kept only for lowering robustness) ------------
        Q3 = Q.reshape(Bt, S, h * q_dim)
        K3 = K.reshape(Bt, S, h * q_dim)
        V3 = V.reshape(Bt, S, h * v_dim)
        heads = []
        for i in range(h):
            Qi = (Q3[:, :, i * q_dim:(i + 1) * q_dim] * inv_sqrt_q).astype(jnp.bfloat16)
            Ki = K3[:, :, i * q_dim:(i + 1) * q_dim].astype(jnp.bfloat16)
            Vi = V3[:, :, i * v_dim:(i + 1) * v_dim].astype(jnp.bfloat16)
            s = jnp.einsum('bik,bjk->bij', Qi, Ki, preferred_element_type=jnp.float32)
            if with_score:
                score_ref[i] = s.astype(score_ref.dtype)
            if causal:
                s = jnp.where(causal_ok[None, :, :], s, neg_fill)
            s = s + pm_add
            s = s - jnp.max(s, axis=-1, keepdims=True)
            p = jnp.exp(s)
            p = p * pl.reciprocal(jnp.sum(p, axis=-1, keepdims=True), approx=True)
            heads.append(jnp.einsum('bij,bjd->bid', p.astype(jnp.bfloat16), Vi,
                                    preferred_element_type=jnp.float32))
        att2 = jnp.concatenate(heads, axis=-1).reshape(Bt * S, h * v_dim)
        att2 = att2.astype(jnp.bfloat16)

    sa = jnp.dot(att2, wo_ref[...], preferred_element_type=jnp.float32) + bo_ref[...]

    # TODO(synk): dropout is stochastic; implemented as identity (eval / inference mode).
    x1 = _layernorm(sa + x2, g1_ref[...], be1_ref[...])

    hid = jnp.maximum(
        jnp.dot(x1.astype(jnp.bfloat16), w1_ref[...],
                preferred_element_type=jnp.float32) + b1_ref[...], 0.0)
    ff = jnp.dot(hid.astype(jnp.bfloat16), w2_ref[...],
                 preferred_element_type=jnp.float32) + b2_ref[...]
    x_out = _layernorm(ff + x1, g2_ref[...], be2_ref[...])

    out_ref[...] = x_out.reshape(Bt, S, d_model)


# ----------------------------------------------------------------------------- wrapper

def _build_call(B, S, d_model, d_hidden, h, q_dim, v_dim, causal,
                return_score, score_dtype, Bt, batched_heads,
                single_buffer_consts, vmem_limit_bytes):
    def const_spec(shape):
        n = len(shape)
        idx = lambda b, _n=n: (0,) * _n
        if single_buffer_consts:
            # index_map never changes across the grid -> no point double-buffering.
            return pl.BlockSpec(shape, idx, pipeline_mode=pl.Buffered(1))
        return pl.BlockSpec(shape, idx)

    in_specs = [
        pl.BlockSpec((Bt, S, d_model), lambda b: (b, 0, 0)),   # x
        pl.BlockSpec((Bt, 1, S), lambda b: (b, 0, 0)),         # padding mask
        const_spec((d_model, q_dim * h)), const_spec((1, q_dim * h)),   # wq, bq
        const_spec((d_model, q_dim * h)), const_spec((1, q_dim * h)),   # wk, bk
        const_spec((d_model, v_dim * h)), const_spec((1, v_dim * h)),   # wv, bv
        const_spec((v_dim * h, d_model)), const_spec((1, d_model)),     # wo, bo
        const_spec((1, d_model)), const_spec((1, d_model)),             # ln1 gamma, beta
        const_spec((d_model, d_hidden)), const_spec((1, d_hidden)),     # w1, b1
        const_spec((d_hidden, d_model)), const_spec((1, d_model)),      # w2, b2
        const_spec((1, d_model)), const_spec((1, d_model)),             # ln2 gamma, beta
    ]
    out_specs = [pl.BlockSpec((Bt, S, d_model), lambda b: (b, 0, 0))]
    out_shape = [jax.ShapeDtypeStruct((B, S, d_model), jnp.float32)]
    if return_score:
        # Written directly in the final (h, B, S, S) layout -> wrapper only reshapes.
        out_specs.append(pl.BlockSpec((h, Bt, S, S), lambda b: (0, b, 0, 0)))
        out_shape.append(jax.ShapeDtypeStruct((h, B, S, S), score_dtype))

    kernel = functools.partial(encoder_kernel, h=h, q_dim=q_dim, v_dim=v_dim,
                               causal=causal, with_score=return_score,
                               batched_heads=batched_heads)
    return pl.pallas_call(
        kernel,
        grid=(B // Bt,),
        in_specs=in_specs,
        out_specs=out_specs,
        out_shape=out_shape,
        compiler_params=pltpu.CompilerParams(
            dimension_semantics=("parallel",),        # batch tiles are independent
            vmem_limit_bytes=vmem_limit_bytes),
    )


def encoder_forward(x, padding_mask, params, *, h, q_dim, v_dim, causal,
                    return_score=True, score_dtype=jnp.float32):
    B, S, d_model = x.shape
    d_hidden = params['w1'].shape[1]

    vmem_cap = _vmem_capacity_bytes()
    score_bytes = jnp.dtype(score_dtype).itemsize if return_score else 0
    Bt = _pick_bt(B, S, h=h, vmem_cap=vmem_cap,
                  return_score=return_score, score_bytes=score_bytes)
    vmem_limit = _vmem_budget(Bt, S, d_model, d_hidden, h, q_dim, v_dim,
                              return_score, score_bytes, vmem_cap)

    pm3 = padding_mask.reshape(B, 1, S).astype(jnp.float32)

    def _bf16(w):  # no-op if the caller already cached bf16 copies via prepare_params
        return w if w.dtype == jnp.bfloat16 else w.astype(jnp.bfloat16)

    args = (x, pm3,
            _bf16(params['wq']), params['bq'], _bf16(params['wk']), params['bk'],
            _bf16(params['wv']), params['bv'], _bf16(params['wo']), params['bo'],
            params['g1'], params['be1'],
            _bf16(params['w1']), params['b1'], _bf16(params['w2']), params['b2'],
            params['g2'], params['be2'])

    # Preferred config first; graceful fallback keeps the script running on any jaxlib.
    outs, last_err = None, None
    for batched_heads, single_buf in ((True, True), (True, False),
                                      (False, True), (False, False)):
        try:
            call = _build_call(B, S, d_model, d_hidden, h, q_dim, v_dim, causal,
                               return_score, score_dtype, Bt, batched_heads,
                               single_buf, vmem_limit)
            outs = jax.block_until_ready(call(*args))
            break
        except Exception as e:          # lowering / compile feature not available
            last_err = e
            outs = None
    if outs is None:
        raise last_err

    if return_score:
        out, score_hb = outs
        # PyTorch returns score as cat of per-head chunks along dim 0 -> (h*B, S, S).
        return out, score_hb.reshape(h * B, S, S)
    return outs[0], None


# ----------------------------------------------------------------------------- reference

def encoder_ref(x, padding_mask, params, *, h, q_dim, v_dim, causal):
    """Pure-JAX (f32) reference mirroring the PyTorch forward (eval mode)."""
    B, S, d = x.shape

    def split_heads(Y):
        return jnp.concatenate(jnp.split(Y, h, axis=-1), axis=0)

    Q = split_heads(x @ params['wq'] + params['bq'])
    K = split_heads(x @ params['wk'] + params['bk'])
    V = split_heads(x @ params['wv'] + params['bv'])

    score = jnp.einsum('bik,bjk->bij', Q, K) / math.sqrt(q_dim)
    raw_score = score
    s = score
    if causal:
        tril = jnp.tril(jnp.ones((S, S), jnp.float32))
        s = jnp.where(tril > 0, s, jnp.float32(-2 ** 32 + 1))
    pm = jnp.tile(padding_mask[:, None, :].astype(s.dtype), (h, 1, 1))
    pm = jnp.where(pm == 0, -jnp.inf, pm)
    s = s + pm
    p = jax.nn.softmax(s, axis=-1)
    attn = jnp.einsum('bij,bjd->bid', p, V)
    attn_heads = jnp.concatenate(jnp.split(attn, h, axis=0), axis=-1)
    sa = attn_heads @ params['wo'] + params['bo']

    def ln(y, g, b):
        mu = y.mean(-1, keepdims=True)
        var = ((y - mu) ** 2).mean(-1, keepdims=True)
        return (y - mu) / jnp.sqrt(var + 1e-5) * g + b

    x1 = ln(sa + x, params['g1'], params['be1'])
    ff = jnp.maximum(x1 @ params['w1'] + params['b1'], 0.0) @ params['w2'] + params['b2']
    x2 = ln(ff + x1, params['g2'], params['be2'])
    return x2, raw_score


# ----------------------------------------------------------------------------- test

if __name__ == "__main__":
    B, S = 2, 8
    d_model, d_hidden = 32, 64
    q_dim, v_dim, h = 8, 8, 4

    key = jax.random.PRNGKey(0)
    ks = jax.random.split(key, 20)

    def rnd(k, shape, scale=0.05):
        return (scale * jax.random.normal(k, shape)).astype(jnp.float32)

    params_f32 = dict(
        wq=rnd(ks[0], (d_model, q_dim * h)), bq=rnd(ks[1], (1, q_dim * h)),
        wk=rnd(ks[2], (d_model, q_dim * h)), bk=rnd(ks[3], (1, q_dim * h)),
        wv=rnd(ks[4], (d_model, v_dim * h)), bv=rnd(ks[5], (1, v_dim * h)),
        wo=rnd(ks[6], (v_dim * h, d_model)), bo=rnd(ks[7], (1, d_model)),
        g1=(1.0 + rnd(ks[8], (1, d_model))).astype(jnp.float32),
        be1=rnd(ks[9], (1, d_model)),
        w1=rnd(ks[10], (d_model, d_hidden)), b1=rnd(ks[11], (1, d_hidden)),
        w2=rnd(ks[12], (d_hidden, d_model)), b2=rnd(ks[13], (1, d_model)),
        g2=(1.0 + rnd(ks[14], (1, d_model))).astype(jnp.float32),
        be2=rnd(ks[15], (1, d_model)),
    )
    params = prepare_params(params_f32)   # cache bf16 weight copies once

    x = jax.random.normal(ks[16], (B, S, d_model), jnp.float32)
    # padding mask: 1 = keep, 0 = masked; mask out the last two tokens of batch 1
    padding_mask = jnp.ones((B, S), jnp.float32).at[1, -2:].set(0.0)

    # mask=True, stage='train' -> causal masking active
    out, score = encoder_forward(x, padding_mask, params,
                                 h=h, q_dim=q_dim, v_dim=v_dim, causal=True)
    out = jax.block_until_ready(out)
    score = jax.block_until_ready(score)

    ref_out, ref_score = encoder_ref(x, padding_mask, params_f32,
                                     h=h, q_dim=q_dim, v_dim=v_dim, causal=True)
    # bf16 matmul operands + approx reciprocal -> relaxed (but still tight) tolerance
    np.testing.assert_allclose(np.asarray(out), np.asarray(ref_out),
                               rtol=3e-2, atol=3e-2)
    np.testing.assert_allclose(np.asarray(score), np.asarray(ref_score),
                               rtol=3e-2, atol=3e-2)

    print("KERNEL_OK")
</pallas_src>

<mosaic_0001>
module attributes {stable_mosaic.version = 11 : i64} {
  func.func @encoder_kernel(%arg0: i32, %arg1: memref<1x8x32xf32, #tpu.memory_space<vmem>>, %arg2: memref<1x1x8xf32, #tpu.memory_space<vmem>>, %arg3: memref<32x32xbf16, #tpu.memory_space<vmem>>, %arg4: memref<1x32xf32, #tpu.memory_space<vmem>>, %arg5: memref<32x32xbf16, #tpu.memory_space<vmem>>, %arg6: memref<1x32xf32, #tpu.memory_space<vmem>>, %arg7: memref<32x32xbf16, #tpu.memory_space<vmem>>, %arg8: memref<1x32xf32, #tpu.memory_space<vmem>>, %arg9: memref<32x32xbf16, #tpu.memory_space<vmem>>, %arg10: memref<1x32xf32, #tpu.memory_space<vmem>>, %arg11: memref<1x32xf32, #tpu.memory_space<vmem>>, %arg12: memref<1x32xf32, #tpu.memory_space<vmem>>, %arg13: memref<32x64xbf16, #tpu.memory_space<vmem>>, %arg14: memref<1x64xf32, #tpu.memory_space<vmem>>, %arg15: memref<64x32xbf16, #tpu.memory_space<vmem>>, %arg16: memref<1x32xf32, #tpu.memory_space<vmem>>, %arg17: memref<1x32xf32, #tpu.memory_space<vmem>>, %arg18: memref<1x32xf32, #tpu.memory_space<vmem>>, %arg19: memref<1x8x32xf32, #tpu.memory_space<vmem>>, %arg20: memref<4x1x8x8xf32, #tpu.memory_space<vmem>>) attributes {dimension_semantics = [#tpu.dimension_semantics<parallel>], iteration_bounds = array<i64: 2>, scalar_prefetch = 0 : i64, scratch_operands = 0 : i64, tpu.core_type = #tpu.core_type<tc>, window_params = [{transform_indices = @transform_0, window_bounds = array<i64: 1, 8, 32>}, {transform_indices = @transform_1, window_bounds = array<i64: 1, 1, 8>}, {pipeline_mode = #tpu.pipeline_mode<synchronous>, transform_indices = @transform_2, window_bounds = array<i64: 32, 32>}, {pipeline_mode = #tpu.pipeline_mode<synchronous>, transform_indices = @transform_3, window_bounds = array<i64: 1, 32>}, {pipeline_mode = #tpu.pipeline_mode<synchronous>, transform_indices = @transform_4, window_bounds = array<i64: 32, 32>}, {pipeline_mode = #tpu.pipeline_mode<synchronous>, transform_indices = @transform_5, window_bounds = array<i64: 1, 32>}, {pipeline_mode = #tpu.pipeline_mode<synchronous>, transform_indices = @transform_6, window_bounds = array<i64: 32, 32>}, {pipeline_mode = #tpu.pipeline_mode<synchronous>, transform_indices = @transform_7, window_bounds = array<i64: 1, 32>}, {pipeline_mode = #tpu.pipeline_mode<synchronous>, transform_indices = @transform_8, window_bounds = array<i64: 32, 32>}, {pipeline_mode = #tpu.pipeline_mode<synchronous>, transform_indices = @transform_9, window_bounds = array<i64: 1, 32>}, {pipeline_mode = #tpu.pipeline_mode<synchronous>, transform_indices = @transform_10, window_bounds = array<i64: 1, 32>}, {pipeline_mode = #tpu.pipeline_mode<synchronous>, transform_indices = @transform_11, window_bounds = array<i64: 1, 32>}, {pipeline_mode = #tpu.pipeline_mode<synchronous>, transform_indices = @transform_12, window_bounds = array<i64: 32, 64>}, {pipeline_mode = #tpu.pipeline_mode<synchronous>, transform_indices = @transform_13, window_bounds = array<i64: 1, 64>}, {pipeline_mode = #tpu.pipeline_mode<synchronous>, transform_indices = @transform_14, window_bounds = array<i64: 64, 32>}, {pipeline_mode = #tpu.pipeline_mode<synchronous>, transform_indices = @transform_15, window_bounds = array<i64: 1, 32>}, {pipeline_mode = #tpu.pipeline_mode<synchronous>, transform_indices = @transform_16, window_bounds = array<i64: 1, 32>}, {pipeline_mode = #tpu.pipeline_mode<synchronous>, transform_indices = @transform_17, window_bounds = array<i64: 1, 32>}, {transform_indices = @transform_18, window_bounds = array<i64: 1, 8, 32>}, {transform_indices = @transform_19, window_bounds = array<i64: 4, 1, 8, 8>}]} {
    %c0 = arith.constant 0 : index
    %c0_0 = arith.constant 0 : index
    %c0_1 = arith.constant 0 : index
    %0 = vector.load %arg1[%c0, %c0_0, %c0_1] : memref<1x8x32xf32, #tpu.memory_space<vmem>>, vector<1x8x32xf32>
    %1 = vector.shape_cast %0 : vector<1x8x32xf32> to vector<8x32xf32>
    %2 = arith.truncf %1 : vector<8x32xf32> to vector<8x32xbf16>
    %c0_2 = arith.constant 0 : index
    %c0_3 = arith.constant 0 : index
    %3 = vector.load %arg3[%c0_2, %c0_3] : memref<32x32xbf16, #tpu.memory_space<vmem>>, vector<32x32xbf16>
    %cst = arith.constant dense<0.000000e+00> : vector<8x32xf32>
    %4 = tpu.matmul %2, %3, %cst {dimension_numbers = #tpu.dot_dimension_numbers<[1], [0], [0], [1], [0, 0, 1, 1], [], []>} : vector<8x32xbf16>, vector<32x32xbf16>, vector<8x32xf32> -> vector<8x32xf32>
    %c0_4 = arith.constant 0 : index
    %c0_5 = arith.constant 0 : index
    %5 = vector.load %arg4[%c0_4, %c0_5] : memref<1x32xf32, #tpu.memory_space<vmem>>, vector<1x32xf32>
    %6 = vector.broadcast %5 : vector<1x32xf32> to vector<8x32xf32>
    %7 = arith.addf %4, %6 : vector<8x32xf32>
    %c0_6 = arith.constant 0 : index
    %c0_7 = arith.constant 0 : index
    %8 = vector.load %arg5[%c0_6, %c0_7] : memref<32x32xbf16, #tpu.memory_space<vmem>>, vector<32x32xbf16>
    %cst_8 = arith.constant dense<0.000000e+00> : vector<8x32xf32>
    %9 = tpu.matmul %2, %8, %cst_8 {dimension_numbers = #tpu.dot_dimension_numbers<[1], [0], [0], [1], [0, 0, 1, 1], [], []>} : vector<8x32xbf16>, vector<32x32xbf16>, vector<8x32xf32> -> vector<8x32xf32>
    %c0_9 = arith.constant 0 : index
    %c0_10 = arith.constant 0 : index
    %10 = vector.load %arg6[%c0_9, %c0_10] : memref<1x32xf32, #tpu.memory_space<vmem>>, vector<1x32xf32>
    %11 = vector.broadcast %10 : vector<1x32xf32> to vector<8x32xf32>
    %12 = arith.addf %9, %11 : vector<8x32xf32>
    %c0_11 = arith.constant 0 : index
    %c0_12 = arith.constant 0 : index
    %13 = vector.load %arg7[%c0_11, %c0_12] : memref<32x32xbf16, #tpu.memory_space<vmem>>, vector<32x32xbf16>
    %cst_13 = arith.constant dense<0.000000e+00> : vector<8x32xf32>
    %14 = tpu.matmul %2, %13, %cst_13 {dimension_numbers = #tpu.dot_dimension_numbers<[1], [0], [0], [1], [0, 0, 1, 1], [], []>} : vector<8x32xbf16>, vector<32x32xbf16>, vector<8x32xf32> -> vector<8x32xf32>
    %c0_14 = arith.constant 0 : index
    %c0_15 = arith.constant 0 : index
    %15 = vector.load %arg8[%c0_14, %c0_15] : memref<1x32xf32, #tpu.memory_space<vmem>>, vector<1x32xf32>
    %16 = vector.broadcast %15 : vector<1x32xf32> to vector<8x32xf32>
    %17 = arith.addf %14, %16 : vector<8x32xf32>
    %c0_16 = arith.constant 0 : index
    %c0_17 = arith.constant 0 : index
    %c0_18 = arith.constant 0 : index
    %18 = vector.load %arg2[%c0_16, %c0_17, %c0_18] : memref<1x1x8xf32, #tpu.memory_space<vmem>>, vector<1x1x8xf32>
    %cst_19 = arith.constant 0.000000e+00 : f32
    %19 = vector.broadcast %cst_19 : f32 to vector<1x1x8xf32>
    %20 = arith.cmpf oeq, %18, %19 : vector<1x1x8xf32>
    %cst_20 = arith.constant 0xFF800000 : f32
    %21 = vector.broadcast %cst_20 : f32 to vector<1x1x8xf32>
    %22 = arith.select %20, %21, %18 : vector<1x1x8xi1>, vector<1x1x8xf32>
    %23 = tpu.iota {dimensions = array<i32: 0>} : vector<8x8xi32>
    %24 = tpu.iota {dimensions = array<i32: 1>} : vector<8x8xi32>
    %25 = arith.cmpi sge, %23, %24 : vector<8x8xi32>
    %26 = vector.shape_cast %7 : vector<8x32xf32> to vector<1x8x32xf32>
    %27 = vector.shape_cast %12 : vector<8x32xf32> to vector<1x8x32xf32>
    %28 = vector.shape_cast %17 : vector<8x32xf32> to vector<1x8x32xf32>
    %29 = vector.extract_strided_slice %26 {offsets = [0, 0, 0], sizes = [1, 8, 8], strides = [1, 1, 1]} : vector<1x8x32xf32> to vector<1x8x8xf32>
    %cst_21 = arith.constant 0.353553385 : f32
    %30 = vector.broadcast %cst_21 : f32 to vector<1x8x8xf32>
    %31 = arith.mulf %29, %30 : vector<1x8x8xf32>
    %32 = arith.truncf %31 : vector<1x8x8xf32> to vector<1x8x8xbf16>
    %33 = vector.extract_strided_slice %27 {offsets = [0, 0, 0], sizes = [1, 8, 8], strides = [1, 1, 1]} : vector<1x8x32xf32> to vector<1x8x8xf32>
    %34 = arith.truncf %33 : vector<1x8x8xf32> to vector<1x8x8xbf16>
    %35 = vector.extract_strided_slice %28 {offsets = [0, 0, 0], sizes = [1, 8, 8], strides = [1, 1, 1]} : vector<1x8x32xf32> to vector<1x8x8xf32>
    %36 = arith.truncf %35 : vector<1x8x8xf32> to vector<1x8x8xbf16>
    "tpu.trace_start"() <{level = 10 : i32, message = "bik,bjk->bij"}> : () -> ()
    %cst_22 = arith.constant dense<0.000000e+00> : vector<1x8x8xf32>
    %37 = tpu.matmul %32, %34, %cst_22 {dimension_numbers = #tpu.dot_dimension_numbers<[2], [2], [1], [1], [0, 0, 0, 1, 1, 1], [0], [0]>} : vector<1x8x8xbf16>, vector<1x8x8xbf16>, vector<1x8x8xf32> -> vector<1x8x8xf32>
    "tpu.trace_stop"() : () -> ()
    %c0_23 = arith.constant 0 : index
    %c0_24 = arith.constant 0 : index
    %c0_25 = arith.constant 0 : index
    %c0_26 = arith.constant 0 : index
    %38 = vector.load %arg20[%c0_23, %c0_24, %c0_25, %c0_26] : memref<4x1x8x8xf32, #tpu.memory_space<vmem>>, vector<1x1x8x8xf32>
    %39 = vector.shape_cast %38 : vector<1x1x8x8xf32> to vector<1x8x8xf32>
    %40 = vector.shape_cast %37 : vector<1x8x8xf32> to vector<1x1x8x8xf32>
    tpu.vector_store %arg20[%c0_23, %c0_24, %c0_25, %c0_26], %40 {strides = array<i32>} : memref<4x1x8x8xf32, #tpu.memory_space<vmem>>, vector<1x1x8x8xf32>,
    %41 = vector.shape_cast %25 : vector<8x8xi1> to vector<1x8x8xi1>
    %cst_27 = arith.constant -4.2949673E+9 : f32
    %42 = vector.broadcast %cst_27 : f32 to vector<1x8x8xf32>
    %43 = arith.select %41, %37, %42 : vector<1x8x8xi1>, vector<1x8x8xf32>
    %44 = vector.broadcast %22 : vector<1x1x8xf32> to vector<1x8x8xf32>
    %45 = arith.addf %43, %44 : vector<1x8x8xf32>
    %cst_28 = arith.constant dense<0xFF800000> : vector<1x8xf32>
    %46 = vector.multi_reduction <maximumf>, %45, %cst_28 [2] : vector<1x8x8xf32> to vector<1x8xf32>
    %47 = vector.shape_cast %46 : vector<1x8xf32> to vector<1x8x1xf32>
    %48 = vector.broadcast %47 : vector<1x8x1xf32> to vector<1x8x8xf32>
    %49 = arith.subf %45, %48 : vector<1x8x8xf32>
    %50 = math.exp %49 : vector<1x8x8xf32>
    %cst_29 = arith.constant dense<0.000000e+00> : vector<1x8xf32>
    %51 = vector.multi_reduction <add>, %50, %cst_29 [2] : vector<1x8x8xf32> to vector<1x8xf32>
    %52 = vector.shape_cast %51 : vector<1x8xf32> to vector<1x8x1xf32>
    %53 = tpu.reciprocal %52 {approx = true} : vector<1x8x1xf32> -> vector<1x8x1xf32>
    %54 = vector.broadcast %53 : vector<1x8x1xf32> to vector<1x8x8xf32>
    %55 = arith.mulf %50, %54 : vector<1x8x8xf32>
    %56 = arith.truncf %55 : vector<1x8x8xf32> to vector<1x8x8xbf16>
    "tpu.trace_start"() <{level = 10 : i32, message = "bij,bjd->bid"}> : () -> ()
    %cst_30 = arith.constant dense<0.000000e+00> : vector<1x8x8xf32>
    %57 = tpu.matmul %56, %36, %cst_30 {dimension_numbers = #tpu.dot_dimension_numbers<[2], [1], [1], [2], [0, 0, 0, 1, 1, 2], [0], [0]>} : vector<1x8x8xbf16>, vector<1x8x8xbf16>, vector<1x8x8xf32> -> vector<1x8x8xf32>
    "tpu.trace_stop"() : () -> ()
    %58 = vector.extract_strided_slice %26 {offsets = [0, 0, 8], sizes = [1, 8, 8], strides = [1, 1, 1]} : vector<1x8x32xf32> to vector<1x8x8xf32>
    %cst_31 = arith.constant 0.353553385 : f32
    %59 = vector.broadcast %cst_31 : f32 to vector<1x8x8xf32>
    %60 = arith.mulf %58, %59 : vector<1x8x8xf32>
    %61 = arith.truncf %60 : vector<1x8x8xf32> to vector<1x8x8xbf16>
    %62 = vector.extract_strided_slice %27 {offsets = [0, 0, 8], sizes = [1, 8, 8], strides = [1, 1, 1]} : vector<1x8x32xf32> to vector<1x8x8xf32>
    %63 = arith.truncf %62 : vector<1x8x8xf32> to vector<1x8x8xbf16>
    %64 = vector.extract_strided_slice %28 {offsets = [0, 0, 8], sizes = [1, 8, 8], strides = [1, 1, 1]} : vector<1x8x32xf32> to vector<1x8x8xf32>
    %65 = arith.truncf %64 : vector<1x8x8xf32> to vector<1x8x8xbf16>
    "tpu.trace_start"() <{level = 10 : i32, message = "bik,bjk->bij"}> : () -> ()
    %cst_32 = arith.constant dense<0.000000e+00> : vector<1x8x8xf32>
    %66 = tpu.matmul %61, %63, %cst_32 {dimension_numbers = #tpu.dot_dimension_numbers<[2], [2], [1], [1], [0, 0, 0, 1, 1, 1], [0], [0]>} : vector<1x8x8xbf16>, vector<1x8x8xbf16>, vector<1x8x8xf32> -> vector<1x8x8xf32>
    "tpu.trace_stop"() : () -> ()
    %c1 = arith.constant 1 : index
    %c0_33 = arith.constant 0 : index
    %c0_34 = arith.constant 0 : index
    %c0_35 = arith.constant 0 : index
    %67 = vector.load %arg20[%c1, %c0_33, %c0_34, %c0_35] : memref<4x1x8x8xf32, #tpu.memory_space<vmem>>, vector<1x1x8x8xf32>
    %68 = vector.shape_cast %67 : vector<1x1x8x8xf32> to vector<1x8x8xf32>
    %69 = vector.shape_cast %66 : vector<1x8x8xf32> to vector<1x1x8x8xf32>
    tpu.vector_store %arg20[%c1, %c0_33, %c0_34, %c0_35], %69 {strides = array<i32>} : memref<4x1x8x8xf32, #tpu.memory_space<vmem>>, vector<1x1x8x8xf32>,
    %70 = vector.shape_cast %25 : vector<8x8xi1> to vector<1x8x8xi1>
    %cst_36 = arith.constant -4.2949673E+9 : f32
    %71 = vector.broadcast %cst_36 : f32 to vector<1x8x8xf32>
    %72 = arith.select %70, %66, %71 : vector<1x8x8xi1>, vector<1x8x8xf32>
    %73 = vector.broadcast %22 : vector<1x1x8xf32> to vector<1x8x8xf32>
    %74 = arith.addf %72, %73 : vector<1x8x8xf32>
    %cst_37 = arith.constant dense<0xFF800000> : vector<1x8xf32>
    %75 = vector.multi_reduction <maximumf>, %74, %cst_37 [2] : vector<1x8x8xf32> to vector<1x8xf32>
    %76 = vector.shape_cast %75 : vector<1x8xf32> to vector<1x8x1xf32>
    %77 = vector.broadcast %76 : vector<1x8x1xf32> to vector<1x8x8xf32>
    %78 = arith.subf %74, %77 : vector<1x8x8xf32>
    %79 = math.exp %78 : vector<1x8x8xf32>
    %cst_38 = arith.constant dense<0.000000e+00> : vector<1x8xf32>
    %80 = vector.multi_reduction <add>, %79, %cst_38 [2] : vector<1x8x8xf32> to vector<1x8xf32>
    %81 = vector.shape_cast %80 : vector<1x8xf32> to vector<1x8x1xf32>
    %82 = tpu.reciprocal %81 {approx = true} : vector<1x8x1xf32> -> vector<1x8x1xf32>
    %83 = vector.broadcast %82 : vector<1x8x1xf32> to vector<1x8x8xf32>
    %84 = arith.mulf %79, %83 : vector<1x8x8xf32>
    %85 = arith.truncf %84 : vector<1x8x8xf32> to vector<1x8x8xbf16>
    "tpu.trace_start"() <{level = 10 : i32, message = "bij,bjd->bid"}> : () -> ()
    %cst_39 = arith.constant dense<0.000000e+00> : vector<1x8x8xf32>
    %86 = tpu.matmul %85, %65, %cst_39 {dimension_numbers = #tpu.dot_dimension_numbers<[2], [1], [1], [2], [0, 0, 0, 1, 1, 2], [0], [0]>} : vector<1x8x8xbf16>, vector<1x8x8xbf16>, vector<1x8x8xf32> -> vector<1x8x8xf32>
    "tpu.trace_stop"() : () -> ()
    %87 = vector.extract_strided_slice %26 {offsets = [0, 0, 16], sizes = [1, 8, 8], strides = [1, 1, 1]} : vector<1x8x32xf32> to vector<1x8x8xf32>
    %cst_40 = arith.constant 0.353553385 : f32
    %88 = vector.broadcast %cst_40 : f32 to vector<1x8x8xf32>
    %89 = arith.mulf %87, %88 : vector<1x8x8xf32>
    %90 = arith.truncf %89 : vector<1x8x8xf32> to vector<1x8x8xbf16>
    %91 = vector.extract_strided_slice %27 {offsets = [0, 0, 16], sizes = [1, 8, 8], strides = [1, 1, 1]} : vector<1x8x32xf32> to vector<1x8x8xf32>
    %92 = arith.truncf %91 : vector<1x8x8xf32> to vector<1x8x8xbf16>
    %93 = vector.extract_strided_slice %28 {offsets = [0, 0, 16], sizes = [1, 8, 8], strides = [1, 1, 1]} : vector<1x8x32xf32> to vector<1x8x8xf32>
    %94 = arith.truncf %93 : vector<1x8x8xf32> to vector<1x8x8xbf16>
    "tpu.trace_start"() <{level = 10 : i32, message = "bik,bjk->bij"}> : () -> ()
    %cst_41 = arith.constant dense<0.000000e+00> : vector<1x8x8xf32>
    %95 = tpu.matmul %90, %92, %cst_41 {dimension_numbers = #tpu.dot_dimension_numbers<[2], [2], [1], [1], [0, 0, 0, 1, 1, 1], [0], [0]>} : vector<1x8x8xbf16>, vector<1x8x8xbf16>, vector<1x8x8xf32> -> vector<1x8x8xf32>
    "tpu.trace_stop"() : () -> ()
    %c2 = arith.constant 2 : index
    %c0_42 = arith.constant 0 : index
    %c0_43 = arith.constant 0 : index
    %c0_44 = arith.constant 0 : index
    %96 = vector.load %arg20[%c2, %c0_42, %c0_43, %c0_44] : memref<4x1x8x8xf32, #tpu.memory_space<vmem>>, vector<1x1x8x8xf32>
    %97 = vector.shape_cast %96 : vector<1x1x8x8xf32> to vector<1x8x8xf32>
    %98 = vector.shape_cast %95 : vector<1x8x8xf32> to vector<1x1x8x8xf32>
    tpu.vector_store %arg20[%c2, %c0_42, %c0_43, %c0_44], %98 {strides = array<i32>} : memref<4x1x8x8xf32, #tpu.memory_space<vmem>>, vector<1x1x8x8xf32>,
    %99 = vector.shape_cast %25 : vector<8x8xi1> to vector<1x8x8xi1>
    %cst_45 = arith.constant -4.2949673E+9 : f32
    %100 = vector.broadcast %cst_45 : f32 to vector<1x8x8xf32>
    %101 = arith.select %99, %95, %100 : vector<1x8x8xi1>, vector<1x8x8xf32>
    %102 = vector.broadcast %22 : vector<1x1x8xf32> to vector<1x8x8xf32>
    %103 = arith.addf %101, %102 : vector<1x8x8xf32>
    %cst_46 = arith.constant dense<0xFF800000> : vector<1x8xf32>
    %104 = vector.multi_reduction <maximumf>, %103, %cst_46 [2] : vector<1x8x8xf32> to vector<1x8xf32>
    %105 = vector.shape_cast %104 : vector<1x8xf32> to vector<1x8x1xf32>
    %106 = vector.broadcast %105 : vector<1x8x1xf32> to vector<1x8x8xf32>
    %107 = arith.subf %103, %106 : vector<1x8x8xf32>
    %108 = math.exp %107 : vector<1x8x8xf32>
    %cst_47 = arith.constant dense<0.000000e+00> : vector<1x8xf32>
    %109 = vector.multi_reduction <add>, %108, %cst_47 [2] : vector<1x8x8xf32> to vector<1x8xf32>
    %110 = vector.shape_cast %109 : vector<1x8xf32> to vector<1x8x1xf32>
    %111 = tpu.reciprocal %110 {approx = true} : vector<1x8x1xf32> -> vector<1x8x1xf32>
    %112 = vector.broadcast %111 : vector<1x8x1xf32> to vector<1x8x8xf32>
    %113 = arith.mulf %108, %112 : vector<1x8x8xf32>
    %114 = arith.truncf %113 : vector<1x8x8xf32> to vector<1x8x8xbf16>
    "tpu.trace_start"() <{level = 10 : i32, message = "bij,bjd->bid"}> : () -> ()
    %cst_48 = arith.constant dense<0.000000e+00> : vector<1x8x8xf32>
    %115 = tpu.matmul %114, %94, %cst_48 {dimension_numbers = #tpu.dot_dimension_numbers<[2], [1], [1], [2], [0, 0, 0, 1, 1, 2], [0], [0]>} : vector<1x8x8xbf16>, vector<1x8x8xbf16>, vector<1x8x8xf32> -> vector<1x8x8xf32>
    "tpu.trace_stop"() : () -> ()
    %116 = vector.extract_strided_slice %26 {offsets = [0, 0, 24], sizes = [1, 8, 8], strides = [1, 1, 1]} : vector<1x8x32xf32> to vector<1x8x8xf32>
    %cst_49 = arith.constant 0.353553385 : f32
    %117 = vector.broadcast %cst_49 : f32 to vector<1x8x8xf32>
    %118 = arith.mulf %116, %117 : vector<1x8x8xf32>
    %119 = arith.truncf %118 : vector<1x8x8xf32> to vector<1x8x8xbf16>
    %120 = vector.extract_strided_slice %27 {offsets = [0, 0, 24], sizes = [1, 8, 8], strides = [1, 1, 1]} : vector<1x8x32xf32> to vector<1x8x8xf32>
    %121 = arith.truncf %120 : vector<1x8x8xf32> to vector<1x8x8xbf16>
    %122 = vector.extract_strided_slice %28 {offsets = [0, 0, 24], sizes = [1, 8, 8], strides = [1, 1, 1]} : vector<1x8x32xf32> to vector<1x8x8xf32>
    %123 = arith.truncf %122 : vector<1x8x8xf32> to vector<1x8x8xbf16>
    "tpu.trace_start"() <{level = 10 : i32, message = "bik,bjk->bij"}> : () -> ()
    %cst_50 = arith.constant dense<0.000000e+00> : vector<1x8x8xf32>
    %124 = tpu.matmul %119, %121, %cst_50 {dimension_numbers = #tpu.dot_dimension_numbers<[2], [2], [1], [1], [0, 0, 0, 1, 1, 1], [0], [0]>} : vector<1x8x8xbf16>, vector<1x8x8xbf16>, vector<1x8x8xf32> -> vector<1x8x8xf32>
    "tpu.trace_stop"() : () -> ()
    %c3 = arith.constant 3 : index
    %c0_51 = arith.constant 0 : index
    %c0_52 = arith.constant 0 : index
    %c0_53 = arith.constant 0 : index
    %125 = vector.load %arg20[%c3, %c0_51, %c0_52, %c0_53] : memref<4x1x8x8xf32, #tpu.memory_space<vmem>>, vector<1x1x8x8xf32>
    %126 = vector.shape_cast %125 : vector<1x1x8x8xf32> to vector<1x8x8xf32>
    %127 = vector.shape_cast %124 : vector<1x8x8xf32> to vector<1x1x8x8xf32>
    tpu.vector_store %arg20[%c3, %c0_51, %c0_52, %c0_53], %127 {strides = array<i32>} : memref<4x1x8x8xf32, #tpu.memory_space<vmem>>, vector<1x1x8x8xf32>,
    %128 = vector.shape_cast %25 : vector<8x8xi1> to vector<1x8x8xi1>
    %cst_54 = arith.constant -4.2949673E+9 : f32
    %129 = vector.broadcast %cst_54 : f32 to vector<1x8x8xf32>
    %130 = arith.select %128, %124, %129 : vector<1x8x8xi1>, vector<1x8x8xf32>
    %131 = vector.broadcast %22 : vector<1x1x8xf32> to vector<1x8x8xf32>
    %132 = arith.addf %130, %131 : vector<1x8x8xf32>
    %cst_55 = arith.constant dense<0xFF800000> : vector<1x8xf32>
    %133 = vector.multi_reduction <maximumf>, %132, %cst_55 [2] : vector<1x8x8xf32> to vector<1x8xf32>
    %134 = vector.shape_cast %133 : vector<1x8xf32> to vector<1x8x1xf32>
    %135 = vector.broadcast %134 : vector<1x8x1xf32> to vector<1x8x8xf32>
    %136 = arith.subf %132, %135 : vector<1x8x8xf32>
    %137 = math.exp %136 : vector<1x8x8xf32>
    %cst_56 = arith.constant dense<0.000000e+00> : vector<1x8xf32>
    %138 = vector.multi_reduction <add>, %137, %cst_56 [2] : vector<1x8x8xf32> to vector<1x8xf32>
    %139 = vector.shape_cast %138 : vector<1x8xf32> to vector<1x8x1xf32>
    %140 = tpu.reciprocal %139 {approx = true} : vector<1x8x1xf32> -> vector<1x8x1xf32>
    %141 = vector.broadcast %140 : vector<1x8x1xf32> to vector<1x8x8xf32>
    %142 = arith.mulf %137, %141 : vector<1x8x8xf32>
    %143 = arith.truncf %142 : vector<1x8x8xf32> to vector<1x8x8xbf16>
    "tpu.trace_start"() <{level = 10 : i32, message = "bij,bjd->bid"}> : () -> ()
    %cst_57 = arith.constant dense<0.000000e+00> : vector<1x8x8xf32>
    %144 = tpu.matmul %143, %123, %cst_57 {dimension_numbers = #tpu.dot_dimension_numbers<[2], [1], [1], [2], [0, 0, 0, 1, 1, 2], [0], [0]>} : vector<1x8x8xbf16>, vector<1x8x8xbf16>, vector<1x8x8xf32> -> vector<1x8x8xf32>
    "tpu.trace_stop"() : () -> ()
    %145 = tpu.concatenate %57, %86, %115, %144 in 2 : vector<1x8x8xf32>, vector<1x8x8xf32>, vector<1x8x8xf32>, vector<1x8x8xf32> -> vector<1x8x32xf32>
    %146 = vector.shape_cast %145 : vector<1x8x32xf32> to vector<8x32xf32>
    %147 = arith.truncf %146 : vector<8x32xf32> to vector<8x32xbf16>
    %c0_58 = arith.constant 0 : index
    %c0_59 = arith.constant 0 : index
    %148 = vector.load %arg9[%c0_58, %c0_59] : memref<32x32xbf16, #tpu.memory_space<vmem>>, vector<32x32xbf16>
    %cst_60 = arith.constant dense<0.000000e+00> : vector<8x32xf32>
    %149 = tpu.matmul %147, %148, %cst_60 {dimension_numbers = #tpu.dot_dimension_numbers<[1], [0], [0], [1], [0, 0, 1, 1], [], []>} : vector<8x32xbf16>, vector<32x32xbf16>, vector<8x32xf32> -> vector<8x32xf32>
    %c0_61 = arith.constant 0 : index
    %c0_62 = arith.constant 0 : index
    %150 = vector.load %arg10[%c0_61, %c0_62] : memref<1x32xf32, #tpu.memory_space<vmem>>, vector<1x32xf32>
    %151 = vector.broadcast %150 : vector<1x32xf32> to vector<8x32xf32>
    %152 = arith.addf %149, %151 : vector<8x32xf32>
    %153 = arith.addf %152, %1 : vector<8x32xf32>
    %c0_63 = arith.constant 0 : index
    %c0_64 = arith.constant 0 : index
    %154 = vector.load %arg11[%c0_63, %c0_64] : memref<1x32xf32, #tpu.memory_space<vmem>>, vector<1x32xf32>
    %c0_65 = arith.constant 0 : index
    %c0_66 = arith.constant 0 : index
    %155 = vector.load %arg12[%c0_65, %c0_66] : memref<1x32xf32, #tpu.memory_space<vmem>>, vector<1x32xf32>
    %cst_67 = arith.constant dense<0.000000e+00> : vector<8xf32>
    %156 = vector.multi_reduction <add>, %153, %cst_67 [1] : vector<8x32xf32> to vector<8xf32>
    %157 = vector.shape_cast %156 : vector<8xf32> to vector<8x1xf32>
    %cst_68 = arith.constant 3.200000e+01 : f32
    %158 = vector.broadcast %cst_68 : f32 to vector<8x1xf32>
    %159 = arith.divf %157, %158 : vector<8x1xf32>
    %160 = vector.broadcast %159 : vector<8x1xf32> to vector<8x32xf32>
    %161 = arith.subf %153, %160 : vector<8x32xf32>
    %162 = arith.mulf %161, %161 : vector<8x32xf32>
    %cst_69 = arith.constant dense<0.000000e+00> : vector<8xf32>
    %163 = vector.multi_reduction <add>, %162, %cst_69 [1] : vector<8x32xf32> to vector<8xf32>
    %164 = vector.shape_cast %163 : vector<8xf32> to vector<8x1xf32>
    %cst_70 = arith.constant 3.200000e+01 : f32
    %165 = vector.broadcast %cst_70 : f32 to vector<8x1xf32>
    %166 = arith.divf %164, %165 : vector<8x1xf32>
    %167 = vector.broadcast %159 : vector<8x1xf32> to vector<8x32xf32>
    %168 = arith.subf %153, %167 : vector<8x32xf32>
    %cst_71 = arith.constant 9.99999974E-6 : f32
    %169 = vector.broadcast %cst_71 : f32 to vector<8x1xf32>
    %170 = arith.addf %166, %169 : vector<8x1xf32>
    %171 = math.rsqrt %170 : vector<8x1xf32>
    %172 = vector.broadcast %171 : vector<8x1xf32> to vector<8x32xf32>
    %173 = arith.mulf %168, %172 : vector<8x32xf32>
    %174 = vector.broadcast %154 : vector<1x32xf32> to vector<8x32xf32>
    %175 = arith.mulf %173, %174 : vector<8x32xf32>
    %176 = vector.broadcast %155 : vector<1x32xf32> to vector<8x32xf32>
    %177 = arith.addf %175, %176 : vector<8x32xf32>
    %178 = arith.truncf %177 : vector<8x32xf32> to vector<8x32xbf16>
    %c0_72 = arith.constant 0 : index
    %c0_73 = arith.constant 0 : index
    %179 = vector.load %arg13[%c0_72, %c0_73] : memref<32x64xbf16, #tpu.memory_space<vmem>>, vector<32x64xbf16>
    %cst_74 = arith.constant dense<0.000000e+00> : vector<8x64xf32>
    %180 = tpu.matmul %178, %179, %cst_74 {dimension_numbers = #tpu.dot_dimension_numbers<[1], [0], [0], [1], [0, 0, 1, 1], [], []>} : vector<8x32xbf16>, vector<32x64xbf16>, vector<8x64xf32> -> vector<8x64xf32>
    %c0_75 = arith.constant 0 : index
    %c0_76 = arith.constant 0 : index
    %181 = vector.load %arg14[%c0_75, %c0_76] : memref<1x64xf32, #tpu.memory_space<vmem>>, vector<1x64xf32>
    %182 = vector.broadcast %181 : vector<1x64xf32> to vector<8x64xf32>
    %183 = arith.addf %180, %182 : vector<8x64xf32>
    %cst_77 = arith.constant 0.000000e+00 : f32
    %184 = vector.broadcast %cst_77 : f32 to vector<8x64xf32>
    %185 = arith.maximumf %183, %184 : vector<8x64xf32>
    %186 = arith.truncf %185 : vector<8x64xf32> to vector<8x64xbf16>
    %c0_78 = arith.constant 0 : index
    %c0_79 = arith.constant 0 : index
    %187 = vector.load %arg15[%c0_78, %c0_79] : memref<64x32xbf16, #tpu.memory_space<vmem>>, vector<64x32xbf16>
    %cst_80 = arith.constant dense<0.000000e+00> : vector<8x32xf32>
    %188 = tpu.matmul %186, %187, %cst_80 {dimension_numbers = #tpu.dot_dimension_numbers<[1], [0], [0], [1], [0, 0, 1, 1], [], []>} : vector<8x64xbf16>, vector<64x32xbf16>, vector<8x32xf32> -> vector<8x32xf32>
    %c0_81 = arith.constant 0 : index
    %c0_82 = arith.constant 0 : index
    %189 = vector.load %arg16[%c0_81, %c0_82] : memref<1x32xf32, #tpu.memory_space<vmem>>, vector<1x32xf32>
    %190 = vector.broadcast %189 : vector<1x32xf32> to vector<8x32xf32>
    %191 = arith.addf %188, %190 : vector<8x32xf32>
    %192 = arith.addf %191, %177 : vector<8x32xf32>
    %c0_83 = arith.constant 0 : index
    %c0_84 = arith.constant 0 : index
    %193 = vector.load %arg17[%c0_83, %c0_84] : memref<1x32xf32, #tpu.memory_space<vmem>>, vector<1x32xf32>
    %c0_85 = arith.constant 0 : index
    %c0_86 = arith.constant 0 : index
    %194 = vector.load %arg18[%c0_85, %c0_86] : memref<1x32xf32, #tpu.memory_space<vmem>>, vector<1x32xf32>
    %cst_87 = arith.constant dense<0.000000e+00> : vector<8xf32>
    %195 = vector.multi_reduction <add>, %192, %cst_87 [1] : vector<8x32xf32> to vector<8xf32>
    %196 = vector.shape_cast %195 : vector<8xf32> to vector<8x1xf32>
    %cst_88 = arith.constant 3.200000e+01 : f32
    %197 = vector.broadcast %cst_88 : f32 to vector<8x1xf32>
    %198 = arith.divf %196, %197 : vector<8x1xf32>
    %199 = vector.broadcast %198 : vector<8x1xf32> to vector<8x32xf32>
    %200 = arith.subf %192, %199 : vector<8x32xf32>
    %201 = arith.mulf %200, %200 : vector<8x32xf32>
    %cst_89 = arith.constant dense<0.000000e+00> : vector<8xf32>
    %202 = vector.multi_reduction <add>, %201, %cst_89 [1] : vector<8x32xf32> to vector<8xf32>
    %203 = vector.shape_cast %202 : vector<8xf32> to vector<8x1xf32>
    %cst_90 = arith.constant 3.200000e+01 : f32
    %204 = vector.broadcast %cst_90 : f32 to vector<8x1xf32>
    %205 = arith.divf %203, %204 : vector<8x1xf32>
    %206 = vector.broadcast %198 : vector<8x1xf32> to vector<8x32xf32>
    %207 = arith.subf %192, %206 : vector<8x32xf32>
    %cst_91 = arith.constant 9.99999974E-6 : f32
    %208 = vector.broadcast %cst_91 : f32 to vector<8x1xf32>
    %209 = arith.addf %205, %208 : vector<8x1xf32>
    %210 = math.rsqrt %209 : vector<8x1xf32>
    %211 = vector.broadcast %210 : vector<8x1xf32> to vector<8x32xf32>
    %212 = arith.mulf %207, %211 : vector<8x32xf32>
    %213 = vector.broadcast %193 : vector<1x32xf32> to vector<8x32xf32>
    %214 = arith.mulf %212, %213 : vector<8x32xf32>
    %215 = vector.broadcast %194 : vector<1x32xf32> to vector<8x32xf32>
    %216 = arith.addf %214, %215 : vector<8x32xf32>
    %217 = vector.shape_cast %216 : vector<8x32xf32> to vector<1x8x32xf32>
    %c0_92 = arith.constant 0 : index
    %c0_93 = arith.constant 0 : index
    %c0_94 = arith.constant 0 : index
    %218 = vector.load %arg19[%c0_92, %c0_93, %c0_94] : memref<1x8x32xf32, #tpu.memory_space<vmem>>, vector<1x8x32xf32>
    tpu.vector_store %arg19[%c0_92, %c0_93, %c0_94], %217 {strides = array<i32>} : memref<1x8x32xf32, #tpu.memory_space<vmem>>, vector<1x8x32xf32>,
    return
  }
  func.func @transform_0(%arg0: i32) -> (i32, i32, i32) {
    %c0_i32 = arith.constant 0 : i32
    %c0_i32_0 = arith.constant 0 : i32
    %c0_i32_1 = arith.constant 0 : i32
    return %arg0, %c0_i32, %c0_i32_0 : i32, i32, i32
  }
  func.func @transform_1(%arg0: i32) -> (i32, i32, i32) {
    %c0_i32 = arith.constant 0 : i32
    %c0_i32_0 = arith.constant 0 : i32
    %c0_i32_1 = arith.constant 0 : i32
    return %arg0, %c0_i32, %c0_i32_0 : i32, i32, i32
  }
  func.func @transform_2(%arg0: i32) -> (i32, i32) {
    %c0_i32 = arith.constant 0 : i32
    %c0_i32_0 = arith.constant 0 : i32
    %c0_i32_1 = arith.constant 0 : i32
    return %c0_i32, %c0_i32_0 : i32, i32
  }
  func.func @transform_3(%arg0: i32) -> (i32, i32) {
    %c0_i32 = arith.constant 0 : i32
    %c0_i32_0 = arith.constant 0 : i32
    %c0_i32_1 = arith.constant 0 : i32
    return %c0_i32, %c0_i32_0 : i32, i32
  }
  func.func @transform_4(%arg0: i32) -> (i32, i32) {
    %c0_i32 = arith.constant 0 : i32
    %c0_i32_0 = arith.constant 0 : i32
    %c0_i32_1 = arith.constant 0 : i32
    return %c0_i32, %c0_i32_0 : i32, i32
  }
  func.func @transform_5(%arg0: i32) -> (i32, i32) {
    %c0_i32 = arith.constant 0 : i32
    %c0_i32_0 = arith.constant 0 : i32
    %c0_i32_1 = arith.constant 0 : i32
    return %c0_i32, %c0_i32_0 : i32, i32
  }
  func.func @transform_6(%arg0: i32) -> (i32, i32) {
    %c0_i32 = arith.constant 0 : i32
    %c0_i32_0 = arith.constant 0 : i32
    %c0_i32_1 = arith.constant 0 : i32
    return %c0_i32, %c0_i32_0 : i32, i32
  }
  func.func @transform_7(%arg0: i32) -> (i32, i32) {
    %c0_i32 = arith.constant 0 : i32
    %c0_i32_0 = arith.constant 0 : i32
    %c0_i32_1 = arith.constant 0 : i32
    return %c0_i32, %c0_i32_0 : i32, i32
  }
  func.func @transform_8(%arg0: i32) -> (i32, i32) {
    %c0_i32 = arith.constant 0 : i32
    %c0_i32_0 = arith.constant 0 : i32
    %c0_i32_1 = arith.constant 0 : i32
    return %c0_i32, %c0_i32_0 : i32, i32
  }
  func.func @transform_9(%arg0: i32) -> (i32, i32) {
    %c0_i32 = arith.constant 0 : i32
    %c0_i32_0 = arith.constant 0 : i32
    %c0_i32_1 = arith.constant 0 : i32
    return %c0_i32, %c0_i32_0 : i32, i32
  }
  func.func @transform_10(%arg0: i32) -> (i32, i32) {
    %c0_i32 = arith.constant 0 : i32
    %c0_i32_0 = arith.constant 0 : i32
    %c0_i32_1 = arith.constant 0 : i32
    return %c0_i32, %c0_i32_0 : i32, i32
  }
  func.func @transform_11(%arg0: i32) -> (i32, i32) {
    %c0_i32 = arith.constant 0 : i32
    %c0_i32_0 = arith.constant 0 : i32
    %c0_i32_1 = arith.constant 0 : i32
    return %c0_i32, %c0_i32_0 : i32, i32
  }
  func.func @transform_12(%arg0: i32) -> (i32, i32) {
    %c0_i32 = arith.constant 0 : i32
    %c0_i32_0 = arith.constant 0 : i32
    %c0_i32_1 = arith.constant 0 : i32
    return %c0_i32, %c0_i32_0 : i32, i32
  }
  func.func @transform_13(%arg0: i32) -> (i32, i32) {
    %c0_i32 = arith.constant 0 : i32
    %c0_i32_0 = arith.constant 0 : i32
    %c0_i32_1 = arith.constant 0 : i32
    return %c0_i32, %c0_i32_0 : i32, i32
  }
  func.func @transform_14(%arg0: i32) -> (i32, i32) {
    %c0_i32 = arith.constant 0 : i32
    %c0_i32_0 = arith.constant 0 : i32
    %c0_i32_1 = arith.constant 0 : i32
    return %c0_i32, %c0_i32_0 : i32, i32
  }
  func.func @transform_15(%arg0: i32) -> (i32, i32) {
    %c0_i32 = arith.constant 0 : i32
    %c0_i32_0 = arith.constant 0 : i32
    %c0_i32_1 = arith.constant 0 : i32
    return %c0_i32, %c0_i32_0 : i32, i32
  }
  func.func @transform_16(%arg0: i32) -> (i32, i32) {
    %c0_i32 = arith.constant 0 : i32
    %c0_i32_0 = arith.constant 0 : i32
    %c0_i32_1 = arith.constant 0 : i32
    return %c0_i32, %c0_i32_0 : i32, i32
  }
  func.func @transform_17(%arg0: i32) -> (i32, i32) {
    %c0_i32 = arith.constant 0 : i32
    %c0_i32_0 = arith.constant 0 : i32
    %c0_i32_1 = arith.constant 0 : i32
    return %c0_i32, %c0_i32_0 : i32, i32
  }
  func.func @transform_18(%arg0: i32) -> (i32, i32, i32) {
    %c0_i32 = arith.constant 0 : i32
    %c0_i32_0 = arith.constant 0 : i32
    %c0_i32_1 = arith.constant 0 : i32
    return %arg0, %c0_i32, %c0_i32_0 : i32, i32, i32
  }
  func.func @transform_19(%arg0: i32) -> (i32, i32, i32, i32) {
    %c0_i32 = arith.constant 0 : i32
    %c0_i32_0 = arith.constant 0 : i32
    %c0_i32_1 = arith.constant 0 : i32
    %c0_i32_2 = arith.constant 0 : i32
    return %c0_i32, %arg0, %c0_i32_0, %c0_i32_1 : i32, i32, i32, i32
  }
}

module attributes {stable_mosaic.version = 11 : i64} {
  func.func @encoder_kernel(%arg0: i32, %arg1: memref<1x8x32xf32, #tpu.memory_space<vmem>>, %arg2: memref<1x1x8xf32, #tpu.memory_space<vmem>>, %arg3: memref<32x32xbf16, #tpu.memory_space<vmem>>, %arg4: memref<1x32xf32, #tpu.memory_space<vmem>>, %arg5: memref<32x32xbf16, #tpu.memory_space<vmem>>, %arg6: memref<1x32xf32, #tpu.memory_space<vmem>>, %arg7: memref<32x32xbf16, #tpu.memory_space<vmem>>, %arg8: memref<1x32xf32, #tpu.memory_space<vmem>>, %arg9: memref<32x32xbf16, #tpu.memory_space<vmem>>, %arg10: memref<1x32xf32, #tpu.memory_space<vmem>>, %arg11: memref<1x32xf32, #tpu.memory_space<vmem>>, %arg12: memref<1x32xf32, #tpu.memory_space<vmem>>, %arg13: memref<32x64xbf16, #tpu.memory_space<vmem>>, %arg14: memref<1x64xf32, #tpu.memory_space<vmem>>, %arg15: memref<64x32xbf16, #tpu.memory_space<vmem>>, %arg16: memref<1x32xf32, #tpu.memory_space<vmem>>, %arg17: memref<1x32xf32, #tpu.memory_space<vmem>>, %arg18: memref<1x32xf32, #tpu.memory_space<vmem>>, %arg19: memref<1x8x32xf32, #tpu.memory_space<vmem>>, %arg20: memref<4x1x8x8xf32, #tpu.memory_space<vmem>>) attributes {dimension_semantics = [#tpu.dimension_semantics<parallel>], iteration_bounds = array<i64: 2>, scalar_prefetch = 0 : i64, scratch_operands = 0 : i64, tpu.core_type = #tpu.core_type<tc>, window_params = [{transform_indices = @transform_0, window_bounds = array<i64: 1, 8, 32>}, {transform_indices = @transform_1, window_bounds = array<i64: 1, 1, 8>}, {pipeline_mode = #tpu.pipeline_mode<synchronous>, transform_indices = @transform_2, window_bounds = array<i64: 32, 32>}, {pipeline_mode = #tpu.pipeline_mode<synchronous>, transform_indices = @transform_3, window_bounds = array<i64: 1, 32>}, {pipeline_mode = #tpu.pipeline_mode<synchronous>, transform_indices = @transform_4, window_bounds = array<i64: 32, 32>}, {pipeline_mode = #tpu.pipeline_mode<synchronous>, transform_indices = @transform_5, window_bounds = array<i64: 1, 32>}, {pipeline_mode = #tpu.pipeline_mode<synchronous>, transform_indices = @transform_6, window_bounds = array<i64: 32, 32>}, {pipeline_mode = #tpu.pipeline_mode<synchronous>, transform_indices = @transform_7, window_bounds = array<i64: 1, 32>}, {pipeline_mode = #tpu.pipeline_mode<synchronous>, transform_indices = @transform_8, window_bounds = array<i64: 32, 32>}, {pipeline_mode = #tpu.pipeline_mode<synchronous>, transform_indices = @transform_9, window_bounds = array<i64: 1, 32>}, {pipeline_mode = #tpu.pipeline_mode<synchronous>, transform_indices = @transform_10, window_bounds = array<i64: 1, 32>}, {pipeline_mode = #tpu.pipeline_mode<synchronous>, transform_indices = @transform_11, window_bounds = array<i64: 1, 32>}, {pipeline_mode = #tpu.pipeline_mode<synchronous>, transform_indices = @transform_12, window_bounds = array<i64: 32, 64>}, {pipeline_mode = #tpu.pipeline_mode<synchronous>, transform_indices = @transform_13, window_bounds = array<i64: 1, 64>}, {pipeline_mode = #tpu.pipeline_mode<synchronous>, transform_indices = @transform_14, window_bounds = array<i64: 64, 32>}, {pipeline_mode = #tpu.pipeline_mode<synchronous>, transform_indices = @transform_15, window_bounds = array<i64: 1, 32>}, {pipeline_mode = #tpu.pipeline_mode<synchronous>, transform_indices = @transform_16, window_bounds = array<i64: 1, 32>}, {pipeline_mode = #tpu.pipeline_mode<synchronous>, transform_indices = @transform_17, window_bounds = array<i64: 1, 32>}, {transform_indices = @transform_18, window_bounds = array<i64: 1, 8, 32>}, {transform_indices = @transform_19, window_bounds = array<i64: 4, 1, 8, 8>}]} {
    %c0 = arith.constant 0 : index
    %c0_0 = arith.constant 0 : index
    %c0_1 = arith.constant 0 : index
    %0 = vector.load %arg1[%c0, %c0_0, %c0_1] : memref<1x8x32xf32, #tpu.memory_space<vmem>>, vector<1x8x32xf32>
    %1 = vector.shape_cast %0 : vector<1x8x32xf32> to vector<8x32xf32>
    %2 = arith.truncf %1 : vector<8x32xf32> to vector<8x32xbf16>
    %c0_2 = arith.constant 0 : index
    %c0_3 = arith.constant 0 : index
    %3 = vector.load %arg3[%c0_2, %c0_3] : memref<32x32xbf16, #tpu.memory_space<vmem>>, vector<32x32xbf16>
    %cst = arith.constant dense<0.000000e+00> : vector<8x32xf32>
    %4 = tpu.matmul %2, %3, %cst {dimension_numbers = #tpu.dot_dimension_numbers<[1], [0], [0], [1], [0, 0, 1, 1], [], []>} : vector<8x32xbf16>, vector<32x32xbf16>, vector<8x32xf32> -> vector<8x32xf32>
    %c0_4 = arith.constant 0 : index
    %c0_5 = arith.constant 0 : index
    %5 = vector.load %arg4[%c0_4, %c0_5] : memref<1x32xf32, #tpu.memory_space<vmem>>, vector<1x32xf32>
    %6 = vector.broadcast %5 : vector<1x32xf32> to vector<8x32xf32>
    %7 = arith.addf %4, %6 : vector<8x32xf32>
    %c0_6 = arith.constant 0 : index
    %c0_7 = arith.constant 0 : index
    %8 = vector.load %arg5[%c0_6, %c0_7] : memref<32x32xbf16, #tpu.memory_space<vmem>>, vector<32x32xbf16>
    %cst_8 = arith.constant dense<0.000000e+00> : vector<8x32xf32>
    %9 = tpu.matmul %2, %8, %cst_8 {dimension_numbers = #tpu.dot_dimension_numbers<[1], [0], [0], [1], [0, 0, 1, 1], [], []>} : vector<8x32xbf16>, vector<32x32xbf16>, vector<8x32xf32> -> vector<8x32xf32>
    %c0_9 = arith.constant 0 : index
    %c0_10 = arith.constant 0 : index
    %10 = vector.load %arg6[%c0_9, %c0_10] : memref<1x32xf32, #tpu.memory_space<vmem>>, vector<1x32xf32>
    %11 = vector.broadcast %10 : vector<1x32xf32> to vector<8x32xf32>
    %12 = arith.addf %9, %11 : vector<8x32xf32>
    %c0_11 = arith.constant 0 : index
    %c0_12 = arith.constant 0 : index
    %13 = vector.load %arg7[%c0_11, %c0_12] : memref<32x32xbf16, #tpu.memory_space<vmem>>, vector<32x32xbf16>
    %cst_13 = arith.constant dense<0.000000e+00> : vector<8x32xf32>
    %14 = tpu.matmul %2, %13, %cst_13 {dimension_numbers = #tpu.dot_dimension_numbers<[1], [0], [0], [1], [0, 0, 1, 1], [], []>} : vector<8x32xbf16>, vector<32x32xbf16>, vector<8x32xf32> -> vector<8x32xf32>
    %c0_14 = arith.constant 0 : index
    %c0_15 = arith.constant 0 : index
    %15 = vector.load %arg8[%c0_14, %c0_15] : memref<1x32xf32, #tpu.memory_space<vmem>>, vector<1x32xf32>
    %16 = vector.broadcast %15 : vector<1x32xf32> to vector<8x32xf32>
    %17 = arith.addf %14, %16 : vector<8x32xf32>
    %c0_16 = arith.constant 0 : index
    %c0_17 = arith.constant 0 : index
    %c0_18 = arith.constant 0 : index
    %18 = vector.load %arg2[%c0_16, %c0_17, %c0_18] : memref<1x1x8xf32, #tpu.memory_space<vmem>>, vector<1x1x8xf32>
    %cst_19 = arith.constant 0.000000e+00 : f32
    %19 = vector.broadcast %cst_19 : f32 to vector<1x1x8xf32>
    %20 = arith.cmpf oeq, %18, %19 : vector<1x1x8xf32>
    %cst_20 = arith.constant 0xFF800000 : f32
    %21 = vector.broadcast %cst_20 : f32 to vector<1x1x8xf32>
    %22 = arith.select %20, %21, %18 : vector<1x1x8xi1>, vector<1x1x8xf32>
    %23 = tpu.iota {dimensions = array<i32: 0>} : vector<8x8xi32>
    %24 = tpu.iota {dimensions = array<i32: 1>} : vector<8x8xi32>
    %25 = arith.cmpi sge, %23, %24 : vector<8x8xi32>
    %26 = vector.shape_cast %7 : vector<8x32xf32> to vector<1x8x32xf32>
    %27 = vector.shape_cast %12 : vector<8x32xf32> to vector<1x8x32xf32>
    %28 = vector.shape_cast %17 : vector<8x32xf32> to vector<1x8x32xf32>
    %29 = vector.extract_strided_slice %26 {offsets = [0, 0, 0], sizes = [1, 8, 8], strides = [1, 1, 1]} : vector<1x8x32xf32> to vector<1x8x8xf32>
    %cst_21 = arith.constant 0.353553385 : f32
    %30 = vector.broadcast %cst_21 : f32 to vector<1x8x8xf32>
    %31 = arith.mulf %29, %30 : vector<1x8x8xf32>
    %32 = arith.truncf %31 : vector<1x8x8xf32> to vector<1x8x8xbf16>
    %33 = vector.extract_strided_slice %27 {offsets = [0, 0, 0], sizes = [1, 8, 8], strides = [1, 1, 1]} : vector<1x8x32xf32> to vector<1x8x8xf32>
    %34 = arith.truncf %33 : vector<1x8x8xf32> to vector<1x8x8xbf16>
    %35 = vector.extract_strided_slice %28 {offsets = [0, 0, 0], sizes = [1, 8, 8], strides = [1, 1, 1]} : vector<1x8x32xf32> to vector<1x8x8xf32>
    %36 = arith.truncf %35 : vector<1x8x8xf32> to vector<1x8x8xbf16>
    "tpu.trace_start"() <{level = 10 : i32, message = "bik,bjk->bij"}> : () -> ()
    %cst_22 = arith.constant dense<0.000000e+00> : vector<1x8x8xf32>
    %37 = tpu.matmul %32, %34, %cst_22 {dimension_numbers = #tpu.dot_dimension_numbers<[2], [2], [1], [1], [0, 0, 0, 1, 1, 1], [0], [0]>} : vector<1x8x8xbf16>, vector<1x8x8xbf16>, vector<1x8x8xf32> -> vector<1x8x8xf32>
    "tpu.trace_stop"() : () -> ()
    %c0_23 = arith.constant 0 : index
    %c0_24 = arith.constant 0 : index
    %c0_25 = arith.constant 0 : index
    %c0_26 = arith.constant 0 : index
    %38 = vector.load %arg20[%c0_23, %c0_24, %c0_25, %c0_26] : memref<4x1x8x8xf32, #tpu.memory_space<vmem>>, vector<1x1x8x8xf32>
    %39 = vector.shape_cast %38 : vector<1x1x8x8xf32> to vector<1x8x8xf32>
    %40 = vector.shape_cast %37 : vector<1x8x8xf32> to vector<1x1x8x8xf32>
    tpu.vector_store %arg20[%c0_23, %c0_24, %c0_25, %c0_26], %40 {strides = array<i32>} : memref<4x1x8x8xf32, #tpu.memory_space<vmem>>, vector<1x1x8x8xf32>,
    %41 = vector.shape_cast %25 : vector<8x8xi1> to vector<1x8x8xi1>
    %cst_27 = arith.constant -4.2949673E+9 : f32
    %42 = vector.broadcast %cst_27 : f32 to vector<1x8x8xf32>
    %43 = arith.select %41, %37, %42 : vector<1x8x8xi1>, vector<1x8x8xf32>
    %44 = vector.broadcast %22 : vector<1x1x8xf32> to vector<1x8x8xf32>
    %45 = arith.addf %43, %44 : vector<1x8x8xf32>
    %cst_28 = arith.constant dense<0xFF800000> : vector<1x8xf32>
    %46 = vector.multi_reduction <maximumf>, %45, %cst_28 [2] : vector<1x8x8xf32> to vector<1x8xf32>
    %47 = vector.shape_cast %46 : vector<1x8xf32> to vector<1x8x1xf32>
    %48 = vector.broadcast %47 : vector<1x8x1xf32> to vector<1x8x8xf32>
    %49 = arith.subf %45, %48 : vector<1x8x8xf32>
    %50 = math.exp %49 : vector<1x8x8xf32>
    %cst_29 = arith.constant dense<0.000000e+00> : vector<1x8xf32>
    %51 = vector.multi_reduction <add>, %50, %cst_29 [2] : vector<1x8x8xf32> to vector<1x8xf32>
    %52 = vector.shape_cast %51 : vector<1x8xf32> to vector<1x8x1xf32>
    %53 = tpu.reciprocal %52 {approx = true} : vector<1x8x1xf32> -> vector<1x8x1xf32>
    %54 = vector.broadcast %53 : vector<1x8x1xf32> to vector<1x8x8xf32>
    %55 = arith.mulf %50, %54 : vector<1x8x8xf32>
    %56 = arith.truncf %55 : vector<1x8x8xf32> to vector<1x8x8xbf16>
    "tpu.trace_start"() <{level = 10 : i32, message = "bij,bjd->bid"}> : () -> ()
    %cst_30 = arith.constant dense<0.000000e+00> : vector<1x8x8xf32>
    %57 = tpu.matmul %56, %36, %cst_30 {dimension_numbers = #tpu.dot_dimension_numbers<[2], [1], [1], [2], [0, 0, 0, 1, 1, 2], [0], [0]>} : vector<1x8x8xbf16>, vector<1x8x8xbf16>, vector<1x8x8xf32> -> vector<1x8x8xf32>
    "tpu.trace_stop"() : () -> ()
    %58 = vector.extract_strided_slice %26 {offsets = [0, 0, 8], sizes = [1, 8, 8], strides = [1, 1, 1]} : vector<1x8x32xf32> to vector<1x8x8xf32>
    %cst_31 = arith.constant 0.353553385 : f32
    %59 = vector.broadcast %cst_31 : f32 to vector<1x8x8xf32>
    %60 = arith.mulf %58, %59 : vector<1x8x8xf32>
    %61 = arith.truncf %60 : vector<1x8x8xf32> to vector<1x8x8xbf16>
    %62 = vector.extract_strided_slice %27 {offsets = [0, 0, 8], sizes = [1, 8, 8], strides = [1, 1, 1]} : vector<1x8x32xf32> to vector<1x8x8xf32>
    %63 = arith.truncf %62 : vector<1x8x8xf32> to vector<1x8x8xbf16>
    %64 = vector.extract_strided_slice %28 {offsets = [0, 0, 8], sizes = [1, 8, 8], strides = [1, 1, 1]} : vector<1x8x32xf32> to vector<1x8x8xf32>
    %65 = arith.truncf %64 : vector<1x8x8xf32> to vector<1x8x8xbf16>
    "tpu.trace_start"() <{level = 10 : i32, message = "bik,bjk->bij"}> : () -> ()
    %cst_32 = arith.constant dense<0.000000e+00> : vector<1x8x8xf32>
    %66 = tpu.matmul %61, %63, %cst_32 {dimension_numbers = #tpu.dot_dimension_numbers<[2], [2], [1], [1], [0, 0, 0, 1, 1, 1], [0], [0]>} : vector<1x8x8xbf16>, vector<1x8x8xbf16>, vector<1x8x8xf32> -> vector<1x8x8xf32>
    "tpu.trace_stop"() : () -> ()
    %c1 = arith.constant 1 : index
    %c0_33 = arith.constant 0 : index
    %c0_34 = arith.constant 0 : index
    %c0_35 = arith.constant 0 : index
    %67 = vector.load %arg20[%c1, %c0_33, %c0_34, %c0_35] : memref<4x1x8x8xf32, #tpu.memory_space<vmem>>, vector<1x1x8x8xf32>
    %68 = vector.shape_cast %67 : vector<1x1x8x8xf32> to vector<1x8x8xf32>
    %69 = vector.shape_cast %66 : vector<1x8x8xf32> to vector<1x1x8x8xf32>
    tpu.vector_store %arg20[%c1, %c0_33, %c0_34, %c0_35], %69 {strides = array<i32>} : memref<4x1x8x8xf32, #tpu.memory_space<vmem>>, vector<1x1x8x8xf32>,
    %70 = vector.shape_cast %25 : vector<8x8xi1> to vector<1x8x8xi1>
    %cst_36 = arith.constant -4.2949673E+9 : f32
    %71 = vector.broadcast %cst_36 : f32 to vector<1x8x8xf32>
    %72 = arith.select %70, %66, %71 : vector<1x8x8xi1>, vector<1x8x8xf32>
    %73 = vector.broadcast %22 : vector<1x1x8xf32> to vector<1x8x8xf32>
    %74 = arith.addf %72, %73 : vector<1x8x8xf32>
    %cst_37 = arith.constant dense<0xFF800000> : vector<1x8xf32>
    %75 = vector.multi_reduction <maximumf>, %74, %cst_37 [2] : vector<1x8x8xf32> to vector<1x8xf32>
    %76 = vector.shape_cast %75 : vector<1x8xf32> to vector<1x8x1xf32>
    %77 = vector.broadcast %76 : vector<1x8x1xf32> to vector<1x8x8xf32>
    %78 = arith.subf %74, %77 : vector<1x8x8xf32>
    %79 = math.exp %78 : vector<1x8x8xf32>
    %cst_38 = arith.constant dense<0.000000e+00> : vector<1x8xf32>
    %80 = vector.multi_reduction <add>, %79, %cst_38 [2] : vector<1x8x8xf32> to vector<1x8xf32>
    %81 = vector.shape_cast %80 : vector<1x8xf32> to vector<1x8x1xf32>
    %82 = tpu.reciprocal %81 {approx = true} : vector<1x8x1xf32> -> vector<1x8x1xf32>
    %83 = vector.broadcast %82 : vector<1x8x1xf32> to vector<1x8x8xf32>
    %84 = arith.mulf %79, %83 : vector<1x8x8xf32>
    %85 = arith.truncf %84 : vector<1x8x8xf32> to vector<1x8x8xbf16>
    "tpu.trace_start"() <{level = 10 : i32, message = "bij,bjd->bid"}> : () -> ()
    %cst_39 = arith.constant dense<0.000000e+00> : vector<1x8x8xf32>
    %86 = tpu.matmul %85, %65, %cst_39 {dimension_numbers = #tpu.dot_dimension_numbers<[2], [1], [1], [2], [0, 0, 0, 1, 1, 2], [0], [0]>} : vector<1x8x8xbf16>, vector<1x8x8xbf16>, vector<1x8x8xf32> -> vector<1x8x8xf32>
    "tpu.trace_stop"() : () -> ()
    %87 = vector.extract_strided_slice %26 {offsets = [0, 0, 16], sizes = [1, 8, 8], strides = [1, 1, 1]} : vector<1x8x32xf32> to vector<1x8x8xf32>
    %cst_40 = arith.constant 0.353553385 : f32
    %88 = vector.broadcast %cst_40 : f32 to vector<1x8x8xf32>
    %89 = arith.mulf %87, %88 : vector<1x8x8xf32>
    %90 = arith.truncf %89 : vector<1x8x8xf32> to vector<1x8x8xbf16>
    %91 = vector.extract_strided_slice %27 {offsets = [0, 0, 16], sizes = [1, 8, 8], strides = [1, 1, 1]} : vector<1x8x32xf32> to vector<1x8x8xf32>
    %92 = arith.truncf %91 : vector<1x8x8xf32> to vector<1x8x8xbf16>
    %93 = vector.extract_strided_slice %28 {offsets = [0, 0, 16], sizes = [1, 8, 8], strides = [1, 1, 1]} : vector<1x8x32xf32> to vector<1x8x8xf32>
    %94 = arith.truncf %93 : vector<1x8x8xf32> to vector<1x8x8xbf16>
    "tpu.trace_start"() <{level = 10 : i32, message = "bik,bjk->bij"}> : () -> ()
    %cst_41 = arith.constant dense<0.000000e+00> : vector<1x8x8xf32>
    %95 = tpu.matmul %90, %92, %cst_41 {dimension_numbers = #tpu.dot_dimension_numbers<[2], [2], [1], [1], [0, 0, 0, 1, 1, 1], [0], [0]>} : vector<1x8x8xbf16>, vector<1x8x8xbf16>, vector<1x8x8xf32> -> vector<1x8x8xf32>
    "tpu.trace_stop"() : () -> ()
    %c2 = arith.constant 2 : index
    %c0_42 = arith.constant 0 : index
    %c0_43 = arith.constant 0 : index
    %c0_44 = arith.constant 0 : index
    %96 = vector.load %arg20[%c2, %c0_42, %c0_43, %c0_44] : memref<4x1x8x8xf32, #tpu.memory_space<vmem>>, vector<1x1x8x8xf32>
    %97 = vector.shape_cast %96 : vector<1x1x8x8xf32> to vector<1x8x8xf32>
    %98 = vector.shape_cast %95 : vector<1x8x8xf32> to vector<1x1x8x8xf32>
    tpu.vector_store %arg20[%c2, %c0_42, %c0_43, %c0_44], %98 {strides = array<i32>} : memref<4x1x8x8xf32, #tpu.memory_space<vmem>>, vector<1x1x8x8xf32>,
    %99 = vector.shape_cast %25 : vector<8x8xi1> to vector<1x8x8xi1>
    %cst_45 = arith.constant -4.2949673E+9 : f32
    %100 = vector.broadcast %cst_45 : f32 to vector<1x8x8xf32>
    %101 = arith.select %99, %95, %100 : vector<1x8x8xi1>, vector<1x8x8xf32>
    %102 = vector.broadcast %22 : vector<1x1x8xf32> to vector<1x8x8xf32>
    %103 = arith.addf %101, %102 : vector<1x8x8xf32>
    %cst_46 = arith.constant dense<0xFF800000> : vector<1x8xf32>
    %104 = vector.multi_reduction <maximumf>, %103, %cst_46 [2] : vector<1x8x8xf32> to vector<1x8xf32>
    %105 = vector.shape_cast %104 : vector<1x8xf32> to vector<1x8x1xf32>
    %106 = vector.broadcast %105 : vector<1x8x1xf32> to vector<1x8x8xf32>
    %107 = arith.subf %103, %106 : vector<1x8x8xf32>
    %108 = math.exp %107 : vector<1x8x8xf32>
    %cst_47 = arith.constant dense<0.000000e+00> : vector<1x8xf32>
    %109 = vector.multi_reduction <add>, %108, %cst_47 [2] : vector<1x8x8xf32> to vector<1x8xf32>
    %110 = vector.shape_cast %109 : vector<1x8xf32> to vector<1x8x1xf32>
    %111 = tpu.reciprocal %110 {approx = true} : vector<1x8x1xf32> -> vector<1x8x1xf32>
    %112 = vector.broadcast %111 : vector<1x8x1xf32> to vector<1x8x8xf32>
    %113 = arith.mulf %108, %112 : vector<1x8x8xf32>
    %114 = arith.truncf %113 : vector<1x8x8xf32> to vector<1x8x8xbf16>
    "tpu.trace_start"() <{level = 10 : i32, message = "bij,bjd->bid"}> : () -> ()
    %cst_48 = arith.constant dense<0.000000e+00> : vector<1x8x8xf32>
    %115 = tpu.matmul %114, %94, %cst_48 {dimension_numbers = #tpu.dot_dimension_numbers<[2], [1], [1], [2], [0, 0, 0, 1, 1, 2], [0], [0]>} : vector<1x8x8xbf16>, vector<1x8x8xbf16>, vector<1x8x8xf32> -> vector<1x8x8xf32>
    "tpu.trace_stop"() : () -> ()
    %116 = vector.extract_strided_slice %26 {offsets = [0, 0, 24], sizes = [1, 8, 8], strides = [1, 1, 1]} : vector<1x8x32xf32> to vector<1x8x8xf32>
    %cst_49 = arith.constant 0.353553385 : f32
    %117 = vector.broadcast %cst_49 : f32 to vector<1x8x8xf32>
    %118 = arith.mulf %116, %117 : vector<1x8x8xf32>
    %119 = arith.truncf %118 : vector<1x8x8xf32> to vector<1x8x8xbf16>
    %120 = vector.extract_strided_slice %27 {offsets = [0, 0, 24], sizes = [1, 8, 8], strides = [1, 1, 1]} : vector<1x8x32xf32> to vector<1x8x8xf32>
    %121 = arith.truncf %120 : vector<1x8x8xf32> to vector<1x8x8xbf16>
    %122 = vector.extract_strided_slice %28 {offsets = [0, 0, 24], sizes = [1, 8, 8], strides = [1, 1, 1]} : vector<1x8x32xf32> to vector<1x8x8xf32>
    %123 = arith.truncf %122 : vector<1x8x8xf32> to vector<1x8x8xbf16>
    "tpu.trace_start"() <{level = 10 : i32, message = "bik,bjk->bij"}> : () -> ()
    %cst_50 = arith.constant dense<0.000000e+00> : vector<1x8x8xf32>
    %124 = tpu.matmul %119, %121, %cst_50 {dimension_numbers = #tpu.dot_dimension_numbers<[2], [2], [1], [1], [0, 0, 0, 1, 1, 1], [0], [0]>} : vector<1x8x8xbf16>, vector<1x8x8xbf16>, vector<1x8x8xf32> -> vector<1x8x8xf32>
    "tpu.trace_stop"() : () -> ()
    %c3 = arith.constant 3 : index
    %c0_51 = arith.constant 0 : index
    %c0_52 = arith.constant 0 : index
    %c0_53 = arith.constant 0 : index
    %125 = vector.load %arg20[%c3, %c0_51, %c0_52, %c0_53] : memref<4x1x8x8xf32, #tpu.memory_space<vmem>>, vector<1x1x8x8xf32>
    %126 = vector.shape_cast %125 : vector<1x1x8x8xf32> to vector<1x8x8xf32>
    %127 = vector.shape_cast %124 : vector<1x8x8xf32> to vector<1x1x8x8xf32>
    tpu.vector_store %arg20[%c3, %c0_51, %c0_52, %c0_53], %127 {strides = array<i32>} : memref<4x1x8x8xf32, #tpu.memory_space<vmem>>, vector<1x1x8x8xf32>,
    %128 = vector.shape_cast %25 : vector<8x8xi1> to vector<1x8x8xi1>
    %cst_54 = arith.constant -4.2949673E+9 : f32
    %129 = vector.broadcast %cst_54 : f32 to vector<1x8x8xf32>
    %130 = arith.select %128, %124, %129 : vector<1x8x8xi1>, vector<1x8x8xf32>
    %131 = vector.broadcast %22 : vector<1x1x8xf32> to vector<1x8x8xf32>
    %132 = arith.addf %130, %131 : vector<1x8x8xf32>
    %cst_55 = arith.constant dense<0xFF800000> : vector<1x8xf32>
    %133 = vector.multi_reduction <maximumf>, %132, %cst_55 [2] : vector<1x8x8xf32> to vector<1x8xf32>
    %134 = vector.shape_cast %133 : vector<1x8xf32> to vector<1x8x1xf32>
    %135 = vector.broadcast %134 : vector<1x8x1xf32> to vector<1x8x8xf32>
    %136 = arith.subf %132, %135 : vector<1x8x8xf32>
    %137 = math.exp %136 : vector<1x8x8xf32>
    %cst_56 = arith.constant dense<0.000000e+00> : vector<1x8xf32>
    %138 = vector.multi_reduction <add>, %137, %cst_56 [2] : vector<1x8x8xf32> to vector<1x8xf32>
    %139 = vector.shape_cast %138 : vector<1x8xf32> to vector<1x8x1xf32>
    %140 = tpu.reciprocal %139 {approx = true} : vector<1x8x1xf32> -> vector<1x8x1xf32>
    %141 = vector.broadcast %140 : vector<1x8x1xf32> to vector<1x8x8xf32>
    %142 = arith.mulf %137, %141 : vector<1x8x8xf32>
    %143 = arith.truncf %142 : vector<1x8x8xf32> to vector<1x8x8xbf16>
    "tpu.trace_start"() <{level = 10 : i32, message = "bij,bjd->bid"}> : () -> ()
    %cst_57 = arith.constant dense<0.000000e+00> : vector<1x8x8xf32>
    %144 = tpu.matmul %143, %123, %cst_57 {dimension_numbers = #tpu.dot_dimension_numbers<[2], [1], [1], [2], [0, 0, 0, 1, 1, 2], [0], [0]>} : vector<1x8x8xbf16>, vector<1x8x8xbf16>, vector<1x8x8xf32> -> vector<1x8x8xf32>
    "tpu.trace_stop"() : () -> ()
    %145 = tpu.concatenate %57, %86, %115, %144 in 2 : vector<1x8x8xf32>, vector<1x8x8xf32>, vector<1x8x8xf32>, vector<1x8x8xf32> -> vector<1x8x32xf32>
    %146 = vector.shape_cast %145 : vector<1x8x32xf32> to vector<8x32xf32>
    %147 = arith.truncf %146 : vector<8x32xf32> to vector<8x32xbf16>
    %c0_58 = arith.constant 0 : index
    %c0_59 = arith.constant 0 : index
    %148 = vector.load %arg9[%c0_58, %c0_59] : memref<32x32xbf16, #tpu.memory_space<vmem>>, vector<32x32xbf16>
    %cst_60 = arith.constant dense<0.000000e+00> : vector<8x32xf32>
    %149 = tpu.matmul %147, %148, %cst_60 {dimension_numbers = #tpu.dot_dimension_numbers<[1], [0], [0], [1], [0, 0, 1, 1], [], []>} : vector<8x32xbf16>, vector<32x32xbf16>, vector<8x32xf32> -> vector<8x32xf32>
    %c0_61 = arith.constant 0 : index
    %c0_62 = arith.constant 0 : index
    %150 = vector.load %arg10[%c0_61, %c0_62] : memref<1x32xf32, #tpu.memory_space<vmem>>, vector<1x32xf32>
    %151 = vector.broadcast %150 : vector<1x32xf32> to vector<8x32xf32>
    %152 = arith.addf %149, %151 : vector<8x32xf32>
    %153 = arith.addf %152, %1 : vector<8x32xf32>
    %c0_63 = arith.constant 0 : index
    %c0_64 = arith.constant 0 : index
    %154 = vector.load %arg11[%c0_63, %c0_64] : memref<1x32xf32, #tpu.memory_space<vmem>>, vector<1x32xf32>
    %c0_65 = arith.constant 0 : index
    %c0_66 = arith.constant 0 : index
    %155 = vector.load %arg12[%c0_65, %c0_66] : memref<1x32xf32, #tpu.memory_space<vmem>>, vector<1x32xf32>
    %cst_67 = arith.constant dense<0.000000e+00> : vector<8xf32>
    %156 = vector.multi_reduction <add>, %153, %cst_67 [1] : vector<8x32xf32> to vector<8xf32>
    %157 = vector.shape_cast %156 : vector<8xf32> to vector<8x1xf32>
    %cst_68 = arith.constant 3.200000e+01 : f32
    %158 = vector.broadcast %cst_68 : f32 to vector<8x1xf32>
    %159 = arith.divf %157, %158 : vector<8x1xf32>
    %160 = vector.broadcast %159 : vector<8x1xf32> to vector<8x32xf32>
    %161 = arith.subf %153, %160 : vector<8x32xf32>
    %162 = arith.mulf %161, %161 : vector<8x32xf32>
    %cst_69 = arith.constant dense<0.000000e+00> : vector<8xf32>
    %163 = vector.multi_reduction <add>, %162, %cst_69 [1] : vector<8x32xf32> to vector<8xf32>
    %164 = vector.shape_cast %163 : vector<8xf32> to vector<8x1xf32>
    %cst_70 = arith.constant 3.200000e+01 : f32
    %165 = vector.broadcast %cst_70 : f32 to vector<8x1xf32>
    %166 = arith.divf %164, %165 : vector<8x1xf32>
    %167 = vector.broadcast %159 : vector<8x1xf32> to vector<8x32xf32>
    %168 = arith.subf %153, %167 : vector<8x32xf32>
    %cst_71 = arith.constant 9.99999974E-6 : f32
    %169 = vector.broadcast %cst_71 : f32 to vector<8x1xf32>
    %170 = arith.addf %166, %169 : vector<8x1xf32>
    %171 = math.rsqrt %170 : vector<8x1xf32>
    %172 = vector.broadcast %171 : vector<8x1xf32> to vector<8x32xf32>
    %173 = arith.mulf %168, %172 : vector<8x32xf32>
    %174 = vector.broadcast %154 : vector<1x32xf32> to vector<8x32xf32>
    %175 = arith.mulf %173, %174 : vector<8x32xf32>
    %176 = vector.broadcast %155 : vector<1x32xf32> to vector<8x32xf32>
    %177 = arith.addf %175, %176 : vector<8x32xf32>
    %178 = arith.truncf %177 : vector<8x32xf32> to vector<8x32xbf16>
    %c0_72 = arith.constant 0 : index
    %c0_73 = arith.constant 0 : index
    %179 = vector.load %arg13[%c0_72, %c0_73] : memref<32x64xbf16, #tpu.memory_space<vmem>>, vector<32x64xbf16>
    %cst_74 = arith.constant dense<0.000000e+00> : vector<8x64xf32>
    %180 = tpu.matmul %178, %179, %cst_74 {dimension_numbers = #tpu.dot_dimension_numbers<[1], [0], [0], [1], [0, 0, 1, 1], [], []>} : vector<8x32xbf16>, vector<32x64xbf16>, vector<8x64xf32> -> vector<8x64xf32>
    %c0_75 = arith.constant 0 : index
    %c0_76 = arith.constant 0 : index
    %181 = vector.load %arg14[%c0_75, %c0_76] : memref<1x64xf32, #tpu.memory_space<vmem>>, vector<1x64xf32>
    %182 = vector.broadcast %181 : vector<1x64xf32> to vector<8x64xf32>
    %183 = arith.addf %180, %182 : vector<8x64xf32>
    %cst_77 = arith.constant 0.000000e+00 : f32
    %184 = vector.broadcast %cst_77 : f32 to vector<8x64xf32>
    %185 = arith.maximumf %183, %184 : vector<8x64xf32>
    %186 = arith.truncf %185 : vector<8x64xf32> to vector<8x64xbf16>
    %c0_78 = arith.constant 0 : index
    %c0_79 = arith.constant 0 : index
    %187 = vector.load %arg15[%c0_78, %c0_79] : memref<64x32xbf16, #tpu.memory_space<vmem>>, vector<64x32xbf16>
    %cst_80 = arith.constant dense<0.000000e+00> : vector<8x32xf32>
    %188 = tpu.matmul %186, %187, %cst_80 {dimension_numbers = #tpu.dot_dimension_numbers<[1], [0], [0], [1], [0, 0, 1, 1], [], []>} : vector<8x64xbf16>, vector<64x32xbf16>, vector<8x32xf32> -> vector<8x32xf32>
    %c0_81 = arith.constant 0 : index
    %c0_82 = arith.constant 0 : index
    %189 = vector.load %arg16[%c0_81, %c0_82] : memref<1x32xf32, #tpu.memory_space<vmem>>, vector<1x32xf32>
    %190 = vector.broadcast %189 : vector<1x32xf32> to vector<8x32xf32>
    %191 = arith.addf %188, %190 : vector<8x32xf32>
    %192 = arith.addf %191, %177 : vector<8x32xf32>
    %c0_83 = arith.constant 0 : index
    %c0_84 = arith.constant 0 : index
    %193 = vector.load %arg17[%c0_83, %c0_84] : memref<1x32xf32, #tpu.memory_space<vmem>>, vector<1x32xf32>
    %c0_85 = arith.constant 0 : index
    %c0_86 = arith.constant 0 : index
    %194 = vector.load %arg18[%c0_85, %c0_86] : memref<1x32xf32, #tpu.memory_space<vmem>>, vector<1x32xf32>
    %cst_87 = arith.constant dense<0.000000e+00> : vector<8xf32>
    %195 = vector.multi_reduction <add>, %192, %cst_87 [1] : vector<8x32xf32> to vector<8xf32>
    %196 = vector.shape_cast %195 : vector<8xf32> to vector<8x1xf32>
    %cst_88 = arith.constant 3.200000e+01 : f32
    %197 = vector.broadcast %cst_88 : f32 to vector<8x1xf32>
    %198 = arith.divf %196, %197 : vector<8x1xf32>
    %199 = vector.broadcast %198 : vector<8x1xf32> to vector<8x32xf32>
    %200 = arith.subf %192, %199 : vector<8x32xf32>
    %201 = arith.mulf %200, %200 : vector<8x32xf32>
    %cst_89 = arith.constant dense<0.000000e+00> : vector<8xf32>
    %202 = vector.multi_reduction <add>, %201, %cst_89 [1] : vector<8x32xf32> to vector<8xf32>
    %203 = vector.shape_cast %202 : vector<8xf32> to vector<8x1xf32>
    %cst_90 = arith.constant 3.200000e+01 : f32
    %204 = vector.broadcast %cst_90 : f32 to vector<8x1xf32>
    %205 = arith.divf %203, %204 : vector<8x1xf32>
    %206 = vector.broadcast %198 : vector<8x1xf32> to vector<8x32xf32>
    %207 = arith.subf %192, %206 : vector<8x32xf32>
    %cst_91 = arith.constant 9.99999974E-6 : f32
    %208 = vector.broadcast %cst_91 : f32 to vector<8x1xf32>
    %209 = arith.addf %205, %208 : vector<8x1xf32>
    %210 = math.rsqrt %209 : vector<8x1xf32>
    %211 = vector.broadcast %210 : vector<8x1xf32> to vector<8x32xf32>
    %212 = arith.mulf %207, %211 : vector<8x32xf32>
    %213 = vector.broadcast %193 : vector<1x32xf32> to vector<8x32xf32>
    %214 = arith.mulf %212, %213 : vector<8x32xf32>
    %215 = vector.broadcast %194 : vector<1x32xf32> to vector<8x32xf32>
    %216 = arith.addf %214, %215 : vector<8x32xf32>
    %217 = vector.shape_cast %216 : vector<8x32xf32> to vector<1x8x32xf32>
    %c0_92 = arith.constant 0 : index
    %c0_93 = arith.constant 0 : index
    %c0_94 = arith.constant 0 : index
    %218 = vector.load %arg19[%c0_92, %c0_93, %c0_94] : memref<1x8x32xf32, #tpu.memory_space<vmem>>, vector<1x8x32xf32>
    tpu.vector_store %arg19[%c0_92, %c0_93, %c0_94], %217 {strides = array<i32>} : memref<1x8x32xf32, #tpu.memory_space<vmem>>, vector<1x8x32xf32>,
    return
  }
  func.func @transform_0(%arg0: i32) -> (i32, i32, i32) {
    %c0_i32 = arith.constant 0 : i32
    %c0_i32_0 = arith.constant 0 : i32
    %c0_i32_1 = arith.constant 0 : i32
    return %arg0, %c0_i32, %c0_i32_0 : i32, i32, i32
  }
  func.func @transform_1(%arg0: i32) -> (i32, i32, i32) {
    %c0_i32 = arith.constant 0 : i32
    %c0_i32_0 = arith.constant 0 : i32
    %c0_i32_1 = arith.constant 0 : i32
    return %arg0, %c0_i32, %c0_i32_0 : i32, i32, i32
  }
  func.func @transform_2(%arg0: i32) -> (i32, i32) {
    %c0_i32 = arith.constant 0 : i32
    %c0_i32_0 = arith.constant 0 : i32
    %c0_i32_1 = arith.constant 0 : i32
    return %c0_i32, %c0_i32_0 : i32, i32
  }
  func.func @transform_3(%arg0: i32) -> (i32, i32) {
    %c0_i32 = arith.constant 0 : i32
    %c0_i32_0 = arith.constant 0 : i32
    %c0_i32_1 = arith.constant 0 : i32
    return %c0_i32, %c0_i32_0 : i32, i32
  }
  func.func @transform_4(%arg0: i32) -> (i32, i32) {
    %c0_i32 = arith.constant 0 : i32
    %c0_i32_0 = arith.constant 0 : i32
    %c0_i32_1 = arith.constant 0 : i32
    return %c0_i32, %c0_i32_0 : i32, i32
  }
  func.func @transform_5(%arg0: i32) -> (i32, i32) {
    %c0_i32 = arith.constant 0 : i32
    %c0_i32_0 = arith.constant 0 : i32
    %c0_i32_1 = arith.constant 0 : i32
    return %c0_i32, %c0_i32_0 : i32, i32
  }
  func.func @transform_6(%arg0: i32) -> (i32, i32) {
    %c0_i32 = arith.constant 0 : i32
    %c0_i32_0 = arith.constant 0 : i32
    %c0_i32_1 = arith.constant 0 : i32
    return %c0_i32, %c0_i32_0 : i32, i32
  }
  func.func @transform_7(%arg0: i32) -> (i32, i32) {
    %c0_i32 = arith.constant 0 : i32
    %c0_i32_0 = arith.constant 0 : i32
    %c0_i32_1 = arith.constant 0 : i32
    return %c0_i32, %c0_i32_0 : i32, i32
  }
  func.func @transform_8(%arg0: i32) -> (i32, i32) {
    %c0_i32 = arith.constant 0 : i32
    %c0_i32_0 = arith.constant 0 : i32
    %c0_i32_1 = arith.constant 0 : i32
    return %c0_i32, %c0_i32_0 : i32, i32
  }
  func.func @transform_9(%arg0: i32) -> (i32, i32) {
    %c0_i32 = arith.constant 0 : i32
    %c0_i32_0 = arith.constant 0 : i32
    %c0_i32_1 = arith.constant 0 : i32
    return %c0_i32, %c0_i32_0 : i32, i32
  }
  func.func @transform_10(%arg0: i32) -> (i32, i32) {
    %c0_i32 = arith.constant 0 : i32
    %c0_i32_0 = arith.constant 0 : i32
    %c0_i32_1 = arith.constant 0 : i32
    return %c0_i32, %c0_i32_0 : i32, i32
  }
  func.func @transform_11(%arg0: i32) -> (i32, i32) {
    %c0_i32 = arith.constant 0 : i32
    %c0_i32_0 = arith.constant 0 : i32
    %c0_i32_1 = arith.constant 0 : i32
    return %c0_i32, %c0_i32_0 : i32, i32
  }
  func.func @transform_12(%arg0: i32) -> (i32, i32) {
    %c0_i32 = arith.constant 0 : i32
    %c0_i32_0 = arith.constant 0 : i32
    %c0_i32_1 = arith.constant 0 : i32
    return %c0_i32, %c0_i32_0 : i32, i32
  }
  func.func @transform_13(%arg0: i32) -> (i32, i32) {
    %c0_i32 = arith.constant 0 : i32
    %c0_i32_0 = arith.constant 0 : i32
    %c0_i32_1 = arith.constant 0 : i32
    return %c0_i32, %c0_i32_0 : i32, i32
  }
  func.func @transform_14(%arg0: i32) -> (i32, i32) {
    %c0_i32 = arith.constant 0 : i32
    %c0_i32_0 = arith.constant 0 : i32
    %c0_i32_1 = arith.constant 0 : i32
    return %c0_i32, %c0_i32_0 : i32, i32
  }
  func.func @transform_15(%arg0: i32) -> (i32, i32) {
    %c0_i32 = arith.constant 0 : i32
    %c0_i32_0 = arith.constant 0 : i32
    %c0_i32_1 = arith.constant 0 : i32
    return %c0_i32, %c0_i32_0 : i32, i32
  }
  func.func @transform_16(%arg0: i32) -> (i32, i32) {
    %c0_i32 = arith.constant 0 : i32
    %c0_i32_0 = arith.constant 0 : i32
    %c0_i32_1 = arith.constant 0 : i32
    return %c0_i32, %c0_i32_0 : i32, i32
  }
  func.func @transform_17(%arg0: i32) -> (i32, i32) {
    %c0_i32 = arith.constant 0 : i32
    %c0_i32_0 = arith.constant 0 : i32
    %c0_i32_1 = arith.constant 0 : i32
    return %c0_i32, %c0_i32_0 : i32, i32
  }
  func.func @transform_18(%arg0: i32) -> (i32, i32, i32) {
    %c0_i32 = arith.constant 0 : i32
    %c0_i32_0 = arith.constant 0 : i32
    %c0_i32_1 = arith.constant 0 : i32
    return %arg0, %c0_i32, %c0_i32_0 : i32, i32, i32
  }
  func.func @transform_19(%arg0: i32) -> (i32, i32, i32, i32) {
    %c0_i32 = arith.constant 0 : i32
    %c0_i32_0 = arith.constant 0 : i32
    %c0_i32_1 = arith.constant 0 : i32
    %c0_i32_2 = arith.constant 0 : i32
    return %c0_i32, %arg0, %c0_i32_0, %c0_i32_1 : i32, i32, i32, i32
  }
}

</mosaic_0001>

<llo_original>
// kernel: tpu_custom_call.1
$region0: #{tpu_custom_call.1}
  #allocation0 [shape = 'u32[]', space=smem, size = 0x4, offset = 0x4, fixed_abs, tag = 'smem constant byte address 0x4 - core index']
  #allocation1 [shape = 'u32[144,128]{1,0:T(1,128)}', space=vmem, size = 0x12000, scoped, tag = 'internal scratch']
  %s0 = inlined_call_operand.vmem [shape: f32[2,8,32], index: 0, kind: input, shape index: {}]
  %s1 = inlined_call_operand.vmem [shape: f32[2,1,8], index: 1, kind: input, shape index: {}]
  %s2 = inlined_call_operand.vmem [shape: bf16[32,32], index: 2, kind: input, shape index: {}]
  %s3 = inlined_call_operand.hbm [shape: f32[1,32], index: 3, kind: input, shape index: {}]
  %s4 = inlined_call_operand.vmem [shape: bf16[32,32], index: 4, kind: input, shape index: {}]
  %s5 = inlined_call_operand.hbm [shape: f32[1,32], index: 5, kind: input, shape index: {}]
  %s6 = inlined_call_operand.hbm [shape: bf16[32,32], index: 6, kind: input, shape index: {}]
  %s7 = inlined_call_operand.hbm [shape: f32[1,32], index: 7, kind: input, shape index: {}]
  %s8 = inlined_call_operand.hbm [shape: bf16[32,32], index: 8, kind: input, shape index: {}]
  %s9 = inlined_call_operand.hbm [shape: f32[1,32], index: 9, kind: input, shape index: {}]
  %s10 = inlined_call_operand.vmem [shape: f32[1,32], index: 10, kind: input, shape index: {}]
  %s11 = inlined_call_operand.vmem [shape: f32[1,32], index: 11, kind: input, shape index: {}]
  %s12 = inlined_call_operand.vmem [shape: bf16[32,64], index: 12, kind: input, shape index: {}]
  %s13 = inlined_call_operand.vmem [shape: f32[1,64], index: 13, kind: input, shape index: {}]
  %s14 = inlined_call_operand.vmem [shape: bf16[64,32], index: 14, kind: input, shape index: {}]
  %s15 = inlined_call_operand.vmem [shape: f32[1,32], index: 15, kind: input, shape index: {}]
  %s16 = inlined_call_operand.vmem [shape: f32[1,32], index: 16, kind: input, shape index: {}]
  %s17 = inlined_call_operand.vmem [shape: f32[1,32], index: 17, kind: input, shape index: {}]
  %s18 = inlined_call_operand.hbm [shape: f32[2,8,32], index: 18, kind: output, shape index: {0}]
  %s19 = inlined_call_operand.hbm [shape: f32[4,2,8,8], index: 19, kind: output, shape index: {1}]
  %20 = xla_tuple %s18, %s19
  %s21 = sld [smem:[#allocation0]]
  $region137: #{tpu_custom_call.1} parent=0
    _
  %s23 = ssub.s32 1, %s21
  %s24 = scalar_select 0, %s23, %s21
  $region1: #{tpu_custom_call.1} parent=0
    #allocation2 [shape = 'u8[512]{0}', space=vmem, size = 0x400, scoped, tag = 'input window, operand 3, single buffered']
    #allocation3 [shape = 's32[2]{0}', space=sflag, size = 0x8, scoped, tag = 'scoped memory for tpu_custom_call.1']
    #allocation4 [shape = 's32[2]{0}', space=sflag, size = 0x8, scoped, tag = 'scoped memory for tpu_custom_call.1']
    #allocation5 [shape = 'u8[512]{0}', space=vmem, size = 0x400, scoped, tag = 'input window, operand 5, single buffered']
    #allocation6 [shape = 's32[1]{0}', space=sflag, size = 0x4, scoped, tag = 'scoped memory for tpu_custom_call.1']
    #allocation7 [shape = 'u8[8192]{0}', space=vmem, size = 0x2000, scoped, tag = 'input window, operand 6, single buffered']
    #allocation8 [shape = 'u8[512]{0}', space=vmem, size = 0x400, scoped, tag = 'input window, operand 7, single buffered']
    #allocation9 [shape = 's32[1]{0}', space=sflag, size = 0x4, scoped, tag = 'scoped memory for tpu_custom_call.1']
    #allocation10 [shape = 'u8[8192]{0}', space=vmem, size = 0x2000, scoped, tag = 'input window, operand 8, single buffered']
    #allocation11 [shape = 'u8[512]{0}', space=vmem, size = 0x400, scoped, tag = 'input window, operand 9, single buffered']
    #allocation12 [shape = 's32[1]{0}', space=sflag, size = 0x4, scoped, tag = 'scoped memory for tpu_custom_call.1']
    #allocation13 [shape = 'u8[8192]{0}', space=vmem, size = 0x2000, scoped, tag = 'output window, operand 0']
    #allocation14 [shape = 'u8[32768]{0}', space=vmem, size = 0x8000, scoped, tag = 'output window, operand 1']
    #allocation15 [shape = 's32[2]{0}', space=sflag, size = 0x8, scoped, tag = 'scoped memory for tpu_custom_call.1']
    %25 = vsyncpa [#allocation3], 0
    %26 = vsyncpa [#allocation6], 0
    %27 = vsyncpa [#allocation9], 0
    %28 = vsyncpa [#allocation12], 0
    %29 = vsyncpa [#allocation4], 0
    %s30 = scalar_lea.sflag [#allocation4], 1
    %31 = vsyncpa %s30, 0
    %32 = vsyncpa [#allocation15], 0
    %s33 = scalar_lea.sflag [#allocation15], 1
    %34 = vsyncpa %s33, 0
    loop: start=0, step=1, limit=4
    $region2: #{tpu_custom_call.1} parent=1 // loop_pre_header
      _
    $region3: #{tpu_custom_call.1} parent=1 // loop_header
      %s36 = sphi 0, %s40
      %p37 = scmp.ge.s32.totalorder %s36, 4
      %s46 = sphi 0, %s48
      %s49 = sphi 0, %s46
      %s50 = sphi 0, %s49
      %s66 = sphi 0, %s50
      %s72 = sphi 0, %s74
      %s75 = sphi 0, %s72
      %s76 = sphi 0, %s75
      %s92 = sphi 0, %s76
      %s96 = sphi 0, %s96
      %s98 = sphi 0, %s96
      %s99 = sphi 0, %s98
      %s113 = sphi 0, %s99
      %s117 = sphi 0, %s117
      %s119 = sphi 0, %s117
      %s120 = sphi 0, %s119
      %s134 = sphi 0, %s120
      %s138 = sphi 0, %s138
      %s140 = sphi 0, %s138
      %s141 = sphi 0, %s140
      %s155 = sphi 0, %s141
      %s159 = sphi 0, %s159
      %s161 = sphi 0, %s159
      %s162 = sphi 0, %s161
      %s176 = sphi 0, %s162
      %s180 = sphi 0, %s180
      %s182 = sphi 0, %s180
      %s183 = sphi 0, %s182
      %s197 = sphi 0, %s183
      %s201 = sphi 0, %s201
      %s203 = sphi 0, %s201
      %s204 = sphi 0, %s203
      %s218 = sphi 0, %s204
      %s222 = sphi 0, %s222
      %s224 = sphi 0, %s222
      %s225 = sphi 0, %s224
      %s239 = sphi 0, %s225
      %s243 = sphi 0, %s243
      %s245 = sphi 0, %s243
      %s246 = sphi 0, %s245
      %s260 = sphi 0, %s246
      %s264 = sphi 0, %s264
      %s266 = sphi 0, %s264
      %s267 = sphi 0, %s266
      %s281 = sphi 0, %s267
      %s285 = sphi 0, %s285
      %s287 = sphi 0, %s285
      %s288 = sphi 0, %s287
      %s302 = sphi 0, %s288
      %s306 = sphi 0, %s306
      %s308 = sphi 0, %s306
      %s309 = sphi 0, %s308
      %s323 = sphi 0, %s309
      %s327 = sphi 0, %s327
      %s329 = sphi 0, %s327
      %s330 = sphi 0, %s329
      %s344 = sphi 0, %s330
      %s348 = sphi 0, %s348
      %s350 = sphi 0, %s348
      %s351 = sphi 0, %s350
      %s365 = sphi 0, %s351
      %s369 = sphi 0, %s369
      %s371 = sphi 0, %s369
      %s372 = sphi 0, %s371
      %s386 = sphi 0, %s372
      %s390 = sphi 0, %s390
      %s392 = sphi 0, %s390
      %s393 = sphi 0, %s392
      %s407 = sphi 0, %s393
      %s411 = sphi 0, %s411
      %s413 = sphi 0, %s411
      %s414 = sphi 0, %s413
      %s428 = sphi 0, %s414
      %s434 = sphi 0, %s436
      %s437 = sphi 0, %s434
      %s438 = sphi 0, %s437
      %s454 = sphi 0, %s438
      %s460 = sphi 0, %s462
      %s463 = sphi 0, %s460
      %s464 = sphi 0, %s463
      %s480 = sphi 0, %s464
    $region4: #{tpu_custom_call.1} parent=1 // loop_header_branch
      %39 = sbr.rel (%p37) target = $region8
    $region5: #{tpu_custom_call.1} parent=1 // loop_body
      %s41 = ssub.s32 %s36, 1
      %s42 = ssub.s32 %s36, 2
      %s43 = sadd.s32 %s36, 1
      %s44 = ssub.s32 %s36, %s43
      %p45 = scmp.eq.s32.totalorder %s44, 0
      %s47 = sadd.s32 %s46, 1
      %s48 = scalar_select %p45, %s46, %s47
      %p51 = pneg %p45
      %p52 = scmp.eq.s32.totalorder %s36, 1
      %p53 = por %p51, %p52
      %p54 = scmp.ne.s32.totalorder %s46, %s49
      %p55 = scmp.eq.s32.totalorder %s36, 0
      %p56 = por %p54, %p55
      %p57 = scmp.ne.s32.totalorder %s46, %s49
      %p58 = scmp.eq.s32.totalorder %s41, 1
      %p59 = por %p57, %p58
      %p60 = scmp.ne.s32.totalorder %s49, %s50
      %p61 = scmp.eq.s32.totalorder %s41, 0
      %p62 = por %p60, %p61
      %p63 = scmp.ne.s32.totalorder %s49, %s50
      %p64 = scmp.eq.s32.totalorder %s42, 1
      %p65 = por %p63, %p64
      %p67 = scmp.ne.s32.totalorder %s50, %s66
      %p68 = scmp.eq.s32.totalorder %s42, 0
      %p69 = por %p67, %p68
      %s70 = ssub.s32 %s36, %s43
      %p71 = scmp.eq.s32.totalorder %s70, 0
      %s73 = sadd.s32 %s72, 1
      %s74 = scalar_select %p71, %s72, %s73
      %p77 = pneg %p71
      %p78 = scmp.eq.s32.totalorder %s36, 1
      %p79 = por %p77, %p78
      %p80 = scmp.ne.s32.totalorder %s72, %s75
      %p81 = scmp.eq.s32.totalorder %s36, 0
      %p82 = por %p80, %p81
      %p83 = scmp.ne.s32.totalorder %s72, %s75
      %p84 = scmp.eq.s32.totalorder %s41, 1
      %p85 = por %p83, %p84
      %p86 = scmp.ne.s32.totalorder %s75, %s76
      %p87 = scmp.eq.s32.totalorder %s41, 0
      %p88 = por %p86, %p87
      %p89 = scmp.ne.s32.totalorder %s75, %s76
      %p90 = scmp.eq.s32.totalorder %s42, 1
      %p91 = por %p89, %p90
      %p93 = scmp.ne.s32.totalorder %s76, %s92
      %p94 = scmp.eq.s32.totalorder %s42, 0
      %p95 = por %p93, %p94
      %s97 = sadd.s32 %s96, 1
      %p100 = scmp.eq.s32.totalorder %s36, 1
      %p101 = scmp.ne.s32.totalorder %s96, %s98
      %p102 = scmp.eq.s32.totalorder %s36, 0
      %p103 = por %p101, %p102
      %p104 = scmp.ne.s32.totalorder %s96, %s98
      %p105 = scmp.eq.s32.totalorder %s41, 1
      %p106 = por %p104, %p105
      %p107 = scmp.ne.s32.totalorder %s98, %s99
      %p108 = scmp.eq.s32.totalorder %s41, 0
      %p109 = por %p107, %p108
      %p110 = scmp.ne.s32.totalorder %s98, %s99
      %p111 = scmp.eq.s32.totalorder %s42, 1
      %p112 = por %p110, %p111
      %p114 = scmp.ne.s32.totalorder %s99, %s113
      %p115 = scmp.eq.s32.totalorder %s42, 0
      %p116 = por %p114, %p115
      %s118 = sadd.s32 %s117, 1
      %p121 = scmp.eq.s32.totalorder %s36, 1
      %p122 = scmp.ne.s32.totalorder %s117, %s119
      %p123 = scmp.eq.s32.totalorder %s36, 0
      %p124 = por %p122, %p123
      %p125 = scmp.ne.s32.totalorder %s117, %s119
      %p126 = scmp.eq.s32.totalorder %s41, 1
      %p127 = por %p125, %p126
      %p128 = scmp.ne.s32.totalorder %s119, %s120
      %p129 = scmp.eq.s32.totalorder %s41, 0
      %p130 = por %p128, %p129
      %p131 = scmp.ne.s32.totalorder %s119, %s120
      %p132 = scmp.eq.s32.totalorder %s42, 1
      %p133 = por %p131, %p132
      %p135 = scmp.ne.s32.totalorder %s120, %s134
      %p136 = scmp.eq.s32.totalorder %s42, 0
      %p137 = por %p135, %p136
      %s139 = sadd.s32 %s138, 1
      %p142 = scmp.eq.s32.totalorder %s36, 1
      %p143 = scmp.ne.s32.totalorder %s138, %s140
      %p144 = scmp.eq.s32.totalorder %s36, 0
      %p145 = por %p143, %p144
      %p146 = scmp.ne.s32.totalorder %s138, %s140
      %p147 = scmp.eq.s32.totalorder %s41, 1
      %p148 = por %p146, %p147
      %p149 = scmp.ne.s32.totalorder %s140, %s141
      %p150 = scmp.eq.s32.totalorder %s41, 0
      %p151 = por %p149, %p150
      %p152 = scmp.ne.s32.totalorder %s140, %s141
      %p153 = scmp.eq.s32.totalorder %s42, 1
      %p154 = por %p152, %p153
      %p156 = scmp.ne.s32.totalorder %s141, %s155
      %p157 = scmp.eq.s32.totalorder %s42, 0
      %p158 = por %p156, %p157
      %s160 = sadd.s32 %s159, 1
      %p163 = scmp.eq.s32.totalorder %s36, 1
      %p164 = scmp.ne.s32.totalorder %s159, %s161
      %p165 = scmp.eq.s32.totalorder %s36, 0
      %p166 = por %p164, %p165
      %p167 = scmp.ne.s32.totalorder %s159, %s161
      %p168 = scmp.eq.s32.totalorder %s41, 1
      %p169 = por %p167, %p168
      %p170 = scmp.ne.s32.totalorder %s161, %s162
      %p171 = scmp.eq.s32.totalorder %s41, 0
      %p172 = por %p170, %p171
      %p173 = scmp.ne.s32.totalorder %s161, %s162
      %p174 = scmp.eq.s32.totalorder %s42, 1
      %p175 = por %p173, %p174
      %p177 = scmp.ne.s32.totalorder %s162, %s176
      %p178 = scmp.eq.s32.totalorder %s42, 0
      %p179 = por %p177, %p178
      %s181 = sadd.s32 %s180, 1
      %p184 = scmp.eq.s32.totalorder %s36, 1
      %p185 = scmp.ne.s32.totalorder %s180, %s182
      %p186 = scmp.eq.s32.totalorder %s36, 0
      %p187 = por %p185, %p186
      %p188 = scmp.ne.s32.totalorder %s180, %s182
      %p189 = scmp.eq.s32.totalorder %s41, 1
      %p190 = por %p188, %p189
      %p191 = scmp.ne.s32.totalorder %s182, %s183
      %p192 = scmp.eq.s32.totalorder %s41, 0
      %p193 = por %p191, %p192
      %p194 = scmp.ne.s32.totalorder %s182, %s183
      %p195 = scmp.eq.s32.totalorder %s42, 1
      %p196 = por %p194, %p195
      %p198 = scmp.ne.s32.totalorder %s183, %s197
      %p199 = scmp.eq.s32.totalorder %s42, 0
      %p200 = por %p198, %p199
      %s202 = sadd.s32 %s201, 1
      %p205 = scmp.eq.s32.totalorder %s36, 1
      %p206 = scmp.ne.s32.totalorder %s201, %s203
      %p207 = scmp.eq.s32.totalorder %s36, 0
      %p208 = por %p206, %p207
      %p209 = scmp.ne.s32.totalorder %s201, %s203
      %p210 = scmp.eq.s32.totalorder %s41, 1
      %p211 = por %p209, %p210
      %p212 = scmp.ne.s32.totalorder %s203, %s204
      %p213 = scmp.eq.s32.totalorder %s41, 0
      %p214 = por %p212, %p213
      %p215 = scmp.ne.s32.totalorder %s203, %s204
      %p216 = scmp.eq.s32.totalorder %s42, 1
      %p217 = por %p215, %p216
      %p219 = scmp.ne.s32.totalorder %s204, %s218
      %p220 = scmp.eq.s32.totalorder %s42, 0
      %p221 = por %p219, %p220
      %s223 = sadd.s32 %s222, 1
      %p226 = scmp.eq.s32.totalorder %s36, 1
      %p227 = scmp.ne.s32.totalorder %s222, %s224
      %p228 = scmp.eq.s32.totalorder %s36, 0
      %p229 = por %p227, %p228
      %p230 = scmp.ne.s32.totalorder %s222, %s224
      %p231 = scmp.eq.s32.totalorder %s41, 1
      %p232 = por %p230, %p231
      %p233 = scmp.ne.s32.totalorder %s224, %s225
      %p234 = scmp.eq.s32.totalorder %s41, 0
      %p235 = por %p233, %p234
      %p236 = scmp.ne.s32.totalorder %s224, %s225
      %p237 = scmp.eq.s32.totalorder %s42, 1
      %p238 = por %p236, %p237
      %p240 = scmp.ne.s32.totalorder %s225, %s239
      %p241 = scmp.eq.s32.totalorder %s42, 0
      %p242 = por %p240, %p241
      %s244 = sadd.s32 %s243, 1
      %p247 = scmp.eq.s32.totalorder %s36, 1
      %p248 = scmp.ne.s32.totalorder %s243, %s245
      %p249 = scmp.eq.s32.totalorder %s36, 0
      %p250 = por %p248, %p249
      %p251 = scmp.ne.s32.totalorder %s243, %s245
      %p252 = scmp.eq.s32.totalorder %s41, 1
      %p253 = por %p251, %p252
      %p254 = scmp.ne.s32.totalorder %s245, %s246
      %p255 = scmp.eq.s32.totalorder %s41, 0
      %p256 = por %p254, %p255
      %p257 = scmp.ne.s32.totalorder %s245, %s246
      %p258 = scmp.eq.s32.totalorder %s42, 1
      %p259 = por %p257, %p258
      %p261 = scmp.ne.s32.totalorder %s246, %s260
      %p262 = scmp.eq.s32.totalorder %s42, 0
      %p263 = por %p261, %p262
      %s265 = sadd.s32 %s264, 1
      %p268 = scmp.eq.s32.totalorder %s36, 1
      %p269 = scmp.ne.s32.totalorder %s264, %s266
      %p270 = scmp.eq.s32.totalorder %s36, 0
      %p271 = por %p269, %p270
      %p272 = scmp.ne.s32.totalorder %s264, %s266
      %p273 = scmp.eq.s32.totalorder %s41, 1
      %p274 = por %p272, %p273
      %p275 = scmp.ne.s32.totalorder %s266, %s267
      %p276 = scmp.eq.s32.totalorder %s41, 0
      %p277 = por %p275, %p276
      %p278 = scmp.ne.s32.totalorder %s266, %s267
      %p279 = scmp.eq.s32.totalorder %s42, 1
      %p280 = por %p278, %p279
      %p282 = scmp.ne.s32.totalorder %s267, %s281
      %p283 = scmp.eq.s32.totalorder %s42, 0
      %p284 = por %p282, %p283
      %s286 = sadd.s32 %s285, 1
      %p289 = scmp.eq.s32.totalorder %s36, 1
      %p290 = scmp.ne.s32.totalorder %s285, %s287
      %p291 = scmp.eq.s32.totalorder %s36, 0
      %p292 = por %p290, %p291
      %p293 = scmp.ne.s32.totalorder %s285, %s287
      %p294 = scmp.eq.s32.totalorder %s41, 1
      %p295 = por %p293, %p294
      %p296 = scmp.ne.s32.totalorder %s287, %s288
      %p297 = scmp.eq.s32.totalorder %s41, 0
      %p298 = por %p296, %p297
      %p299 = scmp.ne.s32.totalorder %s287, %s288
      %p300 = scmp.eq.s32.totalorder %s42, 1
      %p301 = por %p299, %p300
      %p303 = scmp.ne.s32.totalorder %s288, %s302
      %p304 = scmp.eq.s32.totalorder %s42, 0
      %p305 = por %p303, %p304
      %s307 = sadd.s32 %s306, 1
      %p310 = scmp.eq.s32.totalorder %s36, 1
      %p311 = scmp.ne.s32.totalorder %s306, %s308
      %p312 = scmp.eq.s32.totalorder %s36, 0
      %p313 = por %p311, %p312
      %p314 = scmp.ne.s32.totalorder %s306, %s308
      %p315 = scmp.eq.s32.totalorder %s41, 1
      %p316 = por %p314, %p315
      %p317 = scmp.ne.s32.totalorder %s308, %s309
      %p318 = scmp.eq.s32.totalorder %s41, 0
      %p319 = por %p317, %p318
      %p320 = scmp.ne.s32.totalorder %s308, %s309
      %p321 = scmp.eq.s32.totalorder %s42, 1
      %p322 = por %p320, %p321
      %p324 = scmp.ne.s32.totalorder %s309, %s323
      %p325 = scmp.eq.s32.totalorder %s42, 0
      %p326 = por %p324, %p325
      %s328 = sadd.s32 %s327, 1
      %p331 = scmp.eq.s32.totalorder %s36, 1
      %p332 = scmp.ne.s32.totalorder %s327, %s329
      %p333 = scmp.eq.s32.totalorder %s36, 0
      %p334 = por %p332, %p333
      %p335 = scmp.ne.s32.totalorder %s327, %s329
      %p336 = scmp.eq.s32.totalorder %s41, 1
      %p337 = por %p335, %p336
      %p338 = scmp.ne.s32.totalorder %s329, %s330
      %p339 = scmp.eq.s32.totalorder %s41, 0
      %p340 = por %p338, %p339
      %p341 = scmp.ne.s32.totalorder %s329, %s330
      %p342 = scmp.eq.s32.totalorder %s42, 1
      %p343 = por %p341, %p342
      %p345 = scmp.ne.s32.totalorder %s330, %s344
      %p346 = scmp.eq.s32.totalorder %s42, 0
      %p347 = por %p345, %p346
      %s349 = sadd.s32 %s348, 1
      %p352 = scmp.eq.s32.totalorder %s36, 1
      %p353 = scmp.ne.s32.totalorder %s348, %s350
      %p354 = scmp.eq.s32.totalorder %s36, 0
      %p355 = por %p353, %p354
      %p356 = scmp.ne.s32.totalorder %s348, %s350
      %p357 = scmp.eq.s32.totalorder %s41, 1
      %p358 = por %p356, %p357
      %p359 = scmp.ne.s32.totalorder %s350, %s351
      %p360 = scmp.eq.s32.totalorder %s41, 0
      %p361 = por %p359, %p360
      %p362 = scmp.ne.s32.totalorder %s350, %s351
      %p363 = scmp.eq.s32.totalorder %s42, 1
      %p364 = por %p362, %p363
      %p366 = scmp.ne.s32.totalorder %s351, %s365
      %p367 = scmp.eq.s32.totalorder %s42, 0
      %p368 = por %p366, %p367
      %s370 = sadd.s32 %s369, 1
      %p373 = scmp.eq.s32.totalorder %s36, 1
      %p374 = scmp.ne.s32.totalorder %s369, %s371
      %p375 = scmp.eq.s32.totalorder %s36, 0
      %p376 = por %p374, %p375
      %p377 = scmp.ne.s32.totalorder %s369, %s371
      %p378 = scmp.eq.s32.totalorder %s41, 1
      %p379 = por %p377, %p378
      %p380 = scmp.ne.s32.totalorder %s371, %s372
      %p381 = scmp.eq.s32.totalorder %s41, 0
      %p382 = por %p380, %p381
      %p383 = scmp.ne.s32.totalorder %s371, %s372
      %p384 = scmp.eq.s32.totalorder %s42, 1
      %p385 = por %p383, %p384
      %p387 = scmp.ne.s32.totalorder %s372, %s386
      %p388 = scmp.eq.s32.totalorder %s42, 0
      %p389 = por %p387, %p388
      %s391 = sadd.s32 %s390, 1
      %p394 = scmp.eq.s32.totalorder %s36, 1
      %p395 = scmp.ne.s32.totalorder %s390, %s392
      %p396 = scmp.eq.s32.totalorder %s36, 0
      %p397 = por %p395, %p396
      %p398 = scmp.ne.s32.totalorder %s390, %s392
      %p399 = scmp.eq.s32.totalorder %s41, 1
      %p400 = por %p398, %p399
      %p401 = scmp.ne.s32.totalorder %s392, %s393
      %p402 = scmp.eq.s32.totalorder %s41, 0
      %p403 = por %p401, %p402
      %p404 = scmp.ne.s32.totalorder %s392, %s393
      %p405 = scmp.eq.s32.totalorder %s42, 1
      %p406 = por %p404, %p405
      %p408 = scmp.ne.s32.totalorder %s393, %s407
      %p409 = scmp.eq.s32.totalorder %s42, 0
      %p410 = por %p408, %p409
      %s412 = sadd.s32 %s411, 1
      %p415 = scmp.eq.s32.totalorder %s36, 1
      %p416 = scmp.ne.s32.totalorder %s411, %s413
      %p417 = scmp.eq.s32.totalorder %s36, 0
      %p418 = por %p416, %p417
      %p419 = scmp.ne.s32.totalorder %s411, %s413
      %p420 = scmp.eq.s32.totalorder %s41, 1
      %p421 = por %p419, %p420
      %p422 = scmp.ne.s32.totalorder %s413, %s414
      %p423 = scmp.eq.s32.totalorder %s41, 0
      %p424 = por %p422, %p423
      %p425 = scmp.ne.s32.totalorder %s413, %s414
      %p426 = scmp.eq.s32.totalorder %s42, 1
      %p427 = por %p425, %p426
      %p429 = scmp.ne.s32.totalorder %s414, %s428
      %p430 = scmp.eq.s32.totalorder %s42, 0
      %p431 = por %p429, %p430
      %s432 = ssub.s32 %s36, %s43
      %p433 = scmp.eq.s32.totalorder %s432, 0
      %s435 = sadd.s32 %s434, 1
      %s436 = scalar_select %p433, %s434, %s435
      %p439 = pneg %p433
      %p440 = scmp.eq.s32.totalorder %s36, 1
      %p441 = por %p439, %p440
      %p442 = scmp.ne.s32.totalorder %s434, %s437
      %p443 = scmp.eq.s32.totalorder %s36, 0
      %p444 = por %p442, %p443
      %p445 = scmp.ne.s32.totalorder %s434, %s437
      %p446 = scmp.eq.s32.totalorder %s41, 1
      %p447 = por %p445, %p446
      %p448 = scmp.ne.s32.totalorder %s437, %s438
      %p449 = scmp.eq.s32.totalorder %s41, 0
      %p450 = por %p448, %p449
      %p451 = scmp.ne.s32.totalorder %s437, %s438
      %p452 = scmp.eq.s32.totalorder %s42, 1
      %p453 = por %p451, %p452
      %p455 = scmp.ne.s32.totalorder %s438, %s454
      %p456 = scmp.eq.s32.totalorder %s42, 0
      %p457 = por %p455, %p456
      %s458 = ssub.s32 %s36, %s43
      %p459 = scmp.eq.s32.totalorder %s458, 0
      %s461 = sadd.s32 %s460, 1
      %s462 = scalar_select %p459, %s460, %s461
      %p465 = pneg %p459
      %p466 = scmp.eq.s32.totalorder %s36, 1
      %p467 = por %p465, %p466
      %p468 = scmp.ne.s32.totalorder %s460, %s463
      %p469 = scmp.eq.s32.totalorder %s36, 0
      %p470 = por %p468, %p469
      %p471 = scmp.ne.s32.totalorder %s460, %s463
      %p472 = scmp.eq.s32.totalorder %s41, 1
      %p473 = por %p471, %p472
      %p474 = scmp.ne.s32.totalorder %s463, %s464
      %p475 = scmp.eq.s32.totalorder %s41, 0
      %p476 = por %p474, %p475
      %p477 = scmp.ne.s32.totalorder %s463, %s464
      %p478 = scmp.eq.s32.totalorder %s42, 1
      %p479 = por %p477, %p478
      %p481 = scmp.ne.s32.totalorder %s464, %s480
      %p482 = scmp.eq.s32.totalorder %s42, 0
      %p483 = por %p481, %p482
      %p484 = scmp.le.s32.totalorder 1, %s36
      %p485 = scmp.lt.s32.totalorder %s36, 3
      %p486 = pnand %p484, %p485
      %p487 = pneg %p486
      // Predicated region
      $region9: #{tpu_custom_call.1} parent=5 // pred_check
        _
      $region10: #{tpu_custom_call.1} parent=5 // pred_check_branch
        %489 = sbr.rel (%p486) target = $region12
      $region11: #{tpu_custom_call.1} parent=5 // pred_region
        %s490 = ssub.s32 %s36, 1
        // Predicated region
        $region13: #{tpu_custom_call.1} parent=11 // pred_check
          %p491 = pneg %p109
        $region14: #{tpu_custom_call.1} parent=11 // pred_check_branch
          %493 = sbr.rel (%p491) target = $region16
        $region15: #{tpu_custom_call.1} parent=11 // pred_region
          _
        $region16: #{tpu_custom_call.1} parent=11 // pred_fallthru
          _
        // Predicated region
        $region17: #{tpu_custom_call.1} parent=11 // pred_check
          %p494 = pneg %p130
        $region18: #{tpu_custom_call.1} parent=11 // pred_check_branch
          %496 = sbr.rel (%p494) target = $region20
        $region19: #{tpu_custom_call.1} parent=11 // pred_region
          %s498 = ssub.s32 16, 16
          %499 = vsyncadd [#allocation3], %s498
          %s501 = sshll.u32 [#allocation2], 4
          %s502 = int_to_ptr.vmem [resolvable:$true] %s501
          %504 = dma.hbm_to_vmem [thread:$0]  %s3, 16, %s502, [#allocation3]
        $region20: #{tpu_custom_call.1} parent=11 // pred_fallthru
          _
        // Predicated region
        $region21: #{tpu_custom_call.1} parent=11 // pred_check
          %p505 = pneg %p151
        $region22: #{tpu_custom_call.1} parent=11 // pred_check_branch
          %507 = sbr.rel (%p505) target = $region24
        $region23: #{tpu_custom_call.1} parent=11 // pred_region
          _
        $region24: #{tpu_custom_call.1} parent=11 // pred_fallthru
          _
        // Predicated region
        $region25: #{tpu_custom_call.1} parent=11 // pred_check
          %p508 = pneg %p172
        $region26: #{tpu_custom_call.1} parent=11 // pred_check_branch
          %510 = sbr.rel (%p508) target = $region28
        $region27: #{tpu_custom_call.1} parent=11 // pred_region
          %s512 = ssub.s32 16, 16
          %513 = vsyncadd [#allocation6], %s512
          %s515 = sshll.u32 [#allocation5], 4
          %s516 = int_to_ptr.vmem [resolvable:$true] %s515
          %518 = dma.hbm_to_vmem [thread:$0]  %s5, 16, %s516, [#allocation6]
        $region28: #{tpu_custom_call.1} parent=11 // pred_fallthru
          _
        // Predicated region
        $region29: #{tpu_custom_call.1} parent=11 // pred_check
          %p519 = pneg %p193
        $region30: #{tpu_custom_call.1} parent=11 // pred_check_branch
          %521 = sbr.rel (%p519) target = $region32
        $region31: #{tpu_custom_call.1} parent=11 // pred_region
          %s523 = ssub.s32 256, 256
          %524 = vsyncadd [#allocation6], %s523
          %s525 = sshll.u32 [#allocation7], 4
          %s526 = int_to_ptr.vmem [resolvable:$true] %s525
          %531 = dma.hbm_to_vmem [thread:$0]  %s6, 256, %s526, [#allocation6], 64, 64, 4
        $region32: #{tpu_custom_call.1} parent=11 // pred_fallthru
          _
        // Predicated region
        $region33: #{tpu_custom_call.1} parent=11 // pred_check
          %p532 = pneg %p214
        $region34: #{tpu_custom_call.1} parent=11 // pred_check_branch
          %534 = sbr.rel (%p532) target = $region36
        $region35: #{tpu_custom_call.1} parent=11 // pred_region
          %s536 = ssub.s32 16, 16
          %537 = vsyncadd [#allocation9], %s536
          %s539 = sshll.u32 [#allocation8], 4
          %s540 = int_to_ptr.vmem [resolvable:$true] %s539
          %542 = dma.hbm_to_vmem [thread:$0]  %s7, 16, %s540, [#allocation9]
        $region36: #{tpu_custom_call.1} parent=11 // pred_fallthru
          _
        // Predicated region
        $region37: #{tpu_custom_call.1} parent=11 // pred_check
          %p543 = pneg %p235
        $region38: #{tpu_custom_call.1} parent=11 // pred_check_branch
          %545 = sbr.rel (%p543) target = $region40
        $region39: #{tpu_custom_call.1} parent=11 // pred_region
          %s547 = ssub.s32 256, 256
          %548 = vsyncadd [#allocation9], %s547
          %s549 = sshll.u32 [#allocation10], 4
          %s550 = int_to_ptr.vmem [resolvable:$true] %s549
          %555 = dma.hbm_to_vmem [thread:$0]  %s8, 256, %s550, [#allocation9], 64, 64, 4
        $region40: #{tpu_custom_call.1} parent=11 // pred_fallthru
          _
        // Predicated region
        $region41: #{tpu_custom_call.1} parent=11 // pred_check
          %p556 = pneg %p256
        $region42: #{tpu_custom_call.1} parent=11 // pred_check_branch
          %558 = sbr.rel (%p556) target = $region44
        $region43: #{tpu_custom_call.1} parent=11 // pred_region
          %s560 = ssub.s32 16, 16
          %561 = vsyncadd [#allocation12], %s560
          %s563 = sshll.u32 [#allocation11], 4
          %s564 = int_to_ptr.vmem [resolvable:$true] %s563
          %566 = dma.hbm_to_vmem [thread:$0]  %s9, 16, %s564, [#allocation12]
        $region44: #{tpu_custom_call.1} parent=11 // pred_fallthru
          _
        // Predicated region
        $region45: #{tpu_custom_call.1} parent=11 // pred_check
          %p567 = pneg %p277
        $region46: #{tpu_custom_call.1} parent=11 // pred_check_branch
          %569 = sbr.rel (%p567) target = $region48
        $region47: #{tpu_custom_call.1} parent=11 // pred_region
          _
        $region48: #{tpu_custom_call.1} parent=11 // pred_fallthru
          _
        // Predicated region
        $region49: #{tpu_custom_call.1} parent=11 // pred_check
          %p570 = pneg %p298
        $region50: #{tpu_custom_call.1} parent=11 // pred_check_branch
          %572 = sbr.rel (%p570) target = $region52
        $region51: #{tpu_custom_call.1} parent=11 // pred_region
          _
        $region52: #{tpu_custom_call.1} parent=11 // pred_fallthru
          _
        // Predicated region
        $region53: #{tpu_custom_call.1} parent=11 // pred_check
          %p573 = pneg %p319
        $region54: #{tpu_custom_call.1} parent=11 // pred_check_branch
          %575 = sbr.rel (%p573) target = $region56
        $region55: #{tpu_custom_call.1} parent=11 // pred_region
          _
        $region56: #{tpu_custom_call.1} parent=11 // pred_fallthru
          _
        // Predicated region
        $region57: #{tpu_custom_call.1} parent=11 // pred_check
          %p576 = pneg %p340
        $region58: #{tpu_custom_call.1} parent=11 // pred_check_branch
          %578 = sbr.rel (%p576) target = $region60
        $region59: #{tpu_custom_call.1} parent=11 // pred_region
          _
        $region60: #{tpu_custom_call.1} parent=11 // pred_fallthru
          _
        // Predicated region
        $region61: #{tpu_custom_call.1} parent=11 // pred_check
          %p579 = pneg %p361
        $region62: #{tpu_custom_call.1} parent=11 // pred_check_branch
          %581 = sbr.rel (%p579) target = $region64
        $region63: #{tpu_custom_call.1} parent=11 // pred_region
          _
        $region64: #{tpu_custom_call.1} parent=11 // pred_fallthru
          _
        // Predicated region
        $region65: #{tpu_custom_call.1} parent=11 // pred_check
          %p582 = pneg %p382
        $region66: #{tpu_custom_call.1} parent=11 // pred_check_branch
          %584 = sbr.rel (%p582) target = $region68
        $region67: #{tpu_custom_call.1} parent=11 // pred_region
          _
        $region68: #{tpu_custom_call.1} parent=11 // pred_fallthru
          _
        // Predicated region
        $region69: #{tpu_custom_call.1} parent=11 // pred_check
          %p585 = pneg %p403
        $region70: #{tpu_custom_call.1} parent=11 // pred_check_branch
          %587 = sbr.rel (%p585) target = $region72
        $region71: #{tpu_custom_call.1} parent=11 // pred_region
          _
        $region72: #{tpu_custom_call.1} parent=11 // pred_fallthru
          _
        // Predicated region
        $region73: #{tpu_custom_call.1} parent=11 // pred_check
          %p588 = pneg %p424
        $region74: #{tpu_custom_call.1} parent=11 // pred_check_branch
          %590 = sbr.rel (%p588) target = $region76
        $region75: #{tpu_custom_call.1} parent=11 // pred_region
          _
        $region76: #{tpu_custom_call.1} parent=11 // pred_fallthru
          _
      $region12: #{tpu_custom_call.1} parent=5 // pred_fallthru
        _
      %p591 = scmp.lt.s32.totalorder %s36, 2
      // Predicated region
      $region77: #{tpu_custom_call.1} parent=5 // pred_check
        %p592 = pneg %p591
      $region78: #{tpu_custom_call.1} parent=5 // pred_check_branch
        %594 = sbr.rel (%p592) target = $region80
      $region79: #{tpu_custom_call.1} parent=5 // pred_region
        // Predicated region
        $region81: #{tpu_custom_call.1} parent=79 // pred_check
          %p595 = pneg %p56
        $region82: #{tpu_custom_call.1} parent=79 // pred_check_branch
          %597 = sbr.rel (%p595) target = $region84
        $region83: #{tpu_custom_call.1} parent=79 // pred_region
          %p598 = scmp.lt.s32.totalorder %s36, 1
          %s599 = scalar_select %p598, %s36, 1
          %s600 = smul.addr %s599, 8
          %s601 = scalar_lea.vmem %s0, %s600
        $region84: #{tpu_custom_call.1} parent=79 // pred_fallthru
          _
        // Predicated region
        $region85: #{tpu_custom_call.1} parent=79 // pred_check
          %p602 = pneg %p82
        $region86: #{tpu_custom_call.1} parent=79 // pred_check_branch
          %604 = sbr.rel (%p602) target = $region88
        $region87: #{tpu_custom_call.1} parent=79 // pred_region
          %p605 = scmp.lt.s32.totalorder %s36, 1
          %s606 = scalar_select %p605, %s36, 1
          %s607 = scalar_lea.vmem %s1, %s606
        $region88: #{tpu_custom_call.1} parent=79 // pred_fallthru
          _
      $region80: #{tpu_custom_call.1} parent=5 // pred_fallthru
        _
      %p608 = scmp.le.s32.totalorder 1, %s36
      %p609 = scmp.lt.s32.totalorder %s36, 3
      %p610 = pnand %p608, %p609
      %p611 = pneg %p610
      // Predicated region
      $region89: #{tpu_custom_call.1} parent=5 // pred_check
        _
      $region90: #{tpu_custom_call.1} parent=5 // pred_check_branch
        %613 = sbr.rel (%p610) target = $region92
      $region91: #{tpu_custom_call.1} parent=5 // pred_region
        %s614 = ssub.s32 %s36, 1
        // Predicated region
        $region93: #{tpu_custom_call.1} parent=91 // pred_check
          %p615 = pneg %p130
        $region94: #{tpu_custom_call.1} parent=91 // pred_check_branch
          %617 = sbr.rel (%p615) target = $region96
        $region95: #{tpu_custom_call.1} parent=91 // pred_region
          %618 = dma.done [#allocation3], 16
        $region96: #{tpu_custom_call.1} parent=91 // pred_fallthru
          _
        // Predicated region
        $region97: #{tpu_custom_call.1} parent=91 // pred_check
          %p619 = pneg %p172
        $region98: #{tpu_custom_call.1} parent=91 // pred_check_branch
          %621 = sbr.rel (%p619) target = $region100
        $region99: #{tpu_custom_call.1} parent=91 // pred_region
          %622 = dma.done [#allocation6], 16
        $region100: #{tpu_custom_call.1} parent=91 // pred_fallthru
          _
        // Predicated region
        $region101: #{tpu_custom_call.1} parent=91 // pred_check
          %p623 = pneg %p193
        $region102: #{tpu_custom_call.1} parent=91 // pred_check_branch
          %625 = sbr.rel (%p623) target = $region104
        $region103: #{tpu_custom_call.1} parent=91 // pred_region
          %626 = dma.done [#allocation6], 256
        $region104: #{tpu_custom_call.1} parent=91 // pred_fallthru
          _
        // Predicated region
        $region105: #{tpu_custom_call.1} parent=91 // pred_check
          %p627 = pneg %p214
        $region106: #{tpu_custom_call.1} parent=91 // pred_check_branch
          %629 = sbr.rel (%p627) target = $region108
        $region107: #{tpu_custom_call.1} parent=91 // pred_region
          %630 = dma.done [#allocation9], 16
        $region108: #{tpu_custom_call.1} parent=91 // pred_fallthru
          _
        // Predicated region
        $region109: #{tpu_custom_call.1} parent=91 // pred_check
          %p631 = pneg %p235
        $region110: #{tpu_custom_call.1} parent=91 // pred_check_branch
          %633 = sbr.rel (%p631) target = $region112
        $region111: #{tpu_custom_call.1} parent=91 // pred_region
          %634 = dma.done [#allocation9], 256
        $region112: #{tpu_custom_call.1} parent=91 // pred_fallthru
          _
        // Predicated region
        $region113: #{tpu_custom_call.1} parent=91 // pred_check
          %p635 = pneg %p256
        $region114: #{tpu_custom_call.1} parent=91 // pred_check_branch
          %637 = sbr.rel (%p635) target = $region116
        $region115: #{tpu_custom_call.1} parent=91 // pred_region
          %638 = dma.done [#allocation12], 16
        $region116: #{tpu_custom_call.1} parent=91 // pred_fallthru
          _
        %p639 = scmp.lt.s32.totalorder %s41, 1
        %s640 = scalar_select %p639, %s41, 1
        %s641 = smul.addr %s640, 8
        %s642 = scalar_lea.vmem %s0, %s641
        %p643 = pneg %p62
        %p644 = pneg %p59
        %p645 = scmp.lt.s32.totalorder %s41, 1
        %s646 = scalar_select %p645, %s41, 1
        %s647 = scalar_lea.vmem %s1, %s646
        %p648 = pneg %p88
        %p649 = pneg %p85
        %p650 = pneg %p109
        %p651 = pneg %p106
        %p652 = pneg %p130
        %p653 = pneg %p127
        %p654 = pneg %p151
        %p655 = pneg %p148
        %p656 = pneg %p172
        %p657 = pneg %p169
        %p658 = pneg %p193
        %p659 = pneg %p190
        %p660 = pneg %p214
        %p661 = pneg %p211
        %p662 = pneg %p235
        %p663 = pneg %p232
        %p664 = pneg %p256
        %p665 = pneg %p253
        %p666 = pneg %p277
        %p667 = pneg %p274
        %p668 = pneg %p298
        %p669 = pneg %p295
        %p670 = pneg %p319
        %p671 = pneg %p316
        %p672 = pneg %p340
        %p673 = pneg %p337
        %p674 = pneg %p361
        %p675 = pneg %p358
        %p676 = pneg %p382
        %p677 = pneg %p379
        %p678 = pneg %p403
        %p679 = pneg %p400
        %p680 = pneg %p424
        %p681 = pneg %p421
        %p682 = pneg %p450
        %p683 = pneg %p447
        %s684 = sand.u32 %s437, 1
        %s685 = scalar_lea.sflag [#allocation4], %s684
        %s686 = sand.u32 %s437, 1
        %s687 = smul.addr %s686, 8
        %s688 = scalar_lea.vmem [#allocation13], %s687
        %p689 = pneg %p476
        %p690 = pneg %p473
        %s691 = sand.u32 %s463, 1
        %s692 = scalar_lea.sflag [#allocation15], %s691
        %s693 = sand.u32 %s463, 1
        %s694 = smul.addr %s693, 32
        %s695 = scalar_lea.vmem [#allocation14], %s694
        %p696 = scmp.lt.s32.totalorder %s41, 1
        %s697 = scalar_select %p696, %s41, 1
        %s698 = smul.addr %s697, 8
        %s699 = scalar_lea.vmem %s0, %s698
        %p700 = scmp.lt.s32.totalorder %s41, 1
        %s701 = scalar_select %p700, %s41, 1
        %s702 = scalar_lea.vmem %s1, %s701
        %v704 = vld [vmem:[%s699] sm:$0xff]
        %v705 = vpack.c.bf16 %v704, %v704
        %v706 = vld [vmem:[%s2] sm:$0xf]
        %v707 = vld [vmem:[%s2 + $0x4] sm:$0xf]
        %v708 = vld [vmem:[%s2 + $0x8] sm:$0xf]
        %v709 = vld [vmem:[%s2 + $0xc] sm:$0xf]
        %v710 = vld [vmem:[#allocation2] sm:$0x1]
        %v712 = vlaneseq
        %v713 = vshrl.u32 %v712, 7
        %v714 = vsub.s32 0, %v713
        %v715 = vrot.slane %v710, %v714
        %v721 = vunpack.c.l.b16 %v706
        %v722 = vunpack.c.l.b16 %v707
        %v723 = vunpack.c.l.b16 %v708
        %v724 = vunpack.c.l.b16 %v709
        %v725 = vpack.c.b16 %v722, %v721
        %v726 = vpack.c.b16 %v724, %v723
        %vm729 = vcmask 261120
        %v731 = vsel %vm729, %v705, 0
        %733 = vmatprep.subr.bf16.mxu0 0
        %734 = vmatpush1.bf16.msra.mxu0 %v725
        %735 = vmatprep.subr.bf16.mxu0 0
        %736 = vmatpush1.bf16.msra.mxu0 %v726
        %737 = vmatprep.subr.bf16.mxu0 0
        %738 = vmatpush1.bf16.msra.mxu0 0
        %739 = vmatprep.subr.bf16.mxu0 0
        %740 = vmatpush1.bf16.msra.mxu0 0
        %741 = vmatprep.subr.bf16.mxu0 0
        %742 = vmatpush1.bf16.msra.mxu0 0
        %743 = vmatprep.subr.bf16.mxu0 0
        %744 = vmatpush1.bf16.msra.mxu0 0
        %745 = vmatprep.subr.bf16.mxu0 0
        %746 = vmatpush1.bf16.msra.mxu0 0
        %747 = vmatprep.subr.bf16.mxu0 0
        %748 = vmatpush1.bf16.msra.mxu0 0
        %749 = vmatprep.subr.bf16.mxu0 0
        %750 = vmatpush1.bf16.msra.mxu0 0
        %751 = vmatprep.subr.bf16.mxu0 0
        %752 = vmatpush1.bf16.msra.mxu0 0
        %753 = vmatprep.subr.bf16.mxu0 0
        %754 = vmatpush1.bf16.msra.mxu0 0
        %755 = vmatprep.subr.bf16.mxu0 0
        %756 = vmatpush1.bf16.msra.mxu0 0
        %757 = vmatprep.subr.bf16.mxu0 0
        %758 = vmatpush1.bf16.msra.mxu0 0
        %759 = vmatprep.subr.bf16.mxu0 0
        %760 = vmatpush1.bf16.msra.mxu0 0
        %761 = vmatprep.subr.bf16.mxu0 0
        %762 = vmatpush1.bf16.msra.mxu0 0
        %763 = vmatprep.subr.bf16.mxu0 0
        %764 = vmatpush1.bf16.msra.mxu0 0
        %765 = vmatprep.mubr.bf16.mxu0 0
        %766 = vmatmul.mubr.bf16.gmra.mrb[0].mxu0 %v731
        %v767 = vpop.f32.mrb[0].mxu0
        %v768 = vadd.f32 %v715, %v767
        %v769 = vpop.f32.mrb[0].mxu0
        %v770 = vpop.f32.mrb[0].mxu0
        %v771 = vpop.f32.mrb[0].mxu0
        %772 = vdwg.mxu0
        %v773 = vld [vmem:[%s4] sm:$0xf]
        %v774 = vld [vmem:[%s4 + $0x4] sm:$0xf]
        %v775 = vld [vmem:[%s4 + $0x8] sm:$0xf]
        %v776 = vld [vmem:[%s4 + $0xc] sm:$0xf]
        %v777 = vld [vmem:[#allocation5] sm:$0x1]
        %v779 = vlaneseq
        %v780 = vshrl.u32 %v779, 7
        %v781 = vsub.s32 0, %v780
        %v782 = vrot.slane %v777, %v781
        %v788 = vunpack.c.l.b16 %v773
        %v789 = vunpack.c.l.b16 %v774
        %v790 = vunpack.c.l.b16 %v775
        %v791 = vunpack.c.l.b16 %v776
        %v792 = vpack.c.b16 %v789, %v788
        %v793 = vpack.c.b16 %v791, %v790
        %796 = vmatprep.subr.bf16.mxu0 0
        %797 = vmatpush1.bf16.msra.mxu0 %v792
        %798 = vmatprep.subr.bf16.mxu0 0
        %799 = vmatpush1.bf16.msra.mxu0 %v793
        %800 = vmatprep.subr.bf16.mxu0 0
        %801 = vmatpush1.bf16.msra.mxu0 0
        %802 = vmatprep.subr.bf16.mxu0 0
        %803 = vmatpush1.bf16.msra.mxu0 0
        %804 = vmatprep.subr.bf16.mxu0 0
        %805 = vmatpush1.bf16.msra.mxu0 0
        %806 = vmatprep.subr.bf16.mxu0 0
        %807 = vmatpush1.bf16.msra.mxu0 0
        %808 = vmatprep.subr.bf16.mxu0 0
        %809 = vmatpush1.bf16.msra.mxu0 0
        %810 = vmatprep.subr.bf16.mxu0 0
        %811 = vmatpush1.bf16.msra.mxu0 0
        %812 = vmatprep.subr.bf16.mxu0 0
        %813 = vmatpush1.bf16.msra.mxu0 0
        %814 = vmatprep.subr.bf16.mxu0 0
        %815 = vmatpush1.bf16.msra.mxu0 0
        %816 = vmatprep.subr.bf16.mxu0 0
        %817 = vmatpush1.bf16.msra.mxu0 0
        %818 = vmatprep.subr.bf16.mxu0 0
        %819 = vmatpush1.bf16.msra.mxu0 0
        %820 = vmatprep.subr.bf16.mxu0 0
        %821 = vmatpush1.bf16.msra.mxu0 0
        %822 = vmatprep.subr.bf16.mxu0 0
        %823 = vmatpush1.bf16.msra.mxu0 0
        %824 = vmatprep.subr.bf16.mxu0 0
        %825 = vmatpush1.bf16.msra.mxu0 0
        %826 = vmatprep.subr.bf16.mxu0 0
        %827 = vmatpush1.bf16.msra.mxu0 0
        %828 = vmatprep.mubr.bf16.mxu0 0
        %829 = vmatmul.mubr.bf16.gmra.mrb[0].mxu0 %v731
        %v830 = vpop.f32.mrb[0].mxu0
        %v831 = vadd.f32 %v782, %v830
        %v832 = vpop.f32.mrb[0].mxu0
        %v833 = vpop.f32.mrb[0].mxu0
        %v834 = vpop.f32.mrb[0].mxu0
        %835 = vdwg.mxu0
        %v836 = vld [vmem:[#allocation7] sm:$0xf]
        %v837 = vld [vmem:[#allocation7 + $0x4] sm:$0xf]
        %v838 = vld [vmem:[#allocation7 + $0x8] sm:$0xf]
        %v839 = vld [vmem:[#allocation7 + $0xc] sm:$0xf]
        %v840 = vld [vmem:[#allocation8] sm:$0x1]
        %v842 = vlaneseq
        %v843 = vshrl.u32 %v842, 7
        %v844 = vsub.s32 0, %v843
        %v845 = vrot.slane %v840, %v844
        %v851 = vunpack.c.l.b16 %v836
        %v852 = vunpack.c.l.b16 %v837
        %v853 = vunpack.c.l.b16 %v838
        %v854 = vunpack.c.l.b16 %v839
        %v855 = vpack.c.b16 %v852, %v851
        %v856 = vpack.c.b16 %v854, %v853
        %859 = vmatprep.subr.bf16.mxu0 0
        %860 = vmatpush1.bf16.msra.mxu0 %v855
        %861 = vmatprep.subr.bf16.mxu0 0
        %862 = vmatpush1.bf16.msra.mxu0 %v856
        %863 = vmatprep.subr.bf16.mxu0 0
        %864 = vmatpush1.bf16.msra.mxu0 0
        %865 = vmatprep.subr.bf16.mxu0 0
        %866 = vmatpush1.bf16.msra.mxu0 0
        %867 = vmatprep.subr.bf16.mxu0 0
        %868 = vmatpush1.bf16.msra.mxu0 0
        %869 = vmatprep.subr.bf16.mxu0 0
        %870 = vmatpush1.bf16.msra.mxu0 0
        %871 = vmatprep.subr.bf16.mxu0 0
        %872 = vmatpush1.bf16.msra.mxu0 0
        %873 = vmatprep.subr.bf16.mxu0 0
        %874 = vmatpush1.bf16.msra.mxu0 0
        %875 = vmatprep.subr.bf16.mxu0 0
        %876 = vmatpush1.bf16.msra.mxu0 0
        %877 = vmatprep.subr.bf16.mxu0 0
        %878 = vmatpush1.bf16.msra.mxu0 0
        %879 = vmatprep.subr.bf16.mxu0 0
        %880 = vmatpush1.bf16.msra.mxu0 0
        %881 = vmatprep.subr.bf16.mxu0 0
        %882 = vmatpush1.bf16.msra.mxu0 0
        %883 = vmatprep.subr.bf16.mxu0 0
        %884 = vmatpush1.bf16.msra.mxu0 0
        %885 = vmatprep.subr.bf16.mxu0 0
        %886 = vmatpush1.bf16.msra.mxu0 0
        %887 = vmatprep.subr.bf16.mxu0 0
        %888 = vmatpush1.bf16.msra.mxu0 0
        %889 = vmatprep.subr.bf16.mxu0 0
        %890 = vmatpush1.bf16.msra.mxu0 0
        %891 = vmatprep.mubr.bf16.mxu0 0
        %892 = vmatmul.mubr.bf16.gmra.mrb[0].mxu0 %v731
        %v893 = vpop.f32.mrb[0].mxu0
        %v894 = vadd.f32 %v845, %v893
        %v895 = vpop.f32.mrb[0].mxu0
        %v896 = vpop.f32.mrb[0].mxu0
        %v897 = vpop.f32.mrb[0].mxu0
        %898 = vdwg.mxu0
        %v899 = vld [vmem:[%s702] sm:$0x1]
        %vm900 = vcmp.eq.f32.partialorder %v899, 0.0
        %v901 = vsel %vm900, -inf, %v899
        %v902 = vlaneseq
        %v903 = vshrl.u32 %v902, 7
        %v904 = vlaneseq
        %v905 = vand.u32 %v904, 127
        %vm906 = vcmp.ge.s32.totalorder %v903, %v905
        %v907 = vmul.f32 %v768, 0.35355338
        %v908 = vpack.c.bf16 %v907, %v907
        %v909 = vpack.c.bf16 %v831, %v831
        %v910 = vpack.c.bf16 %v894, %v894
        %vm911 = vcmask 64512
        %v913 = vsel %vm911, %v908, 0
        %v916 = vsel %vm911, %v909, 0
        %918 = vmatprep.subr.bf16.mxu0 0
        %919 = vmatpush1.bf16.xpose.msra.mxu0 %v916
        %920 = vmatprep.subr.bf16.mxu0 0
        %921 = vmatpush1.bf16.xpose.msra.mxu0 0
        %922 = vmatprep.subr.bf16.mxu0 0
        %923 = vmatpush1.bf16.xpose.msra.mxu0 0
        %924 = vmatprep.subr.bf16.mxu0 0
        %925 = vmatpush1.bf16.xpose.msra.mxu0 0
        %926 = vmatprep.subr.bf16.mxu0 0
        %927 = vmatpush1.bf16.xpose.msra.mxu0 0
        %928 = vmatprep.subr.bf16.mxu0 0
        %929 = vmatpush1.bf16.xpose.msra.mxu0 0
        %930 = vmatprep.subr.bf16.mxu0 0
        %931 = vmatpush1.bf16.xpose.msra.mxu0 0
        %932 = vmatprep.subr.bf16.mxu0 0
        %933 = vmatpush1.bf16.xpose.msra.mxu0 0
        %934 = vmatprep.subr.bf16.mxu0 0
        %935 = vmatpush1.bf16.xpose.msra.mxu0 0
        %936 = vmatprep.subr.bf16.mxu0 0
        %937 = vmatpush1.bf16.xpose.msra.mxu0 0
        %938 = vmatprep.subr.bf16.mxu0 0
        %939 = vmatpush1.bf16.xpose.msra.mxu0 0
        %940 = vmatprep.subr.bf16.mxu0 0
        %941 = vmatpush1.bf16.xpose.msra.mxu0 0
        %942 = vmatprep.subr.bf16.mxu0 0
        %943 = vmatpush1.bf16.xpose.msra.mxu0 0
        %944 = vmatprep.subr.bf16.mxu0 0
        %945 = vmatpush1.bf16.xpose.msra.mxu0 0
        %946 = vmatprep.subr.bf16.mxu0 0
        %947 = vmatpush1.bf16.xpose.msra.mxu0 0
        %948 = vmatprep.subr.bf16.mxu0 0
        %949 = vmatpush1.bf16.xpose.msra.mxu0 0
        %950 = vmatprep.mubr.bf16.mxu0 0
        %951 = vmatmul.mubr.bf16.gmra.mrb[0].mxu0 %v913
        %v952 = vpop.f32.mrb[0].mxu0
        %v953 = vadd.f32 0.0, %v952
        %v954 = vpop.f32.mrb[0].mxu0
        %v955 = vpop.f32.mrb[0].mxu0
        %v956 = vpop.f32.mrb[0].mxu0
        %957 = vdwg.mxu0
        %958 = vst.msk [vmem:[%s695] sm:$0xff] %vm911, %v953
        %v959 = vsel %vm906, %v953, -4.2949673e+09
        %v961 = vlaneseq
        %v962 = vshrl.u32 %v961, 7
        %v963 = vsub.s32 0, %v962
        %v964 = vrot.slane %v901, %v963
        %v966 = vadd.f32 %v959, %v964
        %v967 = vsel %vm911, %v966, -inf
        %968 = vmax.xlane.f32.xlu0 %v967
        %v969 = vpop.xlane.xlu0 %968
        %v970 = vsub.f32 %v966, %v969
        %v971 = vmul.f32 %v970, 1.442695
        %v972 = vpow.pop %v971
        %v973 = vsel %vm911, %v972, 0.0
        %974 = vadd.xlane.f32.xlu0 %v973
        %v975 = vpop.xlane.xlu0 %974
        %v976 = vrcp.pop %v975
        %v977 = vmul.f32 %v972, %v976
        %v978 = vpack.c.bf16 %v977, %v977
        %v980 = vsel %vm911, %v978, 0
        %vm982 = vcmask 1043456
        %v984 = vsel %vm982, %v910, 0
        %986 = vmatprep.subr.bf16.mxu0 0
        %987 = vmatpush1.bf16.msra.mxu0 %v984
        %988 = vmatprep.subr.bf16.mxu0 0
        %989 = vmatpush1.bf16.msra.mxu0 0
        %990 = vmatprep.subr.bf16.mxu0 0
        %991 = vmatpush1.bf16.msra.mxu0 0
        %992 = vmatprep.subr.bf16.mxu0 0
        %993 = vmatpush1.bf16.msra.mxu0 0
        %994 = vmatprep.subr.bf16.mxu0 0
        %995 = vmatpush1.bf16.msra.mxu0 0
        %996 = vmatprep.subr.bf16.mxu0 0
        %997 = vmatpush1.bf16.msra.mxu0 0
        %998 = vmatprep.subr.bf16.mxu0 0
        %999 = vmatpush1.bf16.msra.mxu0 0
        %1000 = vmatprep.subr.bf16.mxu0 0
        %1001 = vmatpush1.bf16.msra.mxu0 0
        %1002 = vmatprep.subr.bf16.mxu0 0
        %1003 = vmatpush1.bf16.msra.mxu0 0
        %1004 = vmatprep.subr.bf16.mxu0 0
        %1005 = vmatpush1.bf16.msra.mxu0 0
        %1006 = vmatprep.subr.bf16.mxu0 0
        %1007 = vmatpush1.bf16.msra.mxu0 0
        %1008 = vmatprep.subr.bf16.mxu0 0
        %1009 = vmatpush1.bf16.msra.mxu0 0
        %1010 = vmatprep.subr.bf16.mxu0 0
        %1011 = vmatpush1.bf16.msra.mxu0 0
        %1012 = vmatprep.subr.bf16.mxu0 0
        %1013 = vmatpush1.bf16.msra.mxu0 0
        %1014 = vmatprep.subr.bf16.mxu0 0
        %1015 = vmatpush1.bf16.msra.mxu0 0
        %1016 = vmatprep.subr.bf16.mxu0 0
        %1017 = vmatpush1.bf16.msra.mxu0 0
        %1018 = vmatprep.mubr.bf16.mxu0 0
        %1019 = vmatmul.mubr.bf16.gmra.mrb[0].mxu0 %v980
        %v1020 = vpop.f32.mrb[0].mxu0
        %v1021 = vadd.f32 0.0, %v1020
        %v1022 = vpop.f32.mrb[0].mxu0
        %v1023 = vpop.f32.mrb[0].mxu0
        %v1024 = vpop.f32.mrb[0].mxu0
        %1025 = vdwg.mxu0
        %1027 = vrot.lane.b32.xlu0 %v908, 120
        %v1028 = vpop.permute.xlu0 %1027
        %1030 = vrot.lane.b32.xlu0 %v909, 120
        %v1031 = vpop.permute.xlu0 %1030
        %v1033 = vsel %vm911, %v1028, 0
        %v1036 = vsel %vm911, %v1031, 0
        %1038 = vmatprep.subr.bf16.mxu0 0
        %1039 = vmatpush1.bf16.xpose.msra.mxu0 %v1036
        %1040 = vmatprep.subr.bf16.mxu0 0
        %1041 = vmatpush1.bf16.xpose.msra.mxu0 0
        %1042 = vmatprep.subr.bf16.mxu0 0
        %1043 = vmatpush1.bf16.xpose.msra.mxu0 0
        %1044 = vmatprep.subr.bf16.mxu0 0
        %1045 = vmatpush1.bf16.xpose.msra.mxu0 0
        %1046 = vmatprep.subr.bf16.mxu0 0
        %1047 = vmatpush1.bf16.xpose.msra.mxu0 0
        %1048 = vmatprep.subr.bf16.mxu0 0
        %1049 = vmatpush1.bf16.xpose.msra.mxu0 0
        %1050 = vmatprep.subr.bf16.mxu0 0
        %1051 = vmatpush1.bf16.xpose.msra.mxu0 0
        %1052 = vmatprep.subr.bf16.mxu0 0
        %1053 = vmatpush1.bf16.xpose.msra.mxu0 0
        %1054 = vmatprep.subr.bf16.mxu0 0
        %1055 = vmatpush1.bf16.xpose.msra.mxu0 0
        %1056 = vmatprep.subr.bf16.mxu0 0
        %1057 = vmatpush1.bf16.xpose.msra.mxu0 0
        %1058 = vmatprep.subr.bf16.mxu0 0
        %1059 = vmatpush1.bf16.xpose.msra.mxu0 0
        %1060 = vmatprep.subr.bf16.mxu0 0
        %1061 = vmatpush1.bf16.xpose.msra.mxu0 0
        %1062 = vmatprep.subr.bf16.mxu0 0
        %1063 = vmatpush1.bf16.xpose.msra.mxu0 0
        %1064 = vmatprep.subr.bf16.mxu0 0
        %1065 = vmatpush1.bf16.xpose.msra.mxu0 0
        %1066 = vmatprep.subr.bf16.mxu0 0
        %1067 = vmatpush1.bf16.xpose.msra.mxu0 0
        %1068 = vmatprep.subr.bf16.mxu0 0
        %1069 = vmatpush1.bf16.xpose.msra.mxu0 0
        %1070 = vmatprep.mubr.bf16.mxu0 0
        %1071 = vmatmul.mubr.bf16.gmra.mrb[0].mxu0 %v1033
        %v1072 = vpop.f32.mrb[0].mxu0
        %v1073 = vadd.f32 0.0, %v1072
        %v1074 = vpop.f32.mrb[0].mxu0
        %v1075 = vpop.f32.mrb[0].mxu0
        %v1076 = vpop.f32.mrb[0].mxu0
        %1077 = vdwg.mxu0
        %s1078 = scalar_lea.vmem %s695, 8 [#allocation14]
        %1079 = vst.msk [vmem:[%s1078] sm:$0xff] %vm911, %v1073
        %v1080 = vsel %vm906, %v1073, -4.2949673e+09
        %v1081 = vadd.f32 %v1080, %v964
        %v1082 = vsel %vm911, %v1081, -inf
        %1083 = vmax.xlane.f32.xlu0 %v1082
        %v1084 = vpop.xlane.xlu0 %1083
        %v1085 = vsub.f32 %v1081, %v1084
        %v1086 = vmul.f32 %v1085, 1.442695
        %v1087 = vpow.pop %v1086
        %v1088 = vsel %vm911, %v1087, 0.0
        %1089 = vadd.xlane.f32.xlu0 %v1088
        %v1090 = vpop.xlane.xlu0 %1089
        %v1091 = vrcp.pop %v1090
        %v1092 = vmul.f32 %v1087, %v1091
        %v1093 = vpack.c.bf16 %v1092, %v1092
        %1095 = vrot.lane.b32.xlu0 %v910, 120
        %v1096 = vpop.permute.xlu0 %1095
        %v1098 = vsel %vm911, %v1093, 0
        %v1101 = vsel %vm982, %v1096, 0
        %1103 = vmatprep.subr.bf16.mxu0 0
        %1104 = vmatpush1.bf16.msra.mxu0 %v1101
        %1105 = vmatprep.subr.bf16.mxu0 0
        %1106 = vmatpush1.bf16.msra.mxu0 0
        %1107 = vmatprep.subr.bf16.mxu0 0
        %1108 = vmatpush1.bf16.msra.mxu0 0
        %1109 = vmatprep.subr.bf16.mxu0 0
        %1110 = vmatpush1.bf16.msra.mxu0 0
        %1111 = vmatprep.subr.bf16.mxu0 0
        %1112 = vmatpush1.bf16.msra.mxu0 0
        %1113 = vmatprep.subr.bf16.mxu0 0
        %1114 = vmatpush1.bf16.msra.mxu0 0
        %1115 = vmatprep.subr.bf16.mxu0 0
        %1116 = vmatpush1.bf16.msra.mxu0 0
        %1117 = vmatprep.subr.bf16.mxu0 0
        %1118 = vmatpush1.bf16.msra.mxu0 0
        %1119 = vmatprep.subr.bf16.mxu0 0
        %1120 = vmatpush1.bf16.msra.mxu0 0
        %1121 = vmatprep.subr.bf16.mxu0 0
        %1122 = vmatpush1.bf16.msra.mxu0 0
        %1123 = vmatprep.subr.bf16.mxu0 0
        %1124 = vmatpush1.bf16.msra.mxu0 0
        %1125 = vmatprep.subr.bf16.mxu0 0
        %1126 = vmatpush1.bf16.msra.mxu0 0
        %1127 = vmatprep.subr.bf16.mxu0 0
        %1128 = vmatpush1.bf16.msra.mxu0 0
        %1129 = vmatprep.subr.bf16.mxu0 0
        %1130 = vmatpush1.bf16.msra.mxu0 0
        %1131 = vmatprep.subr.bf16.mxu0 0
        %1132 = vmatpush1.bf16.msra.mxu0 0
        %1133 = vmatprep.subr.bf16.mxu0 0
        %1134 = vmatpush1.bf16.msra.mxu0 0
        %1135 = vmatprep.mubr.bf16.mxu0 0
        %1136 = vmatmul.mubr.bf16.gmra.mrb[0].mxu0 %v1098
        %v1137 = vpop.f32.mrb[0].mxu0
        %v1138 = vadd.f32 0.0, %v1137
        %v1139 = vpop.f32.mrb[0].mxu0
        %v1140 = vpop.f32.mrb[0].mxu0
        %v1141 = vpop.f32.mrb[0].mxu0
        %1142 = vdwg.mxu0
        %1143 = vrot.lane.b32.xlu0 %v908, 112
        %v1144 = vpop.permute.xlu0 %1143
        %1145 = vrot.lane.b32.xlu0 %v909, 112
        %v1146 = vpop.permute.xlu0 %1145
        %v1148 = vsel %vm911, %v1144, 0
        %v1151 = vsel %vm911, %v1146, 0
        %1153 = vmatprep.subr.bf16.mxu0 0
        %1154 = vmatpush1.bf16.xpose.msra.mxu0 %v1151
        %1155 = vmatprep.subr.bf16.mxu0 0
        %1156 = vmatpush1.bf16.xpose.msra.mxu0 0
        %1157 = vmatprep.subr.bf16.mxu0 0
        %1158 = vmatpush1.bf16.xpose.msra.mxu0 0
        %1159 = vmatprep.subr.bf16.mxu0 0
        %1160 = vmatpush1.bf16.xpose.msra.mxu0 0
        %1161 = vmatprep.subr.bf16.mxu0 0
        %1162 = vmatpush1.bf16.xpose.msra.mxu0 0
        %1163 = vmatprep.subr.bf16.mxu0 0
        %1164 = vmatpush1.bf16.xpose.msra.mxu0 0
        %1165 = vmatprep.subr.bf16.mxu0 0
        %1166 = vmatpush1.bf16.xpose.msra.mxu0 0
        %1167 = vmatprep.subr.bf16.mxu0 0
        %1168 = vmatpush1.bf16.xpose.msra.mxu0 0
        %1169 = vmatprep.subr.bf16.mxu0 0
        %1170 = vmatpush1.bf16.xpose.msra.mxu0 0
        %1171 = vmatprep.subr.bf16.mxu0 0
        %1172 = vmatpush1.bf16.xpose.msra.mxu0 0
        %1173 = vmatprep.subr.bf16.mxu0 0
        %1174 = vmatpush1.bf16.xpose.msra.mxu0 0
        %1175 = vmatprep.subr.bf16.mxu0 0
        %1176 = vmatpush1.bf16.xpose.msra.mxu0 0
        %1177 = vmatprep.subr.bf16.mxu0 0
        %1178 = vmatpush1.bf16.xpose.msra.mxu0 0
        %1179 = vmatprep.subr.bf16.mxu0 0
        %1180 = vmatpush1.bf16.xpose.msra.mxu0 0
        %1181 = vmatprep.subr.bf16.mxu0 0
        %1182 = vmatpush1.bf16.xpose.msra.mxu0 0
        %1183 = vmatprep.subr.bf16.mxu0 0
        %1184 = vmatpush1.bf16.xpose.msra.mxu0 0
        %1185 = vmatprep.mubr.bf16.mxu0 0
        %1186 = vmatmul.mubr.bf16.gmra.mrb[0].mxu0 %v1148
        %v1187 = vpop.f32.mrb[0].mxu0
        %v1188 = vadd.f32 0.0, %v1187
        %v1189 = vpop.f32.mrb[0].mxu0
        %v1190 = vpop.f32.mrb[0].mxu0
        %v1191 = vpop.f32.mrb[0].mxu0
        %1192 = vdwg.mxu0
        %s1193 = scalar_lea.vmem %s695, 16 [#allocation14]
        %1194 = vst.msk [vmem:[%s1193] sm:$0xff] %vm911, %v1188
        %v1195 = vsel %vm906, %v1188, -4.2949673e+09
        %v1196 = vadd.f32 %v1195, %v964
        %v1197 = vsel %vm911, %v1196, -inf
        %1198 = vmax.xlane.f32.xlu0 %v1197
        %v1199 = vpop.xlane.xlu0 %1198
        %v1200 = vsub.f32 %v1196, %v1199
        %v1201 = vmul.f32 %v1200, 1.442695
        %v1202 = vpow.pop %v1201
        %v1203 = vsel %vm911, %v1202, 0.0
        %1204 = vadd.xlane.f32.xlu0 %v1203
        %v1205 = vpop.xlane.xlu0 %1204
        %v1206 = vrcp.pop %v1205
        %v1207 = vmul.f32 %v1202, %v1206
        %v1208 = vpack.c.bf16 %v1207, %v1207
        %1209 = vrot.lane.b32.xlu0 %v910, 112
        %v1210 = vpop.permute.xlu0 %1209
        %v1212 = vsel %vm911, %v1208, 0
        %v1215 = vsel %vm982, %v1210, 0
        %1217 = vmatprep.subr.bf16.mxu0 0
        %1218 = vmatpush1.bf16.msra.mxu0 %v1215
        %1219 = vmatprep.subr.bf16.mxu0 0
        %1220 = vmatpush1.bf16.msra.mxu0 0
        %1221 = vmatprep.subr.bf16.mxu0 0
        %1222 = vmatpush1.bf16.msra.mxu0 0
        %1223 = vmatprep.subr.bf16.mxu0 0
        %1224 = vmatpush1.bf16.msra.mxu0 0
        %1225 = vmatprep.subr.bf16.mxu0 0
        %1226 = vmatpush1.bf16.msra.mxu0 0
        %1227 = vmatprep.subr.bf16.mxu0 0
        %1228 = vmatpush1.bf16.msra.mxu0 0
        %1229 = vmatprep.subr.bf16.mxu0 0
        %1230 = vmatpush1.bf16.msra.mxu0 0
        %1231 = vmatprep.subr.bf16.mxu0 0
        %1232 = vmatpush1.bf16.msra.mxu0 0
        %1233 = vmatprep.subr.bf16.mxu0 0
        %1234 = vmatpush1.bf16.msra.mxu0 0
        %1235 = vmatprep.subr.bf16.mxu0 0
        %1236 = vmatpush1.bf16.msra.mxu0 0
        %1237 = vmatprep.subr.bf16.mxu0 0
        %1238 = vmatpush1.bf16.msra.mxu0 0
        %1239 = vmatprep.subr.bf16.mxu0 0
        %1240 = vmatpush1.bf16.msra.mxu0 0
        %1241 = vmatprep.subr.bf16.mxu0 0
        %1242 = vmatpush1.bf16.msra.mxu0 0
        %1243 = vmatprep.subr.bf16.mxu0 0
        %1244 = vmatpush1.bf16.msra.mxu0 0
        %1245 = vmatprep.subr.bf16.mxu0 0
        %1246 = vmatpush1.bf16.msra.mxu0 0
        %1247 = vmatprep.subr.bf16.mxu0 0
        %1248 = vmatpush1.bf16.msra.mxu0 0
        %1249 = vmatprep.mubr.bf16.mxu0 0
        %1250 = vmatmul.mubr.bf16.gmra.mrb[0].mxu0 %v1212
        %v1251 = vpop.f32.mrb[0].mxu0
        %v1252 = vadd.f32 0.0, %v1251
        %v1253 = vpop.f32.mrb[0].mxu0
        %v1254 = vpop.f32.mrb[0].mxu0
        %v1255 = vpop.f32.mrb[0].mxu0
        %1256 = vdwg.mxu0
        %1257 = vrot.lane.b32.xlu0 %v908, 104
        %v1258 = vpop.permute.xlu0 %1257
        %1259 = vrot.lane.b32.xlu0 %v909, 104
        %v1260 = vpop.permute.xlu0 %1259
        %v1262 = vsel %vm911, %v1258, 0
        %v1265 = vsel %vm911, %v1260, 0
        %1267 = vmatprep.subr.bf16.mxu0 0
        %1268 = vmatpush1.bf16.xpose.msra.mxu0 %v1265
        %1269 = vmatprep.subr.bf16.mxu0 0
        %1270 = vmatpush1.bf16.xpose.msra.mxu0 0
        %1271 = vmatprep.subr.bf16.mxu0 0
        %1272 = vmatpush1.bf16.xpose.msra.mxu0 0
        %1273 = vmatprep.subr.bf16.mxu0 0
        %1274 = vmatpush1.bf16.xpose.msra.mxu0 0
        %1275 = vmatprep.subr.bf16.mxu0 0
        %1276 = vmatpush1.bf16.xpose.msra.mxu0 0
        %1277 = vmatprep.subr.bf16.mxu0 0
        %1278 = vmatpush1.bf16.xpose.msra.mxu0 0
        %1279 = vmatprep.subr.bf16.mxu0 0
        %1280 = vmatpush1.bf16.xpose.msra.mxu0 0
        %1281 = vmatprep.subr.bf16.mxu0 0
        %1282 = vmatpush1.bf16.xpose.msra.mxu0 0
        %1283 = vmatprep.subr.bf16.mxu0 0
        %1284 = vmatpush1.bf16.xpose.msra.mxu0 0
        %1285 = vmatprep.subr.bf16.mxu0 0
        %1286 = vmatpush1.bf16.xpose.msra.mxu0 0
        %1287 = vmatprep.subr.bf16.mxu0 0
        %1288 = vmatpush1.bf16.xpose.msra.mxu0 0
        %1289 = vmatprep.subr.bf16.mxu0 0
        %1290 = vmatpush1.bf16.xpose.msra.mxu0 0
        %1291 = vmatprep.subr.bf16.mxu0 0
        %1292 = vmatpush1.bf16.xpose.msra.mxu0 0
        %1293 = vmatprep.subr.bf16.mxu0 0
        %1294 = vmatpush1.bf16.xpose.msra.mxu0 0
        %1295 = vmatprep.subr.bf16.mxu0 0
        %1296 = vmatpush1.bf16.xpose.msra.mxu0 0
        %1297 = vmatprep.subr.bf16.mxu0 0
        %1298 = vmatpush1.bf16.xpose.msra.mxu0 0
        %1299 = vmatprep.mubr.bf16.mxu0 0
        %1300 = vmatmul.mubr.bf16.gmra.mrb[0].mxu0 %v1262
        %v1301 = vpop.f32.mrb[0].mxu0
        %v1302 = vadd.f32 0.0, %v1301
        %v1303 = vpop.f32.mrb[0].mxu0
        %v1304 = vpop.f32.mrb[0].mxu0
        %v1305 = vpop.f32.mrb[0].mxu0
        %1306 = vdwg.mxu0
        %s1307 = scalar_lea.vmem %s695, 24 [#allocation14]
        %1308 = vst.msk [vmem:[%s1307] sm:$0xff] %vm911, %v1302
        %v1309 = vsel %vm906, %v1302, -4.2949673e+09
        %v1310 = vadd.f32 %v1309, %v964
        %v1311 = vsel %vm911, %v1310, -inf
        %1312 = vmax.xlane.f32.xlu0 %v1311
        %v1313 = vpop.xlane.xlu0 %1312
        %v1314 = vsub.f32 %v1310, %v1313
        %v1315 = vmul.f32 %v1314, 1.442695
        %v1316 = vpow.pop %v1315
        %v1317 = vsel %vm911, %v1316, 0.0
        %1318 = vadd.xlane.f32.xlu0 %v1317
        %v1319 = vpop.xlane.xlu0 %1318
        %v1320 = vrcp.pop %v1319
        %v1321 = vmul.f32 %v1316, %v1320
        %v1322 = vpack.c.bf16 %v1321, %v1321
        %1323 = vrot.lane.b32.xlu0 %v910, 104
        %v1324 = vpop.permute.xlu0 %1323
        %v1326 = vsel %vm911, %v1322, 0
        %v1329 = vsel %vm982, %v1324, 0
        %1331 = vmatprep.subr.bf16.mxu0 0
        %1332 = vmatpush1.bf16.msra.mxu0 %v1329
        %1333 = vmatprep.subr.bf16.mxu0 0
        %1334 = vmatpush1.bf16.msra.mxu0 0
        %1335 = vmatprep.subr.bf16.mxu0 0
        %1336 = vmatpush1.bf16.msra.mxu0 0
        %1337 = vmatprep.subr.bf16.mxu0 0
        %1338 = vmatpush1.bf16.msra.mxu0 0
        %1339 = vmatprep.subr.bf16.mxu0 0
        %1340 = vmatpush1.bf16.msra.mxu0 0
        %1341 = vmatprep.subr.bf16.mxu0 0
        %1342 = vmatpush1.bf16.msra.mxu0 0
        %1343 = vmatprep.subr.bf16.mxu0 0
        %1344 = vmatpush1.bf16.msra.mxu0 0
        %1345 = vmatprep.subr.bf16.mxu0 0
        %1346 = vmatpush1.bf16.msra.mxu0 0
        %1347 = vmatprep.subr.bf16.mxu0 0
        %1348 = vmatpush1.bf16.msra.mxu0 0
        %1349 = vmatprep.subr.bf16.mxu0 0
        %1350 = vmatpush1.bf16.msra.mxu0 0
        %1351 = vmatprep.subr.bf16.mxu0 0
        %1352 = vmatpush1.bf16.msra.mxu0 0
        %1353 = vmatprep.subr.bf16.mxu0 0
        %1354 = vmatpush1.bf16.msra.mxu0 0
        %1355 = vmatprep.subr.bf16.mxu0 0
        %1356 = vmatpush1.bf16.msra.mxu0 0
        %1357 = vmatprep.subr.bf16.mxu0 0
        %1358 = vmatpush1.bf16.msra.mxu0 0
        %1359 = vmatprep.subr.bf16.mxu0 0
        %1360 = vmatpush1.bf16.msra.mxu0 0
        %1361 = vmatprep.subr.bf16.mxu0 0
        %1362 = vmatpush1.bf16.msra.mxu0 0
        %1363 = vmatprep.mubr.bf16.mxu0 0
        %1364 = vmatmul.mubr.bf16.gmra.mrb[0].mxu0 %v1326
        %v1365 = vpop.f32.mrb[0].mxu0
        %v1366 = vadd.f32 0.0, %v1365
        %v1367 = vpop.f32.mrb[0].mxu0
        %v1368 = vpop.f32.mrb[0].mxu0
        %v1369 = vpop.f32.mrb[0].mxu0
        %1370 = vdwg.mxu0
        %1372 = vrot.lane.b32.xlu0 %v1138, 8
        %v1373 = vpop.permute.xlu0 %1372
        %1376 = vrot.lane.b32.xlu0 %v1252, 16
        %v1377 = vpop.permute.xlu0 %1376
        %1380 = vrot.lane.b32.xlu0 %v1366, 24
        %v1381 = vpop.permute.xlu0 %1380
        %v1383 = vsel %vm911, %v1021, %v1373
        %vm1384 = vcmask 130048
        %v1385 = vsel %vm1384, %v1383, %v1377
        %vm1386 = vcmask 195584
        %v1387 = vsel %vm1386, %v1385, %v1381
        %v1388 = vpack.c.bf16 %v1387, %v1387
        %v1389 = vld [vmem:[#allocation10] sm:$0xf]
        %v1390 = vld [vmem:[#allocation10 + $0x4] sm:$0xf]
        %v1391 = vld [vmem:[#allocation10 + $0x8] sm:$0xf]
        %v1392 = vld [vmem:[#allocation10 + $0xc] sm:$0xf]
        %v1393 = vld [vmem:[#allocation11] sm:$0x1]
        %v1395 = vlaneseq
        %v1396 = vshrl.u32 %v1395, 7
        %v1397 = vsub.s32 0, %v1396
        %v1398 = vrot.slane %v1393, %v1397
        %v1404 = vunpack.c.l.b16 %v1389
        %v1405 = vunpack.c.l.b16 %v1390
        %v1406 = vunpack.c.l.b16 %v1391
        %v1407 = vunpack.c.l.b16 %v1392
        %v1408 = vpack.c.b16 %v1405, %v1404
        %v1409 = vpack.c.b16 %v1407, %v1406
        %v1413 = vsel %vm729, %v1388, 0
        %1415 = vmatprep.subr.bf16.mxu0 0
        %1416 = vmatpush1.bf16.msra.mxu0 %v1408
        %1417 = vmatprep.subr.bf16.mxu0 0
        %1418 = vmatpush1.bf16.msra.mxu0 %v1409
        %1419 = vmatprep.subr.bf16.mxu0 0
        %1420 = vmatpush1.bf16.msra.mxu0 0
        %1421 = vmatprep.subr.bf16.mxu0 0
        %1422 = vmatpush1.bf16.msra.mxu0 0
        %1423 = vmatprep.subr.bf16.mxu0 0
        %1424 = vmatpush1.bf16.msra.mxu0 0
        %1425 = vmatprep.subr.bf16.mxu0 0
        %1426 = vmatpush1.bf16.msra.mxu0 0
        %1427 = vmatprep.subr.bf16.mxu0 0
        %1428 = vmatpush1.bf16.msra.mxu0 0
        %1429 = vmatprep.subr.bf16.mxu0 0
        %1430 = vmatpush1.bf16.msra.mxu0 0
        %1431 = vmatprep.subr.bf16.mxu0 0
        %1432 = vmatpush1.bf16.msra.mxu0 0
        %1433 = vmatprep.subr.bf16.mxu0 0
        %1434 = vmatpush1.bf16.msra.mxu0 0
        %1435 = vmatprep.subr.bf16.mxu0 0
        %1436 = vmatpush1.bf16.msra.mxu0 0
        %1437 = vmatprep.subr.bf16.mxu0 0
        %1438 = vmatpush1.bf16.msra.mxu0 0
        %1439 = vmatprep.subr.bf16.mxu0 0
        %1440 = vmatpush1.bf16.msra.mxu0 0
        %1441 = vmatprep.subr.bf16.mxu0 0
        %1442 = vmatpush1.bf16.msra.mxu0 0
        %1443 = vmatprep.subr.bf16.mxu0 0
        %1444 = vmatpush1.bf16.msra.mxu0 0
        %1445 = vmatprep.subr.bf16.mxu0 0
        %1446 = vmatpush1.bf16.msra.mxu0 0
        %1447 = vmatprep.mubr.bf16.mxu0 0
        %1448 = vmatmul.mubr.bf16.gmra.mrb[0].mxu0 %v1413
        %v1449 = vpop.f32.mrb[0].mxu0
        %v1450 = vadd.f32 %v1398, %v1449
        %v1451 = vpop.f32.mrb[0].mxu0
        %v1452 = vpop.f32.mrb[0].mxu0
        %v1453 = vpop.f32.mrb[0].mxu0
        %1454 = vdwg.mxu0
        %v1455 = vadd.f32 %v1450, %v704
        %v1456 = vld [vmem:[%s10] sm:$0x1]
        %v1457 = vld [vmem:[%s11] sm:$0x1]
        %v1458 = vsel %vm729, %v1455, 0.0
        %1459 = vadd.xlane.f32.xlu0 %v1458
        %v1460 = vpop.xlane.xlu0 %1459
        %v1461 = vrcp.pop 32.0
        %v1462 = vmul.f32 %v1460, %v1461
        %v1463 = vsub.f32 %v1455, %v1462
        %v1464 = vmul.f32 %v1463, %v1463
        %v1465 = vsel %vm729, %v1464, 0.0
        %1466 = vadd.xlane.f32.xlu0 %v1465
        %v1467 = vpop.xlane.xlu0 %1466
        %v1468 = vmul.f32 %v1467, %v1461
        %v1469 = vadd.f32 %v1468, 1e-05
        %v1470 = vrsqrt.pop %v1469
        %v1471 = vmul.f32 %v1463, %v1470
        %v1473 = vlaneseq
        %v1474 = vshrl.u32 %v1473, 7
        %v1475 = vsub.s32 0, %v1474
        %v1476 = vrot.slane %v1456, %v1475
        %v1478 = vmul.f32 %v1471, %v1476
        %v1480 = vlaneseq
        %v1481 = vshrl.u32 %v1480, 7
        %v1482 = vsub.s32 0, %v1481
        %v1483 = vrot.slane %v1457, %v1482
        %v1485 = vadd.f32 %v1478, %v1483
        %v1486 = vpack.c.bf16 %v1485, %v1485
        %v1487 = vld [vmem:[%s12] sm:$0xf]
        %v1488 = vld [vmem:[%s12 + $0x4] sm:$0xf]
        %v1489 = vld [vmem:[%s12 + $0x8] sm:$0xf]
        %v1490 = vld [vmem:[%s12 + $0xc] sm:$0xf]
        %v1491 = vld [vmem:[%s13] sm:$0x1]
        %v1493 = vlaneseq
        %v1494 = vshrl.u32 %v1493, 7
        %v1495 = vsub.s32 0, %v1494
        %v1496 = vrot.slane %v1491, %v1495
        %v1502 = vunpack.c.l.b16 %v1487
        %v1503 = vunpack.c.l.b16 %v1488
        %v1504 = vunpack.c.l.b16 %v1489
        %v1505 = vunpack.c.l.b16 %v1490
        %v1506 = vpack.c.b16 %v1503, %v1502
        %v1507 = vpack.c.b16 %v1505, %v1504
        %v1511 = vsel %vm729, %v1486, 0
        %1513 = vmatprep.subr.bf16.mxu0 0
        %1514 = vmatpush1.bf16.msra.mxu0 %v1506
        %1515 = vmatprep.subr.bf16.mxu0 0
        %1516 = vmatpush1.bf16.msra.mxu0 %v1507
        %1517 = vmatprep.subr.bf16.mxu0 0
        %1518 = vmatpush1.bf16.msra.mxu0 0
        %1519 = vmatprep.subr.bf16.mxu0 0
        %1520 = vmatpush1.bf16.msra.mxu0 0
        %1521 = vmatprep.subr.bf16.mxu0 0
        %1522 = vmatpush1.bf16.msra.mxu0 0
        %1523 = vmatprep.subr.bf16.mxu0 0
        %1524 = vmatpush1.bf16.msra.mxu0 0
        %1525 = vmatprep.subr.bf16.mxu0 0
        %1526 = vmatpush1.bf16.msra.mxu0 0
        %1527 = vmatprep.subr.bf16.mxu0 0
        %1528 = vmatpush1.bf16.msra.mxu0 0
        %1529 = vmatprep.subr.bf16.mxu0 0
        %1530 = vmatpush1.bf16.msra.mxu0 0
        %1531 = vmatprep.subr.bf16.mxu0 0
        %1532 = vmatpush1.bf16.msra.mxu0 0
        %1533 = vmatprep.subr.bf16.mxu0 0
        %1534 = vmatpush1.bf16.msra.mxu0 0
        %1535 = vmatprep.subr.bf16.mxu0 0
        %1536 = vmatpush1.bf16.msra.mxu0 0
        %1537 = vmatprep.subr.bf16.mxu0 0
        %1538 = vmatpush1.bf16.msra.mxu0 0
        %1539 = vmatprep.subr.bf16.mxu0 0
        %1540 = vmatpush1.bf16.msra.mxu0 0
        %1541 = vmatprep.subr.bf16.mxu0 0
        %1542 = vmatpush1.bf16.msra.mxu0 0
        %1543 = vmatprep.subr.bf16.mxu0 0
        %1544 = vmatpush1.bf16.msra.mxu0 0
        %1545 = vmatprep.mubr.bf16.mxu0 0
        %1546 = vmatmul.mubr.bf16.gmra.mrb[0].mxu0 %v1511
        %v1547 = vpop.f32.mrb[0].mxu0
        %v1548 = vadd.f32 %v1496, %v1547
        %v1549 = vpop.f32.mrb[0].mxu0
        %v1550 = vpop.f32.mrb[0].mxu0
        %v1551 = vpop.f32.mrb[0].mxu0
        %1552 = vdwg.mxu0
        %v1553 = vmax.f32 %v1548, 0.0
        %v1554 = vpack.c.bf16 %v1553, %v1553
        %v1555 = vld [vmem:[%s14] sm:$0xf]
        %v1556 = vld [vmem:[%s14 + $0x4] sm:$0xf]
        %v1557 = vld [vmem:[%s14 + $0x8] sm:$0xf]
        %v1558 = vld [vmem:[%s14 + $0xc] sm:$0xf]
        %v1559 = vld [vmem:[%s14 + $0x10] sm:$0xf]
        %v1560 = vld [vmem:[%s14 + $0x14] sm:$0xf]
        %v1561 = vld [vmem:[%s14 + $0x18] sm:$0xf]
        %v1562 = vld [vmem:[%s14 + $0x1c] sm:$0xf]
        %v1563 = vld [vmem:[%s15] sm:$0x1]
        %v1565 = vlaneseq
        %v1566 = vshrl.u32 %v1565, 7
        %v1567 = vsub.s32 0, %v1566
        %v1568 = vrot.slane %v1563, %v1567
        %v1578 = vunpack.c.l.b16 %v1555
        %v1579 = vunpack.c.l.b16 %v1556
        %v1580 = vunpack.c.l.b16 %v1557
        %v1581 = vunpack.c.l.b16 %v1558
        %v1582 = vunpack.c.l.b16 %v1559
        %v1583 = vunpack.c.l.b16 %v1560
        %v1584 = vunpack.c.l.b16 %v1561
        %v1585 = vunpack.c.l.b16 %v1562
        %v1586 = vpack.c.b16 %v1579, %v1578
        %v1587 = vpack.c.b16 %v1581, %v1580
        %v1588 = vpack.c.b16 %v1583, %v1582
        %v1589 = vpack.c.b16 %v1585, %v1584
        %vm1594 = vcmask 523264
        %v1596 = vsel %vm1594, %v1554, 0
        %1598 = vmatprep.subr.bf16.mxu0 0
        %1599 = vmatpush1.bf16.msra.mxu0 %v1586
        %1600 = vmatprep.subr.bf16.mxu0 0
        %1601 = vmatpush1.bf16.msra.mxu0 %v1587
        %1602 = vmatprep.subr.bf16.mxu0 0
        %1603 = vmatpush1.bf16.msra.mxu0 %v1588
        %1604 = vmatprep.subr.bf16.mxu0 0
        %1605 = vmatpush1.bf16.msra.mxu0 %v1589
        %1606 = vmatprep.subr.bf16.mxu0 0
        %1607 = vmatpush1.bf16.msra.mxu0 0
        %1608 = vmatprep.subr.bf16.mxu0 0
        %1609 = vmatpush1.bf16.msra.mxu0 0
        %1610 = vmatprep.subr.bf16.mxu0 0
        %1611 = vmatpush1.bf16.msra.mxu0 0
        %1612 = vmatprep.subr.bf16.mxu0 0
        %1613 = vmatpush1.bf16.msra.mxu0 0
        %1614 = vmatprep.subr.bf16.mxu0 0
        %1615 = vmatpush1.bf16.msra.mxu0 0
        %1616 = vmatprep.subr.bf16.mxu0 0
        %1617 = vmatpush1.bf16.msra.mxu0 0
        %1618 = vmatprep.subr.bf16.mxu0 0
        %1619 = vmatpush1.bf16.msra.mxu0 0
        %1620 = vmatprep.subr.bf16.mxu0 0
        %1621 = vmatpush1.bf16.msra.mxu0 0
        %1622 = vmatprep.subr.bf16.mxu0 0
        %1623 = vmatpush1.bf16.msra.mxu0 0
        %1624 = vmatprep.subr.bf16.mxu0 0
        %1625 = vmatpush1.bf16.msra.mxu0 0
        %1626 = vmatprep.subr.bf16.mxu0 0
        %1627 = vmatpush1.bf16.msra.mxu0 0
        %1628 = vmatprep.subr.bf16.mxu0 0
        %1629 = vmatpush1.bf16.msra.mxu0 0
        %1630 = vmatprep.mubr.bf16.mxu0 0
        %1631 = vmatmul.mubr.bf16.gmra.mrb[0].mxu0 %v1596
        %v1632 = vpop.f32.mrb[0].mxu0
        %v1633 = vadd.f32 %v1568, %v1632
        %v1634 = vpop.f32.mrb[0].mxu0
        %v1635 = vpop.f32.mrb[0].mxu0
        %v1636 = vpop.f32.mrb[0].mxu0
        %1637 = vdwg.mxu0
        %v1638 = vadd.f32 %v1633, %v1485
        %v1639 = vld [vmem:[%s16] sm:$0x1]
        %v1640 = vld [vmem:[%s17] sm:$0x1]
        %v1641 = vsel %vm729, %v1638, 0.0
        %1642 = vadd.xlane.f32.xlu0 %v1641
        %v1643 = vpop.xlane.xlu0 %1642
        %v1644 = vmul.f32 %v1643, %v1461
        %v1645 = vsub.f32 %v1638, %v1644
        %v1646 = vmul.f32 %v1645, %v1645
        %v1647 = vsel %vm729, %v1646, 0.0
        %1648 = vadd.xlane.f32.xlu0 %v1647
        %v1649 = vpop.xlane.xlu0 %1648
        %v1650 = vmul.f32 %v1649, %v1461
        %v1651 = vadd.f32 %v1650, 1e-05
        %v1652 = vrsqrt.pop %v1651
        %v1653 = vmul.f32 %v1645, %v1652
        %v1655 = vlaneseq
        %v1656 = vshrl.u32 %v1655, 7
        %v1657 = vsub.s32 0, %v1656
        %v1658 = vrot.slane %v1639, %v1657
        %v1660 = vmul.f32 %v1653, %v1658
        %v1662 = vlaneseq
        %v1663 = vshrl.u32 %v1662, 7
        %v1664 = vsub.s32 0, %v1663
        %v1665 = vrot.slane %v1640, %v1664
        %v1667 = vadd.f32 %v1660, %v1665
        %1668 = vst.msk [vmem:[%s688] sm:$0xff] %vm729, %v1667
        %s1669 = sand.u32 %s437, 1
        %s1670 = scalar_lea.sflag [#allocation4], %s1669
        %s1671 = sand.u32 %s437, 1
        %s1672 = smul.addr %s1671, 8
        %s1673 = scalar_lea.vmem [#allocation13], %s1672
        %s1674 = sand.u32 %s463, 1
        %s1675 = scalar_lea.sflag [#allocation15], %s1674
        %s1676 = sand.u32 %s463, 1
        %s1677 = smul.addr %s1676, 32
        %s1678 = scalar_lea.vmem [#allocation14], %s1677
        // Predicated region
        $region117: #{tpu_custom_call.1} parent=91 // pred_check
          %p1679 = pneg %p447
        $region118: #{tpu_custom_call.1} parent=91 // pred_check_branch
          %1681 = sbr.rel (%p1679) target = $region120
        $region119: #{tpu_custom_call.1} parent=91 // pred_region
          %s1683 = ssub.s32 128, 128
          %1684 = vsyncadd %s1670, %s1683
          %s1685 = smul.addr %s41, 128
          %s1686 = scalar_lea.hbm %s18, %s1685
          %s1688 = sshll.u32 %s1673, 4
          %s1689 = int_to_ptr.vmem [resolvable:$true] %s1688
          %1691 = dma.vmem_to_hbm [thread:$0]  %s1689, 128, %s1686, %s1670
        $region120: #{tpu_custom_call.1} parent=91 // pred_fallthru
          _
        // Predicated region
        $region121: #{tpu_custom_call.1} parent=91 // pred_check
          %p1692 = pneg %p473
        $region122: #{tpu_custom_call.1} parent=91 // pred_check_branch
          %1694 = sbr.rel (%p1692) target = $region124
        $region123: #{tpu_custom_call.1} parent=91 // pred_region
          %s1696 = ssub.s32 512, 512
          %1697 = vsyncadd %s1675, %s1696
          %s1698 = smul.addr %s41, 128
          %s1699 = scalar_lea.hbm %s19, %s1698
          %s1700 = sshll.u32 %s1678, 4
          %s1701 = int_to_ptr.vmem [resolvable:$true] %s1700
          %1706 = dma.vmem_to_hbm [thread:$0]  %s1701, 512, %s1699, %s1675, 128, 256, 8
        $region124: #{tpu_custom_call.1} parent=91 // pred_fallthru
          _
      $region92: #{tpu_custom_call.1} parent=5 // pred_fallthru
        _
      %p1707 = scmp.le.s32.totalorder 2, %s36
      // Predicated region
      $region125: #{tpu_custom_call.1} parent=5 // pred_check
        %p1708 = pneg %p1707
      $region126: #{tpu_custom_call.1} parent=5 // pred_check_branch
        %1710 = sbr.rel (%p1708) target = $region128
      $region127: #{tpu_custom_call.1} parent=5 // pred_region
        %s1711 = ssub.s32 %s36, 2
        // Predicated region
        $region129: #{tpu_custom_call.1} parent=127 // pred_check
          %p1712 = pneg %p453
        $region130: #{tpu_custom_call.1} parent=127 // pred_check_branch
          %1714 = sbr.rel (%p1712) target = $region132
        $region131: #{tpu_custom_call.1} parent=127 // pred_region
          %s1715 = sand.u32 %s438, 1
          %s1716 = scalar_lea.sflag [#allocation4], %s1715
          %s1717 = sand.u32 %s438, 1
          %s1718 = smul.addr %s1717, 8
          %s1719 = scalar_lea.vmem [#allocation13], %s1718
          %1720 = dma.done %s1716, 128
        $region132: #{tpu_custom_call.1} parent=127 // pred_fallthru
          _
        // Predicated region
        $region133: #{tpu_custom_call.1} parent=127 // pred_check
          %p1721 = pneg %p479
        $region134: #{tpu_custom_call.1} parent=127 // pred_check_branch
          %1723 = sbr.rel (%p1721) target = $region136
        $region135: #{tpu_custom_call.1} parent=127 // pred_region
          %s1724 = sand.u32 %s464, 1
          %s1725 = scalar_lea.sflag [#allocation15], %s1724
          %s1726 = sand.u32 %s464, 1
          %s1727 = smul.addr %s1726, 32
          %s1728 = scalar_lea.vmem [#allocation14], %s1727
          %1729 = dma.done %s1725, 512
        $region136: #{tpu_custom_call.1} parent=127 // pred_fallthru
          _
      $region128: #{tpu_custom_call.1} parent=5 // pred_fallthru
        _
    $region6: #{tpu_custom_call.1} parent=1 // loop_footer
      %s40 = sadd.s32 1, %s36
    $region7: #{tpu_custom_call.1} parent=1 // loop_footer_branch
      %35 = sbr.rel target = $region3
    $region8: #{tpu_custom_call.1} parent=1 // loop_exit
      _
    %1730 = vsyncpa [#allocation3], 1
    %s1731 = scalar_lea.sflag [#allocation3], 1
    %1732 = vsyncpa %s1731, 1
    %1733 = vsyncpa [#allocation6], 1
    %1734 = vsyncpa [#allocation9], 1
    %1735 = vsyncpa [#allocation12], 1
    %1736 = vsyncpa [#allocation4], 1
    %s1737 = scalar_lea.sflag [#allocation4], 1
    %1738 = vsyncpa %s1737, 1
    %1739 = vsyncpa [#allocation15], 1
    %s1740 = scalar_lea.sflag [#allocation15], 1
    %1741 = vsyncpa %s1740, 1

// kernel: tpu_custom_call.1
$region0: #{tpu_custom_call.1}
  #allocation0 [shape = 'u32[]', space=smem, size = 0x4, offset = 0x4, fixed_abs, tag = 'smem constant byte address 0x4 - core index']
  #allocation1 [shape = 'u32[144,128]{1,0:T(1,128)}', space=vmem, size = 0x12000, scoped, tag = 'internal scratch']
  %s0 = inlined_call_operand.vmem [shape: f32[2,8,32], index: 0, kind: input, shape index: {}]
  %s1 = inlined_call_operand.vmem [shape: f32[2,1,8], index: 1, kind: input, shape index: {}]
  %s2 = inlined_call_operand.vmem [shape: bf16[32,32], index: 2, kind: input, shape index: {}]
  %s3 = inlined_call_operand.hbm [shape: f32[1,32], index: 3, kind: input, shape index: {}]
  %s4 = inlined_call_operand.vmem [shape: bf16[32,32], index: 4, kind: input, shape index: {}]
  %s5 = inlined_call_operand.hbm [shape: f32[1,32], index: 5, kind: input, shape index: {}]
  %s6 = inlined_call_operand.hbm [shape: bf16[32,32], index: 6, kind: input, shape index: {}]
  %s7 = inlined_call_operand.hbm [shape: f32[1,32], index: 7, kind: input, shape index: {}]
  %s8 = inlined_call_operand.hbm [shape: bf16[32,32], index: 8, kind: input, shape index: {}]
  %s9 = inlined_call_operand.hbm [shape: f32[1,32], index: 9, kind: input, shape index: {}]
  %s10 = inlined_call_operand.vmem [shape: f32[1,32], index: 10, kind: input, shape index: {}]
  %s11 = inlined_call_operand.vmem [shape: f32[1,32], index: 11, kind: input, shape index: {}]
  %s12 = inlined_call_operand.vmem [shape: bf16[32,64], index: 12, kind: input, shape index: {}]
  %s13 = inlined_call_operand.vmem [shape: f32[1,64], index: 13, kind: input, shape index: {}]
  %s14 = inlined_call_operand.vmem [shape: bf16[64,32], index: 14, kind: input, shape index: {}]
  %s15 = inlined_call_operand.vmem [shape: f32[1,32], index: 15, kind: input, shape index: {}]
  %s16 = inlined_call_operand.vmem [shape: f32[1,32], index: 16, kind: input, shape index: {}]
  %s17 = inlined_call_operand.vmem [shape: f32[1,32], index: 17, kind: input, shape index: {}]
  %s18 = inlined_call_operand.hbm [shape: f32[2,8,32], index: 18, kind: output, shape index: {0}]
  %s19 = inlined_call_operand.hbm [shape: f32[4,2,8,8], index: 19, kind: output, shape index: {1}]
  %20 = xla_tuple %s18, %s19
  %s21 = sld [smem:[#allocation0]]
  $region137: #{tpu_custom_call.1} parent=0
    _
  %s23 = ssub.s32 1, %s21
  %s24 = scalar_select 0, %s23, %s21
  $region1: #{tpu_custom_call.1} parent=0
    #allocation2 [shape = 'u8[512]{0}', space=vmem, size = 0x400, scoped, tag = 'input window, operand 3, single buffered']
    #allocation3 [shape = 's32[2]{0}', space=sflag, size = 0x8, scoped, tag = 'scoped memory for tpu_custom_call.1']
    #allocation4 [shape = 's32[2]{0}', space=sflag, size = 0x8, scoped, tag = 'scoped memory for tpu_custom_call.1']
    #allocation5 [shape = 'u8[512]{0}', space=vmem, size = 0x400, scoped, tag = 'input window, operand 5, single buffered']
    #allocation6 [shape = 's32[1]{0}', space=sflag, size = 0x4, scoped, tag = 'scoped memory for tpu_custom_call.1']
    #allocation7 [shape = 'u8[8192]{0}', space=vmem, size = 0x2000, scoped, tag = 'input window, operand 6, single buffered']
    #allocation8 [shape = 'u8[512]{0}', space=vmem, size = 0x400, scoped, tag = 'input window, operand 7, single buffered']
    #allocation9 [shape = 's32[1]{0}', space=sflag, size = 0x4, scoped, tag = 'scoped memory for tpu_custom_call.1']
    #allocation10 [shape = 'u8[8192]{0}', space=vmem, size = 0x2000, scoped, tag = 'input window, operand 8, single buffered']
    #allocation11 [shape = 'u8[512]{0}', space=vmem, size = 0x400, scoped, tag = 'input window, operand 9, single buffered']
    #allocation12 [shape = 's32[1]{0}', space=sflag, size = 0x4, scoped, tag = 'scoped memory for tpu_custom_call.1']
    #allocation13 [shape = 'u8[8192]{0}', space=vmem, size = 0x2000, scoped, tag = 'output window, operand 0']
    #allocation14 [shape = 'u8[32768]{0}', space=vmem, size = 0x8000, scoped, tag = 'output window, operand 1']
    #allocation15 [shape = 's32[2]{0}', space=sflag, size = 0x8, scoped, tag = 'scoped memory for tpu_custom_call.1']
    %25 = vsyncpa [#allocation3], 0
    %26 = vsyncpa [#allocation6], 0
    %27 = vsyncpa [#allocation9], 0
    %28 = vsyncpa [#allocation12], 0
    %29 = vsyncpa [#allocation4], 0
    %s30 = scalar_lea.sflag [#allocation4], 1
    %31 = vsyncpa %s30, 0
    %32 = vsyncpa [#allocation15], 0
    %s33 = scalar_lea.sflag [#allocation15], 1
    %34 = vsyncpa %s33, 0
    loop: start=0, step=1, limit=4
    $region2: #{tpu_custom_call.1} parent=1 // loop_pre_header
      _
    $region3: #{tpu_custom_call.1} parent=1 // loop_header
      %s36 = sphi 0, %s40
      %p37 = scmp.ge.s32.totalorder %s36, 4
      %s46 = sphi 0, %s48
      %s49 = sphi 0, %s46
      %s50 = sphi 0, %s49
      %s66 = sphi 0, %s50
      %s72 = sphi 0, %s74
      %s75 = sphi 0, %s72
      %s76 = sphi 0, %s75
      %s92 = sphi 0, %s76
      %s96 = sphi 0, %s96
      %s98 = sphi 0, %s96
      %s99 = sphi 0, %s98
      %s113 = sphi 0, %s99
      %s117 = sphi 0, %s117
      %s119 = sphi 0, %s117
      %s120 = sphi 0, %s119
      %s134 = sphi 0, %s120
      %s138 = sphi 0, %s138
      %s140 = sphi 0, %s138
      %s141 = sphi 0, %s140
      %s155 = sphi 0, %s141
      %s159 = sphi 0, %s159
      %s161 = sphi 0, %s159
      %s162 = sphi 0, %s161
      %s176 = sphi 0, %s162
      %s180 = sphi 0, %s180
      %s182 = sphi 0, %s180
      %s183 = sphi 0, %s182
      %s197 = sphi 0, %s183
      %s201 = sphi 0, %s201
      %s203 = sphi 0, %s201
      %s204 = sphi 0, %s203
      %s218 = sphi 0, %s204
      %s222 = sphi 0, %s222
      %s224 = sphi 0, %s222
      %s225 = sphi 0, %s224
      %s239 = sphi 0, %s225
      %s243 = sphi 0, %s243
      %s245 = sphi 0, %s243
      %s246 = sphi 0, %s245
      %s260 = sphi 0, %s246
      %s264 = sphi 0, %s264
      %s266 = sphi 0, %s264
      %s267 = sphi 0, %s266
      %s281 = sphi 0, %s267
      %s285 = sphi 0, %s285
      %s287 = sphi 0, %s285
      %s288 = sphi 0, %s287
      %s302 = sphi 0, %s288
      %s306 = sphi 0, %s306
      %s308 = sphi 0, %s306
      %s309 = sphi 0, %s308
      %s323 = sphi 0, %s309
      %s327 = sphi 0, %s327
      %s329 = sphi 0, %s327
      %s330 = sphi 0, %s329
      %s344 = sphi 0, %s330
      %s348 = sphi 0, %s348
      %s350 = sphi 0, %s348
      %s351 = sphi 0, %s350
      %s365 = sphi 0, %s351
      %s369 = sphi 0, %s369
      %s371 = sphi 0, %s369
      %s372 = sphi 0, %s371
      %s386 = sphi 0, %s372
      %s390 = sphi 0, %s390
      %s392 = sphi 0, %s390
      %s393 = sphi 0, %s392
      %s407 = sphi 0, %s393
      %s411 = sphi 0, %s411
      %s413 = sphi 0, %s411
      %s414 = sphi 0, %s413
      %s428 = sphi 0, %s414
      %s434 = sphi 0, %s436
      %s437 = sphi 0, %s434
      %s438 = sphi 0, %s437
      %s454 = sphi 0, %s438
      %s460 = sphi 0, %s462
      %s463 = sphi 0, %s460
      %s464 = sphi 0, %s463
      %s480 = sphi 0, %s464
    $region4: #{tpu_custom_call.1} parent=1 // loop_header_branch
      %39 = sbr.rel (%p37) target = $region8
    $region5: #{tpu_custom_call.1} parent=1 // loop_body
      %s41 = ssub.s32 %s36, 1
      %s42 = ssub.s32 %s36, 2
      %s43 = sadd.s32 %s36, 1
      %s44 = ssub.s32 %s36, %s43
      %p45 = scmp.eq.s32.totalorder %s44, 0
      %s47 = sadd.s32 %s46, 1
      %s48 = scalar_select %p45, %s46, %s47
      %p51 = pneg %p45
      %p52 = scmp.eq.s32.totalorder %s36, 1
      %p53 = por %p51, %p52
      %p54 = scmp.ne.s32.totalorder %s46, %s49
      %p55 = scmp.eq.s32.totalorder %s36, 0
      %p56 = por %p54, %p55
      %p57 = scmp.ne.s32.totalorder %s46, %s49
      %p58 = scmp.eq.s32.totalorder %s41, 1
      %p59 = por %p57, %p58
      %p60 = scmp.ne.s32.totalorder %s49, %s50
      %p61 = scmp.eq.s32.totalorder %s41, 0
      %p62 = por %p60, %p61
      %p63 = scmp.ne.s32.totalorder %s49, %s50
      %p64 = scmp.eq.s32.totalorder %s42, 1
      %p65 = por %p63, %p64
      %p67 = scmp.ne.s32.totalorder %s50, %s66
      %p68 = scmp.eq.s32.totalorder %s42, 0
      %p69 = por %p67, %p68
      %s70 = ssub.s32 %s36, %s43
      %p71 = scmp.eq.s32.totalorder %s70, 0
      %s73 = sadd.s32 %s72, 1
      %s74 = scalar_select %p71, %s72, %s73
      %p77 = pneg %p71
      %p78 = scmp.eq.s32.totalorder %s36, 1
      %p79 = por %p77, %p78
      %p80 = scmp.ne.s32.totalorder %s72, %s75
      %p81 = scmp.eq.s32.totalorder %s36, 0
      %p82 = por %p80, %p81
      %p83 = scmp.ne.s32.totalorder %s72, %s75
      %p84 = scmp.eq.s32.totalorder %s41, 1
      %p85 = por %p83, %p84
      %p86 = scmp.ne.s32.totalorder %s75, %s76
      %p87 = scmp.eq.s32.totalorder %s41, 0
      %p88 = por %p86, %p87
      %p89 = scmp.ne.s32.totalorder %s75, %s76
      %p90 = scmp.eq.s32.totalorder %s42, 1
      %p91 = por %p89, %p90
      %p93 = scmp.ne.s32.totalorder %s76, %s92
      %p94 = scmp.eq.s32.totalorder %s42, 0
      %p95 = por %p93, %p94
      %s97 = sadd.s32 %s96, 1
      %p100 = scmp.eq.s32.totalorder %s36, 1
      %p101 = scmp.ne.s32.totalorder %s96, %s98
      %p102 = scmp.eq.s32.totalorder %s36, 0
      %p103 = por %p101, %p102
      %p104 = scmp.ne.s32.totalorder %s96, %s98
      %p105 = scmp.eq.s32.totalorder %s41, 1
      %p106 = por %p104, %p105
      %p107 = scmp.ne.s32.totalorder %s98, %s99
      %p108 = scmp.eq.s32.totalorder %s41, 0
      %p109 = por %p107, %p108
      %p110 = scmp.ne.s32.totalorder %s98, %s99
      %p111 = scmp.eq.s32.totalorder %s42, 1
      %p112 = por %p110, %p111
      %p114 = scmp.ne.s32.totalorder %s99, %s113
      %p115 = scmp.eq.s32.totalorder %s42, 0
      %p116 = por %p114, %p115
      %s118 = sadd.s32 %s117, 1
      %p121 = scmp.eq.s32.totalorder %s36, 1
      %p122 = scmp.ne.s32.totalorder %s117, %s119
      %p123 = scmp.eq.s32.totalorder %s36, 0
      %p124 = por %p122, %p123
      %p125 = scmp.ne.s32.totalorder %s117, %s119
      %p126 = scmp.eq.s32.totalorder %s41, 1
      %p127 = por %p125, %p126
      %p128 = scmp.ne.s32.totalorder %s119, %s120
      %p129 = scmp.eq.s32.totalorder %s41, 0
      %p130 = por %p128, %p129
      %p131 = scmp.ne.s32.totalorder %s119, %s120
      %p132 = scmp.eq.s32.totalorder %s42, 1
      %p133 = por %p131, %p132
      %p135 = scmp.ne.s32.totalorder %s120, %s134
      %p136 = scmp.eq.s32.totalorder %s42, 0
      %p137 = por %p135, %p136
      %s139 = sadd.s32 %s138, 1
      %p142 = scmp.eq.s32.totalorder %s36, 1
      %p143 = scmp.ne.s32.totalorder %s138, %s140
      %p144 = scmp.eq.s32.totalorder %s36, 0
      %p145 = por %p143, %p144
      %p146 = scmp.ne.s32.totalorder %s138, %s140
      %p147 = scmp.eq.s32.totalorder %s41, 1
      %p148 = por %p146, %p147
      %p149 = scmp.ne.s32.totalorder %s140, %s141
      %p150 = scmp.eq.s32.totalorder %s41, 0
      %p151 = por %p149, %p150
      %p152 = scmp.ne.s32.totalorder %s140, %s141
      %p153 = scmp.eq.s32.totalorder %s42, 1
      %p154 = por %p152, %p153
      %p156 = scmp.ne.s32.totalorder %s141, %s155
      %p157 = scmp.eq.s32.totalorder %s42, 0
      %p158 = por %p156, %p157
      %s160 = sadd.s32 %s159, 1
      %p163 = scmp.eq.s32.totalorder %s36, 1
      %p164 = scmp.ne.s32.totalorder %s159, %s161
      %p165 = scmp.eq.s32.totalorder %s36, 0
      %p166 = por %p164, %p165
      %p167 = scmp.ne.s32.totalorder %s159, %s161
      %p168 = scmp.eq.s32.totalorder %s41, 1
      %p169 = por %p167, %p168
      %p170 = scmp.ne.s32.totalorder %s161, %s162
      %p171 = scmp.eq.s32.totalorder %s41, 0
      %p172 = por %p170, %p171
      %p173 = scmp.ne.s32.totalorder %s161, %s162
      %p174 = scmp.eq.s32.totalorder %s42, 1
      %p175 = por %p173, %p174
      %p177 = scmp.ne.s32.totalorder %s162, %s176
      %p178 = scmp.eq.s32.totalorder %s42, 0
      %p179 = por %p177, %p178
      %s181 = sadd.s32 %s180, 1
      %p184 = scmp.eq.s32.totalorder %s36, 1
      %p185 = scmp.ne.s32.totalorder %s180, %s182
      %p186 = scmp.eq.s32.totalorder %s36, 0
      %p187 = por %p185, %p186
      %p188 = scmp.ne.s32.totalorder %s180, %s182
      %p189 = scmp.eq.s32.totalorder %s41, 1
      %p190 = por %p188, %p189
      %p191 = scmp.ne.s32.totalorder %s182, %s183
      %p192 = scmp.eq.s32.totalorder %s41, 0
      %p193 = por %p191, %p192
      %p194 = scmp.ne.s32.totalorder %s182, %s183
      %p195 = scmp.eq.s32.totalorder %s42, 1
      %p196 = por %p194, %p195
      %p198 = scmp.ne.s32.totalorder %s183, %s197
      %p199 = scmp.eq.s32.totalorder %s42, 0
      %p200 = por %p198, %p199
      %s202 = sadd.s32 %s201, 1
      %p205 = scmp.eq.s32.totalorder %s36, 1
      %p206 = scmp.ne.s32.totalorder %s201, %s203
      %p207 = scmp.eq.s32.totalorder %s36, 0
      %p208 = por %p206, %p207
      %p209 = scmp.ne.s32.totalorder %s201, %s203
      %p210 = scmp.eq.s32.totalorder %s41, 1
      %p211 = por %p209, %p210
      %p212 = scmp.ne.s32.totalorder %s203, %s204
      %p213 = scmp.eq.s32.totalorder %s41, 0
      %p214 = por %p212, %p213
      %p215 = scmp.ne.s32.totalorder %s203, %s204
      %p216 = scmp.eq.s32.totalorder %s42, 1
      %p217 = por %p215, %p216
      %p219 = scmp.ne.s32.totalorder %s204, %s218
      %p220 = scmp.eq.s32.totalorder %s42, 0
      %p221 = por %p219, %p220
      %s223 = sadd.s32 %s222, 1
      %p226 = scmp.eq.s32.totalorder %s36, 1
      %p227 = scmp.ne.s32.totalorder %s222, %s224
      %p228 = scmp.eq.s32.totalorder %s36, 0
      %p229 = por %p227, %p228
      %p230 = scmp.ne.s32.totalorder %s222, %s224
      %p231 = scmp.eq.s32.totalorder %s41, 1
      %p232 = por %p230, %p231
      %p233 = scmp.ne.s32.totalorder %s224, %s225
      %p234 = scmp.eq.s32.totalorder %s41, 0
      %p235 = por %p233, %p234
      %p236 = scmp.ne.s32.totalorder %s224, %s225
      %p237 = scmp.eq.s32.totalorder %s42, 1
      %p238 = por %p236, %p237
      %p240 = scmp.ne.s32.totalorder %s225, %s239
      %p241 = scmp.eq.s32.totalorder %s42, 0
      %p242 = por %p240, %p241
      %s244 = sadd.s32 %s243, 1
      %p247 = scmp.eq.s32.totalorder %s36, 1
      %p248 = scmp.ne.s32.totalorder %s243, %s245
      %p249 = scmp.eq.s32.totalorder %s36, 0
      %p250 = por %p248, %p249
      %p251 = scmp.ne.s32.totalorder %s243, %s245
      %p252 = scmp.eq.s32.totalorder %s41, 1
      %p253 = por %p251, %p252
      %p254 = scmp.ne.s32.totalorder %s245, %s246
      %p255 = scmp.eq.s32.totalorder %s41, 0
      %p256 = por %p254, %p255
      %p257 = scmp.ne.s32.totalorder %s245, %s246
      %p258 = scmp.eq.s32.totalorder %s42, 1
      %p259 = por %p257, %p258
      %p261 = scmp.ne.s32.totalorder %s246, %s260
      %p262 = scmp.eq.s32.totalorder %s42, 0
      %p263 = por %p261, %p262
      %s265 = sadd.s32 %s264, 1
      %p268 = scmp.eq.s32.totalorder %s36, 1
      %p269 = scmp.ne.s32.totalorder %s264, %s266
      %p270 = scmp.eq.s32.totalorder %s36, 0
      %p271 = por %p269, %p270
      %p272 = scmp.ne.s32.totalorder %s264, %s266
      %p273 = scmp.eq.s32.totalorder %s41, 1
      %p274 = por %p272, %p273
      %p275 = scmp.ne.s32.totalorder %s266, %s267
      %p276 = scmp.eq.s32.totalorder %s41, 0
      %p277 = por %p275, %p276
      %p278 = scmp.ne.s32.totalorder %s266, %s267
      %p279 = scmp.eq.s32.totalorder %s42, 1
      %p280 = por %p278, %p279
      %p282 = scmp.ne.s32.totalorder %s267, %s281
      %p283 = scmp.eq.s32.totalorder %s42, 0
      %p284 = por %p282, %p283
      %s286 = sadd.s32 %s285, 1
      %p289 = scmp.eq.s32.totalorder %s36, 1
      %p290 = scmp.ne.s32.totalorder %s285, %s287
      %p291 = scmp.eq.s32.totalorder %s36, 0
      %p292 = por %p290, %p291
      %p293 = scmp.ne.s32.totalorder %s285, %s287
      %p294 = scmp.eq.s32.totalorder %s41, 1
      %p295 = por %p293, %p294
      %p296 = scmp.ne.s32.totalorder %s287, %s288
      %p297 = scmp.eq.s32.totalorder %s41, 0
      %p298 = por %p296, %p297
      %p299 = scmp.ne.s32.totalorder %s287, %s288
      %p300 = scmp.eq.s32.totalorder %s42, 1
      %p301 = por %p299, %p300
      %p303 = scmp.ne.s32.totalorder %s288, %s302
      %p304 = scmp.eq.s32.totalorder %s42, 0
      %p305 = por %p303, %p304
      %s307 = sadd.s32 %s306, 1
      %p310 = scmp.eq.s32.totalorder %s36, 1
      %p311 = scmp.ne.s32.totalorder %s306, %s308
      %p312 = scmp.eq.s32.totalorder %s36, 0
      %p313 = por %p311, %p312
      %p314 = scmp.ne.s32.totalorder %s306, %s308
      %p315 = scmp.eq.s32.totalorder %s41, 1
      %p316 = por %p314, %p315
      %p317 = scmp.ne.s32.totalorder %s308, %s309
      %p318 = scmp.eq.s32.totalorder %s41, 0
      %p319 = por %p317, %p318
      %p320 = scmp.ne.s32.totalorder %s308, %s309
      %p321 = scmp.eq.s32.totalorder %s42, 1
      %p322 = por %p320, %p321
      %p324 = scmp.ne.s32.totalorder %s309, %s323
      %p325 = scmp.eq.s32.totalorder %s42, 0
      %p326 = por %p324, %p325
      %s328 = sadd.s32 %s327, 1
      %p331 = scmp.eq.s32.totalorder %s36, 1
      %p332 = scmp.ne.s32.totalorder %s327, %s329
      %p333 = scmp.eq.s32.totalorder %s36, 0
      %p334 = por %p332, %p333
      %p335 = scmp.ne.s32.totalorder %s327, %s329
      %p336 = scmp.eq.s32.totalorder %s41, 1
      %p337 = por %p335, %p336
      %p338 = scmp.ne.s32.totalorder %s329, %s330
      %p339 = scmp.eq.s32.totalorder %s41, 0
      %p340 = por %p338, %p339
      %p341 = scmp.ne.s32.totalorder %s329, %s330
      %p342 = scmp.eq.s32.totalorder %s42, 1
      %p343 = por %p341, %p342
      %p345 = scmp.ne.s32.totalorder %s330, %s344
      %p346 = scmp.eq.s32.totalorder %s42, 0
      %p347 = por %p345, %p346
      %s349 = sadd.s32 %s348, 1
      %p352 = scmp.eq.s32.totalorder %s36, 1
      %p353 = scmp.ne.s32.totalorder %s348, %s350
      %p354 = scmp.eq.s32.totalorder %s36, 0
      %p355 = por %p353, %p354
      %p356 = scmp.ne.s32.totalorder %s348, %s350
      %p357 = scmp.eq.s32.totalorder %s41, 1
      %p358 = por %p356, %p357
      %p359 = scmp.ne.s32.totalorder %s350, %s351
      %p360 = scmp.eq.s32.totalorder %s41, 0
      %p361 = por %p359, %p360
      %p362 = scmp.ne.s32.totalorder %s350, %s351
      %p363 = scmp.eq.s32.totalorder %s42, 1
      %p364 = por %p362, %p363
      %p366 = scmp.ne.s32.totalorder %s351, %s365
      %p367 = scmp.eq.s32.totalorder %s42, 0
      %p368 = por %p366, %p367
      %s370 = sadd.s32 %s369, 1
      %p373 = scmp.eq.s32.totalorder %s36, 1
      %p374 = scmp.ne.s32.totalorder %s369, %s371
      %p375 = scmp.eq.s32.totalorder %s36, 0
      %p376 = por %p374, %p375
      %p377 = scmp.ne.s32.totalorder %s369, %s371
      %p378 = scmp.eq.s32.totalorder %s41, 1
      %p379 = por %p377, %p378
      %p380 = scmp.ne.s32.totalorder %s371, %s372
      %p381 = scmp.eq.s32.totalorder %s41, 0
      %p382 = por %p380, %p381
      %p383 = scmp.ne.s32.totalorder %s371, %s372
      %p384 = scmp.eq.s32.totalorder %s42, 1
      %p385 = por %p383, %p384
      %p387 = scmp.ne.s32.totalorder %s372, %s386
      %p388 = scmp.eq.s32.totalorder %s42, 0
      %p389 = por %p387, %p388
      %s391 = sadd.s32 %s390, 1
      %p394 = scmp.eq.s32.totalorder %s36, 1
      %p395 = scmp.ne.s32.totalorder %s390, %s392
      %p396 = scmp.eq.s32.totalorder %s36, 0
      %p397 = por %p395, %p396
      %p398 = scmp.ne.s32.totalorder %s390, %s392
      %p399 = scmp.eq.s32.totalorder %s41, 1
      %p400 = por %p398, %p399
      %p401 = scmp.ne.s32.totalorder %s392, %s393
      %p402 = scmp.eq.s32.totalorder %s41, 0
      %p403 = por %p401, %p402
      %p404 = scmp.ne.s32.totalorder %s392, %s393
      %p405 = scmp.eq.s32.totalorder %s42, 1
      %p406 = por %p404, %p405
      %p408 = scmp.ne.s32.totalorder %s393, %s407
      %p409 = scmp.eq.s32.totalorder %s42, 0
      %p410 = por %p408, %p409
      %s412 = sadd.s32 %s411, 1
      %p415 = scmp.eq.s32.totalorder %s36, 1
      %p416 = scmp.ne.s32.totalorder %s411, %s413
      %p417 = scmp.eq.s32.totalorder %s36, 0
      %p418 = por %p416, %p417
      %p419 = scmp.ne.s32.totalorder %s411, %s413
      %p420 = scmp.eq.s32.totalorder %s41, 1
      %p421 = por %p419, %p420
      %p422 = scmp.ne.s32.totalorder %s413, %s414
      %p423 = scmp.eq.s32.totalorder %s41, 0
      %p424 = por %p422, %p423
      %p425 = scmp.ne.s32.totalorder %s413, %s414
      %p426 = scmp.eq.s32.totalorder %s42, 1
      %p427 = por %p425, %p426
      %p429 = scmp.ne.s32.totalorder %s414, %s428
      %p430 = scmp.eq.s32.totalorder %s42, 0
      %p431 = por %p429, %p430
      %s432 = ssub.s32 %s36, %s43
      %p433 = scmp.eq.s32.totalorder %s432, 0
      %s435 = sadd.s32 %s434, 1
      %s436 = scalar_select %p433, %s434, %s435
      %p439 = pneg %p433
      %p440 = scmp.eq.s32.totalorder %s36, 1
      %p441 = por %p439, %p440
      %p442 = scmp.ne.s32.totalorder %s434, %s437
      %p443 = scmp.eq.s32.totalorder %s36, 0
      %p444 = por %p442, %p443
      %p445 = scmp.ne.s32.totalorder %s434, %s437
      %p446 = scmp.eq.s32.totalorder %s41, 1
      %p447 = por %p445, %p446
      %p448 = scmp.ne.s32.totalorder %s437, %s438
      %p449 = scmp.eq.s32.totalorder %s41, 0
      %p450 = por %p448, %p449
      %p451 = scmp.ne.s32.totalorder %s437, %s438
      %p452 = scmp.eq.s32.totalorder %s42, 1
      %p453 = por %p451, %p452
      %p455 = scmp.ne.s32.totalorder %s438, %s454
      %p456 = scmp.eq.s32.totalorder %s42, 0
      %p457 = por %p455, %p456
      %s458 = ssub.s32 %s36, %s43
      %p459 = scmp.eq.s32.totalorder %s458, 0
      %s461 = sadd.s32 %s460, 1
      %s462 = scalar_select %p459, %s460, %s461
      %p465 = pneg %p459
      %p466 = scmp.eq.s32.totalorder %s36, 1
      %p467 = por %p465, %p466
      %p468 = scmp.ne.s32.totalorder %s460, %s463
      %p469 = scmp.eq.s32.totalorder %s36, 0
      %p470 = por %p468, %p469
      %p471 = scmp.ne.s32.totalorder %s460, %s463
      %p472 = scmp.eq.s32.totalorder %s41, 1
      %p473 = por %p471, %p472
      %p474 = scmp.ne.s32.totalorder %s463, %s464
      %p475 = scmp.eq.s32.totalorder %s41, 0
      %p476 = por %p474, %p475
      %p477 = scmp.ne.s32.totalorder %s463, %s464
      %p478 = scmp.eq.s32.totalorder %s42, 1
      %p479 = por %p477, %p478
      %p481 = scmp.ne.s32.totalorder %s464, %s480
      %p482 = scmp.eq.s32.totalorder %s42, 0
      %p483 = por %p481, %p482
      %p484 = scmp.le.s32.totalorder 1, %s36
      %p485 = scmp.lt.s32.totalorder %s36, 3
      %p486 = pnand %p484, %p485
      %p487 = pneg %p486
      // Predicated region
      $region9: #{tpu_custom_call.1} parent=5 // pred_check
        _
      $region10: #{tpu_custom_call.1} parent=5 // pred_check_branch
        %489 = sbr.rel (%p486) target = $region12
      $region11: #{tpu_custom_call.1} parent=5 // pred_region
        %s490 = ssub.s32 %s36, 1
        // Predicated region
        $region13: #{tpu_custom_call.1} parent=11 // pred_check
          %p491 = pneg %p109
        $region14: #{tpu_custom_call.1} parent=11 // pred_check_branch
          %493 = sbr.rel (%p491) target = $region16
        $region15: #{tpu_custom_call.1} parent=11 // pred_region
          _
        $region16: #{tpu_custom_call.1} parent=11 // pred_fallthru
          _
        // Predicated region
        $region17: #{tpu_custom_call.1} parent=11 // pred_check
          %p494 = pneg %p130
        $region18: #{tpu_custom_call.1} parent=11 // pred_check_branch
          %496 = sbr.rel (%p494) target = $region20
        $region19: #{tpu_custom_call.1} parent=11 // pred_region
          %s498 = ssub.s32 16, 16
          %499 = vsyncadd [#allocation3], %s498
          %s501 = sshll.u32 [#allocation2], 4
          %s502 = int_to_ptr.vmem [resolvable:$true] %s501
          %504 = dma.hbm_to_vmem [thread:$0]  %s3, 16, %s502, [#allocation3]
        $region20: #{tpu_custom_call.1} parent=11 // pred_fallthru
          _
        // Predicated region
        $region21: #{tpu_custom_call.1} parent=11 // pred_check
          %p505 = pneg %p151
        $region22: #{tpu_custom_call.1} parent=11 // pred_check_branch
          %507 = sbr.rel (%p505) target = $region24
        $region23: #{tpu_custom_call.1} parent=11 // pred_region
          _
        $region24: #{tpu_custom_call.1} parent=11 // pred_fallthru
          _
        // Predicated region
        $region25: #{tpu_custom_call.1} parent=11 // pred_check
          %p508 = pneg %p172
        $region26: #{tpu_custom_call.1} parent=11 // pred_check_branch
          %510 = sbr.rel (%p508) target = $region28
        $region27: #{tpu_custom_call.1} parent=11 // pred_region
          %s512 = ssub.s32 16, 16
          %513 = vsyncadd [#allocation6], %s512
          %s515 = sshll.u32 [#allocation5], 4
          %s516 = int_to_ptr.vmem [resolvable:$true] %s515
          %518 = dma.hbm_to_vmem [thread:$0]  %s5, 16, %s516, [#allocation6]
        $region28: #{tpu_custom_call.1} parent=11 // pred_fallthru
          _
        // Predicated region
        $region29: #{tpu_custom_call.1} parent=11 // pred_check
          %p519 = pneg %p193
        $region30: #{tpu_custom_call.1} parent=11 // pred_check_branch
          %521 = sbr.rel (%p519) target = $region32
        $region31: #{tpu_custom_call.1} parent=11 // pred_region
          %s523 = ssub.s32 256, 256
          %524 = vsyncadd [#allocation6], %s523
          %s525 = sshll.u32 [#allocation7], 4
          %s526 = int_to_ptr.vmem [resolvable:$true] %s525
          %531 = dma.hbm_to_vmem [thread:$0]  %s6, 256, %s526, [#allocation6], 64, 64, 4
        $region32: #{tpu_custom_call.1} parent=11 // pred_fallthru
          _
        // Predicated region
        $region33: #{tpu_custom_call.1} parent=11 // pred_check
          %p532 = pneg %p214
        $region34: #{tpu_custom_call.1} parent=11 // pred_check_branch
          %534 = sbr.rel (%p532) target = $region36
        $region35: #{tpu_custom_call.1} parent=11 // pred_region
          %s536 = ssub.s32 16, 16
          %537 = vsyncadd [#allocation9], %s536
          %s539 = sshll.u32 [#allocation8], 4
          %s540 = int_to_ptr.vmem [resolvable:$true] %s539
          %542 = dma.hbm_to_vmem [thread:$0]  %s7, 16, %s540, [#allocation9]
        $region36: #{tpu_custom_call.1} parent=11 // pred_fallthru
          _
        // Predicated region
        $region37: #{tpu_custom_call.1} parent=11 // pred_check
          %p543 = pneg %p235
        $region38: #{tpu_custom_call.1} parent=11 // pred_check_branch
          %545 = sbr.rel (%p543) target = $region40
        $region39: #{tpu_custom_call.1} parent=11 // pred_region
          %s547 = ssub.s32 256, 256
          %548 = vsyncadd [#allocation9], %s547
          %s549 = sshll.u32 [#allocation10], 4
          %s550 = int_to_ptr.vmem [resolvable:$true] %s549
          %555 = dma.hbm_to_vmem [thread:$0]  %s8, 256, %s550, [#allocation9], 64, 64, 4
        $region40: #{tpu_custom_call.1} parent=11 // pred_fallthru
          _
        // Predicated region
        $region41: #{tpu_custom_call.1} parent=11 // pred_check
          %p556 = pneg %p256
        $region42: #{tpu_custom_call.1} parent=11 // pred_check_branch
          %558 = sbr.rel (%p556) target = $region44
        $region43: #{tpu_custom_call.1} parent=11 // pred_region
          %s560 = ssub.s32 16, 16
          %561 = vsyncadd [#allocation12], %s560
          %s563 = sshll.u32 [#allocation11], 4
          %s564 = int_to_ptr.vmem [resolvable:$true] %s563
          %566 = dma.hbm_to_vmem [thread:$0]  %s9, 16, %s564, [#allocation12]
        $region44: #{tpu_custom_call.1} parent=11 // pred_fallthru
          _
        // Predicated region
        $region45: #{tpu_custom_call.1} parent=11 // pred_check
          %p567 = pneg %p277
        $region46: #{tpu_custom_call.1} parent=11 // pred_check_branch
          %569 = sbr.rel (%p567) target = $region48
        $region47: #{tpu_custom_call.1} parent=11 // pred_region
          _
        $region48: #{tpu_custom_call.1} parent=11 // pred_fallthru
          _
        // Predicated region
        $region49: #{tpu_custom_call.1} parent=11 // pred_check
          %p570 = pneg %p298
        $region50: #{tpu_custom_call.1} parent=11 // pred_check_branch
          %572 = sbr.rel (%p570) target = $region52
        $region51: #{tpu_custom_call.1} parent=11 // pred_region
          _
        $region52: #{tpu_custom_call.1} parent=11 // pred_fallthru
          _
        // Predicated region
        $region53: #{tpu_custom_call.1} parent=11 // pred_check
          %p573 = pneg %p319
        $region54: #{tpu_custom_call.1} parent=11 // pred_check_branch
          %575 = sbr.rel (%p573) target = $region56
        $region55: #{tpu_custom_call.1} parent=11 // pred_region
          _
        $region56: #{tpu_custom_call.1} parent=11 // pred_fallthru
          _
        // Predicated region
        $region57: #{tpu_custom_call.1} parent=11 // pred_check
          %p576 = pneg %p340
        $region58: #{tpu_custom_call.1} parent=11 // pred_check_branch
          %578 = sbr.rel (%p576) target = $region60
        $region59: #{tpu_custom_call.1} parent=11 // pred_region
          _
        $region60: #{tpu_custom_call.1} parent=11 // pred_fallthru
          _
        // Predicated region
        $region61: #{tpu_custom_call.1} parent=11 // pred_check
          %p579 = pneg %p361
        $region62: #{tpu_custom_call.1} parent=11 // pred_check_branch
          %581 = sbr.rel (%p579) target = $region64
        $region63: #{tpu_custom_call.1} parent=11 // pred_region
          _
        $region64: #{tpu_custom_call.1} parent=11 // pred_fallthru
          _
        // Predicated region
        $region65: #{tpu_custom_call.1} parent=11 // pred_check
          %p582 = pneg %p382
        $region66: #{tpu_custom_call.1} parent=11 // pred_check_branch
          %584 = sbr.rel (%p582) target = $region68
        $region67: #{tpu_custom_call.1} parent=11 // pred_region
          _
        $region68: #{tpu_custom_call.1} parent=11 // pred_fallthru
          _
        // Predicated region
        $region69: #{tpu_custom_call.1} parent=11 // pred_check
          %p585 = pneg %p403
        $region70: #{tpu_custom_call.1} parent=11 // pred_check_branch
          %587 = sbr.rel (%p585) target = $region72
        $region71: #{tpu_custom_call.1} parent=11 // pred_region
          _
        $region72: #{tpu_custom_call.1} parent=11 // pred_fallthru
          _
        // Predicated region
        $region73: #{tpu_custom_call.1} parent=11 // pred_check
          %p588 = pneg %p424
        $region74: #{tpu_custom_call.1} parent=11 // pred_check_branch
          %590 = sbr.rel (%p588) target = $region76
        $region75: #{tpu_custom_call.1} parent=11 // pred_region
          _
        $region76: #{tpu_custom_call.1} parent=11 // pred_fallthru
          _
      $region12: #{tpu_custom_call.1} parent=5 // pred_fallthru
        _
      %p591 = scmp.lt.s32.totalorder %s36, 2
      // Predicated region
      $region77: #{tpu_custom_call.1} parent=5 // pred_check
        %p592 = pneg %p591
      $region78: #{tpu_custom_call.1} parent=5 // pred_check_branch
        %594 = sbr.rel (%p592) target = $region80
      $region79: #{tpu_custom_call.1} parent=5 // pred_region
        // Predicated region
        $region81: #{tpu_custom_call.1} parent=79 // pred_check
          %p595 = pneg %p56
        $region82: #{tpu_custom_call.1} parent=79 // pred_check_branch
          %597 = sbr.rel (%p595) target = $region84
        $region83: #{tpu_custom_call.1} parent=79 // pred_region
          %p598 = scmp.lt.s32.totalorder %s36, 1
          %s599 = scalar_select %p598, %s36, 1
          %s600 = smul.addr %s599, 8
          %s601 = scalar_lea.vmem %s0, %s600
        $region84: #{tpu_custom_call.1} parent=79 // pred_fallthru
          _
        // Predicated region
        $region85: #{tpu_custom_call.1} parent=79 // pred_check
          %p602 = pneg %p82
        $region86: #{tpu_custom_call.1} parent=79 // pred_check_branch
          %604 = sbr.rel (%p602) target = $region88
        $region87: #{tpu_custom_call.1} parent=79 // pred_region
          %p605 = scmp.lt.s32.totalorder %s36, 1
          %s606 = scalar_select %p605, %s36, 1
          %s607 = scalar_lea.vmem %s1, %s606
        $region88: #{tpu_custom_call.1} parent=79 // pred_fallthru
          _
      $region80: #{tpu_custom_call.1} parent=5 // pred_fallthru
        _
      %p608 = scmp.le.s32.totalorder 1, %s36
      %p609 = scmp.lt.s32.totalorder %s36, 3
      %p610 = pnand %p608, %p609
      %p611 = pneg %p610
      // Predicated region
      $region89: #{tpu_custom_call.1} parent=5 // pred_check
        _
      $region90: #{tpu_custom_call.1} parent=5 // pred_check_branch
        %613 = sbr.rel (%p610) target = $region92
      $region91: #{tpu_custom_call.1} parent=5 // pred_region
        %s614 = ssub.s32 %s36, 1
        // Predicated region
        $region93: #{tpu_custom_call.1} parent=91 // pred_check
          %p615 = pneg %p130
        $region94: #{tpu_custom_call.1} parent=91 // pred_check_branch
          %617 = sbr.rel (%p615) target = $region96
        $region95: #{tpu_custom_call.1} parent=91 // pred_region
          %618 = dma.done [#allocation3], 16
        $region96: #{tpu_custom_call.1} parent=91 // pred_fallthru
          _
        // Predicated region
        $region97: #{tpu_custom_call.1} parent=91 // pred_check
          %p619 = pneg %p172
        $region98: #{tpu_custom_call.1} parent=91 // pred_check_branch
          %621 = sbr.rel (%p619) target = $region100
        $region99: #{tpu_custom_call.1} parent=91 // pred_region
          %622 = dma.done [#allocation6], 16
        $region100: #{tpu_custom_call.1} parent=91 // pred_fallthru
          _
        // Predicated region
        $region101: #{tpu_custom_call.1} parent=91 // pred_check
          %p623 = pneg %p193
        $region102: #{tpu_custom_call.1} parent=91 // pred_check_branch
          %625 = sbr.rel (%p623) target = $region104
        $region103: #{tpu_custom_call.1} parent=91 // pred_region
          %626 = dma.done [#allocation6], 256
        $region104: #{tpu_custom_call.1} parent=91 // pred_fallthru
          _
        // Predicated region
        $region105: #{tpu_custom_call.1} parent=91 // pred_check
          %p627 = pneg %p214
        $region106: #{tpu_custom_call.1} parent=91 // pred_check_branch
          %629 = sbr.rel (%p627) target = $region108
        $region107: #{tpu_custom_call.1} parent=91 // pred_region
          %630 = dma.done [#allocation9], 16
        $region108: #{tpu_custom_call.1} parent=91 // pred_fallthru
          _
        // Predicated region
        $region109: #{tpu_custom_call.1} parent=91 // pred_check
          %p631 = pneg %p235
        $region110: #{tpu_custom_call.1} parent=91 // pred_check_branch
          %633 = sbr.rel (%p631) target = $region112
        $region111: #{tpu_custom_call.1} parent=91 // pred_region
          %634 = dma.done [#allocation9], 256
        $region112: #{tpu_custom_call.1} parent=91 // pred_fallthru
          _
        // Predicated region
        $region113: #{tpu_custom_call.1} parent=91 // pred_check
          %p635 = pneg %p256
        $region114: #{tpu_custom_call.1} parent=91 // pred_check_branch
          %637 = sbr.rel (%p635) target = $region116
        $region115: #{tpu_custom_call.1} parent=91 // pred_region
          %638 = dma.done [#allocation12], 16
        $region116: #{tpu_custom_call.1} parent=91 // pred_fallthru
          _
        %p639 = scmp.lt.s32.totalorder %s41, 1
        %s640 = scalar_select %p639, %s41, 1
        %s641 = smul.addr %s640, 8
        %s642 = scalar_lea.vmem %s0, %s641
        %p643 = pneg %p62
        %p644 = pneg %p59
        %p645 = scmp.lt.s32.totalorder %s41, 1
        %s646 = scalar_select %p645, %s41, 1
        %s647 = scalar_lea.vmem %s1, %s646
        %p648 = pneg %p88
        %p649 = pneg %p85
        %p650 = pneg %p109
        %p651 = pneg %p106
        %p652 = pneg %p130
        %p653 = pneg %p127
        %p654 = pneg %p151
        %p655 = pneg %p148
        %p656 = pneg %p172
        %p657 = pneg %p169
        %p658 = pneg %p193
        %p659 = pneg %p190
        %p660 = pneg %p214
        %p661 = pneg %p211
        %p662 = pneg %p235
        %p663 = pneg %p232
        %p664 = pneg %p256
        %p665 = pneg %p253
        %p666 = pneg %p277
        %p667 = pneg %p274
        %p668 = pneg %p298
        %p669 = pneg %p295
        %p670 = pneg %p319
        %p671 = pneg %p316
        %p672 = pneg %p340
        %p673 = pneg %p337
        %p674 = pneg %p361
        %p675 = pneg %p358
        %p676 = pneg %p382
        %p677 = pneg %p379
        %p678 = pneg %p403
        %p679 = pneg %p400
        %p680 = pneg %p424
        %p681 = pneg %p421
        %p682 = pneg %p450
        %p683 = pneg %p447
        %s684 = sand.u32 %s437, 1
        %s685 = scalar_lea.sflag [#allocation4], %s684
        %s686 = sand.u32 %s437, 1
        %s687 = smul.addr %s686, 8
        %s688 = scalar_lea.vmem [#allocation13], %s687
        %p689 = pneg %p476
        %p690 = pneg %p473
        %s691 = sand.u32 %s463, 1
        %s692 = scalar_lea.sflag [#allocation15], %s691
        %s693 = sand.u32 %s463, 1
        %s694 = smul.addr %s693, 32
        %s695 = scalar_lea.vmem [#allocation14], %s694
        %p696 = scmp.lt.s32.totalorder %s41, 1
        %s697 = scalar_select %p696, %s41, 1
        %s698 = smul.addr %s697, 8
        %s699 = scalar_lea.vmem %s0, %s698
        %p700 = scmp.lt.s32.totalorder %s41, 1
        %s701 = scalar_select %p700, %s41, 1
        %s702 = scalar_lea.vmem %s1, %s701
        %v704 = vld [vmem:[%s699] sm:$0xff]
        %v705 = vpack.c.bf16 %v704, %v704
        %v706 = vld [vmem:[%s2] sm:$0xf]
        %v707 = vld [vmem:[%s2 + $0x4] sm:$0xf]
        %v708 = vld [vmem:[%s2 + $0x8] sm:$0xf]
        %v709 = vld [vmem:[%s2 + $0xc] sm:$0xf]
        %v710 = vld [vmem:[#allocation2] sm:$0x1]
        %v712 = vlaneseq
        %v713 = vshrl.u32 %v712, 7
        %v714 = vsub.s32 0, %v713
        %v715 = vrot.slane %v710, %v714
        %v721 = vunpack.c.l.b16 %v706
        %v722 = vunpack.c.l.b16 %v707
        %v723 = vunpack.c.l.b16 %v708
        %v724 = vunpack.c.l.b16 %v709
        %v725 = vpack.c.b16 %v722, %v721
        %v726 = vpack.c.b16 %v724, %v723
        %vm729 = vcmask 261120
        %v731 = vsel %vm729, %v705, 0
        %733 = vmatprep.subr.bf16.mxu0 0
        %734 = vmatpush1.bf16.msra.mxu0 %v725
        %735 = vmatprep.subr.bf16.mxu0 0
        %736 = vmatpush1.bf16.msra.mxu0 %v726
        %737 = vmatprep.subr.bf16.mxu0 0
        %738 = vmatpush1.bf16.msra.mxu0 0
        %739 = vmatprep.subr.bf16.mxu0 0
        %740 = vmatpush1.bf16.msra.mxu0 0
        %741 = vmatprep.subr.bf16.mxu0 0
        %742 = vmatpush1.bf16.msra.mxu0 0
        %743 = vmatprep.subr.bf16.mxu0 0
        %744 = vmatpush1.bf16.msra.mxu0 0
        %745 = vmatprep.subr.bf16.mxu0 0
        %746 = vmatpush1.bf16.msra.mxu0 0
        %747 = vmatprep.subr.bf16.mxu0 0
        %748 = vmatpush1.bf16.msra.mxu0 0
        %749 = vmatprep.subr.bf16.mxu0 0
        %750 = vmatpush1.bf16.msra.mxu0 0
        %751 = vmatprep.subr.bf16.mxu0 0
        %752 = vmatpush1.bf16.msra.mxu0 0
        %753 = vmatprep.subr.bf16.mxu0 0
        %754 = vmatpush1.bf16.msra.mxu0 0
        %755 = vmatprep.subr.bf16.mxu0 0
        %756 = vmatpush1.bf16.msra.mxu0 0
        %757 = vmatprep.subr.bf16.mxu0 0
        %758 = vmatpush1.bf16.msra.mxu0 0
        %759 = vmatprep.subr.bf16.mxu0 0
        %760 = vmatpush1.bf16.msra.mxu0 0
        %761 = vmatprep.subr.bf16.mxu0 0
        %762 = vmatpush1.bf16.msra.mxu0 0
        %763 = vmatprep.subr.bf16.mxu0 0
        %764 = vmatpush1.bf16.msra.mxu0 0
        %765 = vmatprep.mubr.bf16.mxu0 0
        %766 = vmatmul.mubr.bf16.gmra.mrb[0].mxu0 %v731
        %v767 = vpop.f32.mrb[0].mxu0
        %v768 = vadd.f32 %v715, %v767
        %v769 = vpop.f32.mrb[0].mxu0
        %v770 = vpop.f32.mrb[0].mxu0
        %v771 = vpop.f32.mrb[0].mxu0
        %772 = vdwg.mxu0
        %v773 = vld [vmem:[%s4] sm:$0xf]
        %v774 = vld [vmem:[%s4 + $0x4] sm:$0xf]
        %v775 = vld [vmem:[%s4 + $0x8] sm:$0xf]
        %v776 = vld [vmem:[%s4 + $0xc] sm:$0xf]
        %v777 = vld [vmem:[#allocation5] sm:$0x1]
        %v779 = vlaneseq
        %v780 = vshrl.u32 %v779, 7
        %v781 = vsub.s32 0, %v780
        %v782 = vrot.slane %v777, %v781
        %v788 = vunpack.c.l.b16 %v773
        %v789 = vunpack.c.l.b16 %v774
        %v790 = vunpack.c.l.b16 %v775
        %v791 = vunpack.c.l.b16 %v776
        %v792 = vpack.c.b16 %v789, %v788
        %v793 = vpack.c.b16 %v791, %v790
        %796 = vmatprep.subr.bf16.mxu0 0
        %797 = vmatpush1.bf16.msra.mxu0 %v792
        %798 = vmatprep.subr.bf16.mxu0 0
        %799 = vmatpush1.bf16.msra.mxu0 %v793
        %800 = vmatprep.subr.bf16.mxu0 0
        %801 = vmatpush1.bf16.msra.mxu0 0
        %802 = vmatprep.subr.bf16.mxu0 0
        %803 = vmatpush1.bf16.msra.mxu0 0
        %804 = vmatprep.subr.bf16.mxu0 0
        %805 = vmatpush1.bf16.msra.mxu0 0
        %806 = vmatprep.subr.bf16.mxu0 0
        %807 = vmatpush1.bf16.msra.mxu0 0
        %808 = vmatprep.subr.bf16.mxu0 0
        %809 = vmatpush1.bf16.msra.mxu0 0
        %810 = vmatprep.subr.bf16.mxu0 0
        %811 = vmatpush1.bf16.msra.mxu0 0
        %812 = vmatprep.subr.bf16.mxu0 0
        %813 = vmatpush1.bf16.msra.mxu0 0
        %814 = vmatprep.subr.bf16.mxu0 0
        %815 = vmatpush1.bf16.msra.mxu0 0
        %816 = vmatprep.subr.bf16.mxu0 0
        %817 = vmatpush1.bf16.msra.mxu0 0
        %818 = vmatprep.subr.bf16.mxu0 0
        %819 = vmatpush1.bf16.msra.mxu0 0
        %820 = vmatprep.subr.bf16.mxu0 0
        %821 = vmatpush1.bf16.msra.mxu0 0
        %822 = vmatprep.subr.bf16.mxu0 0
        %823 = vmatpush1.bf16.msra.mxu0 0
        %824 = vmatprep.subr.bf16.mxu0 0
        %825 = vmatpush1.bf16.msra.mxu0 0
        %826 = vmatprep.subr.bf16.mxu0 0
        %827 = vmatpush1.bf16.msra.mxu0 0
        %828 = vmatprep.mubr.bf16.mxu0 0
        %829 = vmatmul.mubr.bf16.gmra.mrb[0].mxu0 %v731
        %v830 = vpop.f32.mrb[0].mxu0
        %v831 = vadd.f32 %v782, %v830
        %v832 = vpop.f32.mrb[0].mxu0
        %v833 = vpop.f32.mrb[0].mxu0
        %v834 = vpop.f32.mrb[0].mxu0
        %835 = vdwg.mxu0
        %v836 = vld [vmem:[#allocation7] sm:$0xf]
        %v837 = vld [vmem:[#allocation7 + $0x4] sm:$0xf]
        %v838 = vld [vmem:[#allocation7 + $0x8] sm:$0xf]
        %v839 = vld [vmem:[#allocation7 + $0xc] sm:$0xf]
        %v840 = vld [vmem:[#allocation8] sm:$0x1]
        %v842 = vlaneseq
        %v843 = vshrl.u32 %v842, 7
        %v844 = vsub.s32 0, %v843
        %v845 = vrot.slane %v840, %v844
        %v851 = vunpack.c.l.b16 %v836
        %v852 = vunpack.c.l.b16 %v837
        %v853 = vunpack.c.l.b16 %v838
        %v854 = vunpack.c.l.b16 %v839
        %v855 = vpack.c.b16 %v852, %v851
        %v856 = vpack.c.b16 %v854, %v853
        %859 = vmatprep.subr.bf16.mxu0 0
        %860 = vmatpush1.bf16.msra.mxu0 %v855
        %861 = vmatprep.subr.bf16.mxu0 0
        %862 = vmatpush1.bf16.msra.mxu0 %v856
        %863 = vmatprep.subr.bf16.mxu0 0
        %864 = vmatpush1.bf16.msra.mxu0 0
        %865 = vmatprep.subr.bf16.mxu0 0
        %866 = vmatpush1.bf16.msra.mxu0 0
        %867 = vmatprep.subr.bf16.mxu0 0
        %868 = vmatpush1.bf16.msra.mxu0 0
        %869 = vmatprep.subr.bf16.mxu0 0
        %870 = vmatpush1.bf16.msra.mxu0 0
        %871 = vmatprep.subr.bf16.mxu0 0
        %872 = vmatpush1.bf16.msra.mxu0 0
        %873 = vmatprep.subr.bf16.mxu0 0
        %874 = vmatpush1.bf16.msra.mxu0 0
        %875 = vmatprep.subr.bf16.mxu0 0
        %876 = vmatpush1.bf16.msra.mxu0 0
        %877 = vmatprep.subr.bf16.mxu0 0
        %878 = vmatpush1.bf16.msra.mxu0 0
        %879 = vmatprep.subr.bf16.mxu0 0
        %880 = vmatpush1.bf16.msra.mxu0 0
        %881 = vmatprep.subr.bf16.mxu0 0
        %882 = vmatpush1.bf16.msra.mxu0 0
        %883 = vmatprep.subr.bf16.mxu0 0
        %884 = vmatpush1.bf16.msra.mxu0 0
        %885 = vmatprep.subr.bf16.mxu0 0
        %886 = vmatpush1.bf16.msra.mxu0 0
        %887 = vmatprep.subr.bf16.mxu0 0
        %888 = vmatpush1.bf16.msra.mxu0 0
        %889 = vmatprep.subr.bf16.mxu0 0
        %890 = vmatpush1.bf16.msra.mxu0 0
        %891 = vmatprep.mubr.bf16.mxu0 0
        %892 = vmatmul.mubr.bf16.gmra.mrb[0].mxu0 %v731
        %v893 = vpop.f32.mrb[0].mxu0
        %v894 = vadd.f32 %v845, %v893
        %v895 = vpop.f32.mrb[0].mxu0
        %v896 = vpop.f32.mrb[0].mxu0
        %v897 = vpop.f32.mrb[0].mxu0
        %898 = vdwg.mxu0
        %v899 = vld [vmem:[%s702] sm:$0x1]
        %vm900 = vcmp.eq.f32.partialorder %v899, 0.0
        %v901 = vsel %vm900, -inf, %v899
        %v902 = vlaneseq
        %v903 = vshrl.u32 %v902, 7
        %v904 = vlaneseq
        %v905 = vand.u32 %v904, 127
        %vm906 = vcmp.ge.s32.totalorder %v903, %v905
        %v907 = vmul.f32 %v768, 0.35355338
        %v908 = vpack.c.bf16 %v907, %v907
        %v909 = vpack.c.bf16 %v831, %v831
        %v910 = vpack.c.bf16 %v894, %v894
        %vm911 = vcmask 64512
        %v913 = vsel %vm911, %v908, 0
        %v916 = vsel %vm911, %v909, 0
        %918 = vmatprep.subr.bf16.mxu0 0
        %919 = vmatpush1.bf16.xpose.msra.mxu0 %v916
        %920 = vmatprep.subr.bf16.mxu0 0
        %921 = vmatpush1.bf16.xpose.msra.mxu0 0
        %922 = vmatprep.subr.bf16.mxu0 0
        %923 = vmatpush1.bf16.xpose.msra.mxu0 0
        %924 = vmatprep.subr.bf16.mxu0 0
        %925 = vmatpush1.bf16.xpose.msra.mxu0 0
        %926 = vmatprep.subr.bf16.mxu0 0
        %927 = vmatpush1.bf16.xpose.msra.mxu0 0
        %928 = vmatprep.subr.bf16.mxu0 0
        %929 = vmatpush1.bf16.xpose.msra.mxu0 0
        %930 = vmatprep.subr.bf16.mxu0 0
        %931 = vmatpush1.bf16.xpose.msra.mxu0 0
        %932 = vmatprep.subr.bf16.mxu0 0
        %933 = vmatpush1.bf16.xpose.msra.mxu0 0
        %934 = vmatprep.subr.bf16.mxu0 0
        %935 = vmatpush1.bf16.xpose.msra.mxu0 0
        %936 = vmatprep.subr.bf16.mxu0 0
        %937 = vmatpush1.bf16.xpose.msra.mxu0 0
        %938 = vmatprep.subr.bf16.mxu0 0
        %939 = vmatpush1.bf16.xpose.msra.mxu0 0
        %940 = vmatprep.subr.bf16.mxu0 0
        %941 = vmatpush1.bf16.xpose.msra.mxu0 0
        %942 = vmatprep.subr.bf16.mxu0 0
        %943 = vmatpush1.bf16.xpose.msra.mxu0 0
        %944 = vmatprep.subr.bf16.mxu0 0
        %945 = vmatpush1.bf16.xpose.msra.mxu0 0
        %946 = vmatprep.subr.bf16.mxu0 0
        %947 = vmatpush1.bf16.xpose.msra.mxu0 0
        %948 = vmatprep.subr.bf16.mxu0 0
        %949 = vmatpush1.bf16.xpose.msra.mxu0 0
        %950 = vmatprep.mubr.bf16.mxu0 0
        %951 = vmatmul.mubr.bf16.gmra.mrb[0].mxu0 %v913
        %v952 = vpop.f32.mrb[0].mxu0
        %v953 = vadd.f32 0.0, %v952
        %v954 = vpop.f32.mrb[0].mxu0
        %v955 = vpop.f32.mrb[0].mxu0
        %v956 = vpop.f32.mrb[0].mxu0
        %957 = vdwg.mxu0
        %958 = vst.msk [vmem:[%s695] sm:$0xff] %vm911, %v953
        %v959 = vsel %vm906, %v953, -4.2949673e+09
        %v961 = vlaneseq
        %v962 = vshrl.u32 %v961, 7
        %v963 = vsub.s32 0, %v962
        %v964 = vrot.slane %v901, %v963
        %v966 = vadd.f32 %v959, %v964
        %v967 = vsel %vm911, %v966, -inf
        %968 = vmax.xlane.f32.xlu0 %v967
        %v969 = vpop.xlane.xlu0 %968
        %v970 = vsub.f32 %v966, %v969
        %v971 = vmul.f32 %v970, 1.442695
        %v972 = vpow.pop %v971
        %v973 = vsel %vm911, %v972, 0.0
        %974 = vadd.xlane.f32.xlu0 %v973
        %v975 = vpop.xlane.xlu0 %974
        %v976 = vrcp.pop %v975
        %v977 = vmul.f32 %v972, %v976
        %v978 = vpack.c.bf16 %v977, %v977
        %v980 = vsel %vm911, %v978, 0
        %vm982 = vcmask 1043456
        %v984 = vsel %vm982, %v910, 0
        %986 = vmatprep.subr.bf16.mxu0 0
        %987 = vmatpush1.bf16.msra.mxu0 %v984
        %988 = vmatprep.subr.bf16.mxu0 0
        %989 = vmatpush1.bf16.msra.mxu0 0
        %990 = vmatprep.subr.bf16.mxu0 0
        %991 = vmatpush1.bf16.msra.mxu0 0
        %992 = vmatprep.subr.bf16.mxu0 0
        %993 = vmatpush1.bf16.msra.mxu0 0
        %994 = vmatprep.subr.bf16.mxu0 0
        %995 = vmatpush1.bf16.msra.mxu0 0
        %996 = vmatprep.subr.bf16.mxu0 0
        %997 = vmatpush1.bf16.msra.mxu0 0
        %998 = vmatprep.subr.bf16.mxu0 0
        %999 = vmatpush1.bf16.msra.mxu0 0
        %1000 = vmatprep.subr.bf16.mxu0 0
        %1001 = vmatpush1.bf16.msra.mxu0 0
        %1002 = vmatprep.subr.bf16.mxu0 0
        %1003 = vmatpush1.bf16.msra.mxu0 0
        %1004 = vmatprep.subr.bf16.mxu0 0
        %1005 = vmatpush1.bf16.msra.mxu0 0
        %1006 = vmatprep.subr.bf16.mxu0 0
        %1007 = vmatpush1.bf16.msra.mxu0 0
        %1008 = vmatprep.subr.bf16.mxu0 0
        %1009 = vmatpush1.bf16.msra.mxu0 0
        %1010 = vmatprep.subr.bf16.mxu0 0
        %1011 = vmatpush1.bf16.msra.mxu0 0
        %1012 = vmatprep.subr.bf16.mxu0 0
        %1013 = vmatpush1.bf16.msra.mxu0 0
        %1014 = vmatprep.subr.bf16.mxu0 0
        %1015 = vmatpush1.bf16.msra.mxu0 0
        %1016 = vmatprep.subr.bf16.mxu0 0
        %1017 = vmatpush1.bf16.msra.mxu0 0
        %1018 = vmatprep.mubr.bf16.mxu0 0
        %1019 = vmatmul.mubr.bf16.gmra.mrb[0].mxu0 %v980
        %v1020 = vpop.f32.mrb[0].mxu0
        %v1021 = vadd.f32 0.0, %v1020
        %v1022 = vpop.f32.mrb[0].mxu0
        %v1023 = vpop.f32.mrb[0].mxu0
        %v1024 = vpop.f32.mrb[0].mxu0
        %1025 = vdwg.mxu0
        %1027 = vrot.lane.b32.xlu0 %v908, 120
        %v1028 = vpop.permute.xlu0 %1027
        %1030 = vrot.lane.b32.xlu0 %v909, 120
        %v1031 = vpop.permute.xlu0 %1030
        %v1033 = vsel %vm911, %v1028, 0
        %v1036 = vsel %vm911, %v1031, 0
        %1038 = vmatprep.subr.bf16.mxu0 0
        %1039 = vmatpush1.bf16.xpose.msra.mxu0 %v1036
        %1040 = vmatprep.subr.bf16.mxu0 0
        %1041 = vmatpush1.bf16.xpose.msra.mxu0 0
        %1042 = vmatprep.subr.bf16.mxu0 0
        %1043 = vmatpush1.bf16.xpose.msra.mxu0 0
        %1044 = vmatprep.subr.bf16.mxu0 0
        %1045 = vmatpush1.bf16.xpose.msra.mxu0 0
        %1046 = vmatprep.subr.bf16.mxu0 0
        %1047 = vmatpush1.bf16.xpose.msra.mxu0 0
        %1048 = vmatprep.subr.bf16.mxu0 0
        %1049 = vmatpush1.bf16.xpose.msra.mxu0 0
        %1050 = vmatprep.subr.bf16.mxu0 0
        %1051 = vmatpush1.bf16.xpose.msra.mxu0 0
        %1052 = vmatprep.subr.bf16.mxu0 0
        %1053 = vmatpush1.bf16.xpose.msra.mxu0 0
        %1054 = vmatprep.subr.bf16.mxu0 0
        %1055 = vmatpush1.bf16.xpose.msra.mxu0 0
        %1056 = vmatprep.subr.bf16.mxu0 0
        %1057 = vmatpush1.bf16.xpose.msra.mxu0 0
        %1058 = vmatprep.subr.bf16.mxu0 0
        %1059 = vmatpush1.bf16.xpose.msra.mxu0 0
        %1060 = vmatprep.subr.bf16.mxu0 0
        %1061 = vmatpush1.bf16.xpose.msra.mxu0 0
        %1062 = vmatprep.subr.bf16.mxu0 0
        %1063 = vmatpush1.bf16.xpose.msra.mxu0 0
        %1064 = vmatprep.subr.bf16.mxu0 0
        %1065 = vmatpush1.bf16.xpose.msra.mxu0 0
        %1066 = vmatprep.subr.bf16.mxu0 0
        %1067 = vmatpush1.bf16.xpose.msra.mxu0 0
        %1068 = vmatprep.subr.bf16.mxu0 0
        %1069 = vmatpush1.bf16.xpose.msra.mxu0 0
        %1070 = vmatprep.mubr.bf16.mxu0 0
        %1071 = vmatmul.mubr.bf16.gmra.mrb[0].mxu0 %v1033
        %v1072 = vpop.f32.mrb[0].mxu0
        %v1073 = vadd.f32 0.0, %v1072
        %v1074 = vpop.f32.mrb[0].mxu0
        %v1075 = vpop.f32.mrb[0].mxu0
        %v1076 = vpop.f32.mrb[0].mxu0
        %1077 = vdwg.mxu0
        %s1078 = scalar_lea.vmem %s695, 8 [#allocation14]
        %1079 = vst.msk [vmem:[%s1078] sm:$0xff] %vm911, %v1073
        %v1080 = vsel %vm906, %v1073, -4.2949673e+09
        %v1081 = vadd.f32 %v1080, %v964
        %v1082 = vsel %vm911, %v1081, -inf
        %1083 = vmax.xlane.f32.xlu0 %v1082
        %v1084 = vpop.xlane.xlu0 %1083
        %v1085 = vsub.f32 %v1081, %v1084
        %v1086 = vmul.f32 %v1085, 1.442695
        %v1087 = vpow.pop %v1086
        %v1088 = vsel %vm911, %v1087, 0.0
        %1089 = vadd.xlane.f32.xlu0 %v1088
        %v1090 = vpop.xlane.xlu0 %1089
        %v1091 = vrcp.pop %v1090
        %v1092 = vmul.f32 %v1087, %v1091
        %v1093 = vpack.c.bf16 %v1092, %v1092
        %1095 = vrot.lane.b32.xlu0 %v910, 120
        %v1096 = vpop.permute.xlu0 %1095
        %v1098 = vsel %vm911, %v1093, 0
        %v1101 = vsel %vm982, %v1096, 0
        %1103 = vmatprep.subr.bf16.mxu0 0
        %1104 = vmatpush1.bf16.msra.mxu0 %v1101
        %1105 = vmatprep.subr.bf16.mxu0 0
        %1106 = vmatpush1.bf16.msra.mxu0 0
        %1107 = vmatprep.subr.bf16.mxu0 0
        %1108 = vmatpush1.bf16.msra.mxu0 0
        %1109 = vmatprep.subr.bf16.mxu0 0
        %1110 = vmatpush1.bf16.msra.mxu0 0
        %1111 = vmatprep.subr.bf16.mxu0 0
        %1112 = vmatpush1.bf16.msra.mxu0 0
        %1113 = vmatprep.subr.bf16.mxu0 0
        %1114 = vmatpush1.bf16.msra.mxu0 0
        %1115 = vmatprep.subr.bf16.mxu0 0
        %1116 = vmatpush1.bf16.msra.mxu0 0
        %1117 = vmatprep.subr.bf16.mxu0 0
        %1118 = vmatpush1.bf16.msra.mxu0 0
        %1119 = vmatprep.subr.bf16.mxu0 0
        %1120 = vmatpush1.bf16.msra.mxu0 0
        %1121 = vmatprep.subr.bf16.mxu0 0
        %1122 = vmatpush1.bf16.msra.mxu0 0
        %1123 = vmatprep.subr.bf16.mxu0 0
        %1124 = vmatpush1.bf16.msra.mxu0 0
        %1125 = vmatprep.subr.bf16.mxu0 0
        %1126 = vmatpush1.bf16.msra.mxu0 0
        %1127 = vmatprep.subr.bf16.mxu0 0
        %1128 = vmatpush1.bf16.msra.mxu0 0
        %1129 = vmatprep.subr.bf16.mxu0 0
        %1130 = vmatpush1.bf16.msra.mxu0 0
        %1131 = vmatprep.subr.bf16.mxu0 0
        %1132 = vmatpush1.bf16.msra.mxu0 0
        %1133 = vmatprep.subr.bf16.mxu0 0
        %1134 = vmatpush1.bf16.msra.mxu0 0
        %1135 = vmatprep.mubr.bf16.mxu0 0
        %1136 = vmatmul.mubr.bf16.gmra.mrb[0].mxu0 %v1098
        %v1137 = vpop.f32.mrb[0].mxu0
        %v1138 = vadd.f32 0.0, %v1137
        %v1139 = vpop.f32.mrb[0].mxu0
        %v1140 = vpop.f32.mrb[0].mxu0
        %v1141 = vpop.f32.mrb[0].mxu0
        %1142 = vdwg.mxu0
        %1143 = vrot.lane.b32.xlu0 %v908, 112
        %v1144 = vpop.permute.xlu0 %1143
        %1145 = vrot.lane.b32.xlu0 %v909, 112
        %v1146 = vpop.permute.xlu0 %1145
        %v1148 = vsel %vm911, %v1144, 0
        %v1151 = vsel %vm911, %v1146, 0
        %1153 = vmatprep.subr.bf16.mxu0 0
        %1154 = vmatpush1.bf16.xpose.msra.mxu0 %v1151
        %1155 = vmatprep.subr.bf16.mxu0 0
        %1156 = vmatpush1.bf16.xpose.msra.mxu0 0
        %1157 = vmatprep.subr.bf16.mxu0 0
        %1158 = vmatpush1.bf16.xpose.msra.mxu0 0
        %1159 = vmatprep.subr.bf16.mxu0 0
        %1160 = vmatpush1.bf16.xpose.msra.mxu0 0
        %1161 = vmatprep.subr.bf16.mxu0 0
        %1162 = vmatpush1.bf16.xpose.msra.mxu0 0
        %1163 = vmatprep.subr.bf16.mxu0 0
        %1164 = vmatpush1.bf16.xpose.msra.mxu0 0
        %1165 = vmatprep.subr.bf16.mxu0 0
        %1166 = vmatpush1.bf16.xpose.msra.mxu0 0
        %1167 = vmatprep.subr.bf16.mxu0 0
        %1168 = vmatpush1.bf16.xpose.msra.mxu0 0
        %1169 = vmatprep.subr.bf16.mxu0 0
        %1170 = vmatpush1.bf16.xpose.msra.mxu0 0
        %1171 = vmatprep.subr.bf16.mxu0 0
        %1172 = vmatpush1.bf16.xpose.msra.mxu0 0
        %1173 = vmatprep.subr.bf16.mxu0 0
        %1174 = vmatpush1.bf16.xpose.msra.mxu0 0
        %1175 = vmatprep.subr.bf16.mxu0 0
        %1176 = vmatpush1.bf16.xpose.msra.mxu0 0
        %1177 = vmatprep.subr.bf16.mxu0 0
        %1178 = vmatpush1.bf16.xpose.msra.mxu0 0
        %1179 = vmatprep.subr.bf16.mxu0 0
        %1180 = vmatpush1.bf16.xpose.msra.mxu0 0
        %1181 = vmatprep.subr.bf16.mxu0 0
        %1182 = vmatpush1.bf16.xpose.msra.mxu0 0
        %1183 = vmatprep.subr.bf16.mxu0 0
        %1184 = vmatpush1.bf16.xpose.msra.mxu0 0
        %1185 = vmatprep.mubr.bf16.mxu0 0
        %1186 = vmatmul.mubr.bf16.gmra.mrb[0].mxu0 %v1148
        %v1187 = vpop.f32.mrb[0].mxu0
        %v1188 = vadd.f32 0.0, %v1187
        %v1189 = vpop.f32.mrb[0].mxu0
        %v1190 = vpop.f32.mrb[0].mxu0
        %v1191 = vpop.f32.mrb[0].mxu0
        %1192 = vdwg.mxu0
        %s1193 = scalar_lea.vmem %s695, 16 [#allocation14]
        %1194 = vst.msk [vmem:[%s1193] sm:$0xff] %vm911, %v1188
        %v1195 = vsel %vm906, %v1188, -4.2949673e+09
        %v1196 = vadd.f32 %v1195, %v964
        %v1197 = vsel %vm911, %v1196, -inf
        %1198 = vmax.xlane.f32.xlu0 %v1197
        %v1199 = vpop.xlane.xlu0 %1198
        %v1200 = vsub.f32 %v1196, %v1199
        %v1201 = vmul.f32 %v1200, 1.442695
        %v1202 = vpow.pop %v1201
        %v1203 = vsel %vm911, %v1202, 0.0
        %1204 = vadd.xlane.f32.xlu0 %v1203
        %v1205 = vpop.xlane.xlu0 %1204
        %v1206 = vrcp.pop %v1205
        %v1207 = vmul.f32 %v1202, %v1206
        %v1208 = vpack.c.bf16 %v1207, %v1207
        %1209 = vrot.lane.b32.xlu0 %v910, 112
        %v1210 = vpop.permute.xlu0 %1209
        %v1212 = vsel %vm911, %v1208, 0
        %v1215 = vsel %vm982, %v1210, 0
        %1217 = vmatprep.subr.bf16.mxu0 0
        %1218 = vmatpush1.bf16.msra.mxu0 %v1215
        %1219 = vmatprep.subr.bf16.mxu0 0
        %1220 = vmatpush1.bf16.msra.mxu0 0
        %1221 = vmatprep.subr.bf16.mxu0 0
        %1222 = vmatpush1.bf16.msra.mxu0 0
        %1223 = vmatprep.subr.bf16.mxu0 0
        %1224 = vmatpush1.bf16.msra.mxu0 0
        %1225 = vmatprep.subr.bf16.mxu0 0
        %1226 = vmatpush1.bf16.msra.mxu0 0
        %1227 = vmatprep.subr.bf16.mxu0 0
        %1228 = vmatpush1.bf16.msra.mxu0 0
        %1229 = vmatprep.subr.bf16.mxu0 0
        %1230 = vmatpush1.bf16.msra.mxu0 0
        %1231 = vmatprep.subr.bf16.mxu0 0
        %1232 = vmatpush1.bf16.msra.mxu0 0
        %1233 = vmatprep.subr.bf16.mxu0 0
        %1234 = vmatpush1.bf16.msra.mxu0 0
        %1235 = vmatprep.subr.bf16.mxu0 0
        %1236 = vmatpush1.bf16.msra.mxu0 0
        %1237 = vmatprep.subr.bf16.mxu0 0
        %1238 = vmatpush1.bf16.msra.mxu0 0
        %1239 = vmatprep.subr.bf16.mxu0 0
        %1240 = vmatpush1.bf16.msra.mxu0 0
        %1241 = vmatprep.subr.bf16.mxu0 0
        %1242 = vmatpush1.bf16.msra.mxu0 0
        %1243 = vmatprep.subr.bf16.mxu0 0
        %1244 = vmatpush1.bf16.msra.mxu0 0
        %1245 = vmatprep.subr.bf16.mxu0 0
        %1246 = vmatpush1.bf16.msra.mxu0 0
        %1247 = vmatprep.subr.bf16.mxu0 0
        %1248 = vmatpush1.bf16.msra.mxu0 0
        %1249 = vmatprep.mubr.bf16.mxu0 0
        %1250 = vmatmul.mubr.bf16.gmra.mrb[0].mxu0 %v1212
        %v1251 = vpop.f32.mrb[0].mxu0
        %v1252 = vadd.f32 0.0, %v1251
        %v1253 = vpop.f32.mrb[0].mxu0
        %v1254 = vpop.f32.mrb[0].mxu0
        %v1255 = vpop.f32.mrb[0].mxu0
        %1256 = vdwg.mxu0
        %1257 = vrot.lane.b32.xlu0 %v908, 104
        %v1258 = vpop.permute.xlu0 %1257
        %1259 = vrot.lane.b32.xlu0 %v909, 104
        %v1260 = vpop.permute.xlu0 %1259
        %v1262 = vsel %vm911, %v1258, 0
        %v1265 = vsel %vm911, %v1260, 0
        %1267 = vmatprep.subr.bf16.mxu0 0
        %1268 = vmatpush1.bf16.xpose.msra.mxu0 %v1265
        %1269 = vmatprep.subr.bf16.mxu0 0
        %1270 = vmatpush1.bf16.xpose.msra.mxu0 0
        %1271 = vmatprep.subr.bf16.mxu0 0
        %1272 = vmatpush1.bf16.xpose.msra.mxu0 0
        %1273 = vmatprep.subr.bf16.mxu0 0
        %1274 = vmatpush1.bf16.xpose.msra.mxu0 0
        %1275 = vmatprep.subr.bf16.mxu0 0
        %1276 = vmatpush1.bf16.xpose.msra.mxu0 0
        %1277 = vmatprep.subr.bf16.mxu0 0
        %1278 = vmatpush1.bf16.xpose.msra.mxu0 0
        %1279 = vmatprep.subr.bf16.mxu0 0
        %1280 = vmatpush1.bf16.xpose.msra.mxu0 0
        %1281 = vmatprep.subr.bf16.mxu0 0
        %1282 = vmatpush1.bf16.xpose.msra.mxu0 0
        %1283 = vmatprep.subr.bf16.mxu0 0
        %1284 = vmatpush1.bf16.xpose.msra.mxu0 0
        %1285 = vmatprep.subr.bf16.mxu0 0
        %1286 = vmatpush1.bf16.xpose.msra.mxu0 0
        %1287 = vmatprep.subr.bf16.mxu0 0
        %1288 = vmatpush1.bf16.xpose.msra.mxu0 0
        %1289 = vmatprep.subr.bf16.mxu0 0
        %1290 = vmatpush1.bf16.xpose.msra.mxu0 0
        %1291 = vmatprep.subr.bf16.mxu0 0
        %1292 = vmatpush1.bf16.xpose.msra.mxu0 0
        %1293 = vmatprep.subr.bf16.mxu0 0
        %1294 = vmatpush1.bf16.xpose.msra.mxu0 0
        %1295 = vmatprep.subr.bf16.mxu0 0
        %1296 = vmatpush1.bf16.xpose.msra.mxu0 0
        %1297 = vmatprep.subr.bf16.mxu0 0
        %1298 = vmatpush1.bf16.xpose.msra.mxu0 0
        %1299 = vmatprep.mubr.bf16.mxu0 0
        %1300 = vmatmul.mubr.bf16.gmra.mrb[0].mxu0 %v1262
        %v1301 = vpop.f32.mrb[0].mxu0
        %v1302 = vadd.f32 0.0, %v1301
        %v1303 = vpop.f32.mrb[0].mxu0
        %v1304 = vpop.f32.mrb[0].mxu0
        %v1305 = vpop.f32.mrb[0].mxu0
        %1306 = vdwg.mxu0
        %s1307 = scalar_lea.vmem %s695, 24 [#allocation14]
        %1308 = vst.msk [vmem:[%s1307] sm:$0xff] %vm911, %v1302
        %v1309 = vsel %vm906, %v1302, -4.2949673e+09
        %v1310 = vadd.f32 %v1309, %v964
        %v1311 = vsel %vm911, %v1310, -inf
        %1312 = vmax.xlane.f32.xlu0 %v1311
        %v1313 = vpop.xlane.xlu0 %1312
        %v1314 = vsub.f32 %v1310, %v1313
        %v1315 = vmul.f32 %v1314, 1.442695
        %v1316 = vpow.pop %v1315
        %v1317 = vsel %vm911, %v1316, 0.0
        %1318 = vadd.xlane.f32.xlu0 %v1317
        %v1319 = vpop.xlane.xlu0 %1318
        %v1320 = vrcp.pop %v1319
        %v1321 = vmul.f32 %v1316, %v1320
        %v1322 = vpack.c.bf16 %v1321, %v1321
        %1323 = vrot.lane.b32.xlu0 %v910, 104
        %v1324 = vpop.permute.xlu0 %1323
        %v1326 = vsel %vm911, %v1322, 0
        %v1329 = vsel %vm982, %v1324, 0
        %1331 = vmatprep.subr.bf16.mxu0 0
        %1332 = vmatpush1.bf16.msra.mxu0 %v1329
        %1333 = vmatprep.subr.bf16.mxu0 0
        %1334 = vmatpush1.bf16.msra.mxu0 0
        %1335 = vmatprep.subr.bf16.mxu0 0
        %1336 = vmatpush1.bf16.msra.mxu0 0
        %1337 = vmatprep.subr.bf16.mxu0 0
        %1338 = vmatpush1.bf16.msra.mxu0 0
        %1339 = vmatprep.subr.bf16.mxu0 0
        %1340 = vmatpush1.bf16.msra.mxu0 0
        %1341 = vmatprep.subr.bf16.mxu0 0
        %1342 = vmatpush1.bf16.msra.mxu0 0
        %1343 = vmatprep.subr.bf16.mxu0 0
        %1344 = vmatpush1.bf16.msra.mxu0 0
        %1345 = vmatprep.subr.bf16.mxu0 0
        %1346 = vmatpush1.bf16.msra.mxu0 0
        %1347 = vmatprep.subr.bf16.mxu0 0
        %1348 = vmatpush1.bf16.msra.mxu0 0
        %1349 = vmatprep.subr.bf16.mxu0 0
        %1350 = vmatpush1.bf16.msra.mxu0 0
        %1351 = vmatprep.subr.bf16.mxu0 0
        %1352 = vmatpush1.bf16.msra.mxu0 0
        %1353 = vmatprep.subr.bf16.mxu0 0
        %1354 = vmatpush1.bf16.msra.mxu0 0
        %1355 = vmatprep.subr.bf16.mxu0 0
        %1356 = vmatpush1.bf16.msra.mxu0 0
        %1357 = vmatprep.subr.bf16.mxu0 0
        %1358 = vmatpush1.bf16.msra.mxu0 0
        %1359 = vmatprep.subr.bf16.mxu0 0
        %1360 = vmatpush1.bf16.msra.mxu0 0
        %1361 = vmatprep.subr.bf16.mxu0 0
        %1362 = vmatpush1.bf16.msra.mxu0 0
        %1363 = vmatprep.mubr.bf16.mxu0 0
        %1364 = vmatmul.mubr.bf16.gmra.mrb[0].mxu0 %v1326
        %v1365 = vpop.f32.mrb[0].mxu0
        %v1366 = vadd.f32 0.0, %v1365
        %v1367 = vpop.f32.mrb[0].mxu0
        %v1368 = vpop.f32.mrb[0].mxu0
        %v1369 = vpop.f32.mrb[0].mxu0
        %1370 = vdwg.mxu0
        %1372 = vrot.lane.b32.xlu0 %v1138, 8
        %v1373 = vpop.permute.xlu0 %1372
        %1376 = vrot.lane.b32.xlu0 %v1252, 16
        %v1377 = vpop.permute.xlu0 %1376
        %1380 = vrot.lane.b32.xlu0 %v1366, 24
        %v1381 = vpop.permute.xlu0 %1380
        %v1383 = vsel %vm911, %v1021, %v1373
        %vm1384 = vcmask 130048
        %v1385 = vsel %vm1384, %v1383, %v1377
        %vm1386 = vcmask 195584
        %v1387 = vsel %vm1386, %v1385, %v1381
        %v1388 = vpack.c.bf16 %v1387, %v1387
        %v1389 = vld [vmem:[#allocation10] sm:$0xf]
        %v1390 = vld [vmem:[#allocation10 + $0x4] sm:$0xf]
        %v1391 = vld [vmem:[#allocation10 + $0x8] sm:$0xf]
        %v1392 = vld [vmem:[#allocation10 + $0xc] sm:$0xf]
        %v1393 = vld [vmem:[#allocation11] sm:$0x1]
        %v1395 = vlaneseq
        %v1396 = vshrl.u32 %v1395, 7
        %v1397 = vsub.s32 0, %v1396
        %v1398 = vrot.slane %v1393, %v1397
        %v1404 = vunpack.c.l.b16 %v1389
        %v1405 = vunpack.c.l.b16 %v1390
        %v1406 = vunpack.c.l.b16 %v1391
        %v1407 = vunpack.c.l.b16 %v1392
        %v1408 = vpack.c.b16 %v1405, %v1404
        %v1409 = vpack.c.b16 %v1407, %v1406
        %v1413 = vsel %vm729, %v1388, 0
        %1415 = vmatprep.subr.bf16.mxu0 0
        %1416 = vmatpush1.bf16.msra.mxu0 %v1408
        %1417 = vmatprep.subr.bf16.mxu0 0
        %1418 = vmatpush1.bf16.msra.mxu0 %v1409
        %1419 = vmatprep.subr.bf16.mxu0 0
        %1420 = vmatpush1.bf16.msra.mxu0 0
        %1421 = vmatprep.subr.bf16.mxu0 0
        %1422 = vmatpush1.bf16.msra.mxu0 0
        %1423 = vmatprep.subr.bf16.mxu0 0
        %1424 = vmatpush1.bf16.msra.mxu0 0
        %1425 = vmatprep.subr.bf16.mxu0 0
        %1426 = vmatpush1.bf16.msra.mxu0 0
        %1427 = vmatprep.subr.bf16.mxu0 0
        %1428 = vmatpush1.bf16.msra.mxu0 0
        %1429 = vmatprep.subr.bf16.mxu0 0
        %1430 = vmatpush1.bf16.msra.mxu0 0
        %1431 = vmatprep.subr.bf16.mxu0 0
        %1432 = vmatpush1.bf16.msra.mxu0 0
        %1433 = vmatprep.subr.bf16.mxu0 0
        %1434 = vmatpush1.bf16.msra.mxu0 0
        %1435 = vmatprep.subr.bf16.mxu0 0
        %1436 = vmatpush1.bf16.msra.mxu0 0
        %1437 = vmatprep.subr.bf16.mxu0 0
        %1438 = vmatpush1.bf16.msra.mxu0 0
        %1439 = vmatprep.subr.bf16.mxu0 0
        %1440 = vmatpush1.bf16.msra.mxu0 0
        %1441 = vmatprep.subr.bf16.mxu0 0
        %1442 = vmatpush1.bf16.msra.mxu0 0
        %1443 = vmatprep.subr.bf16.mxu0 0
        %1444 = vmatpush1.bf16.msra.mxu0 0
        %1445 = vmatprep.subr.bf16.mxu0 0
        %1446 = vmatpush1.bf16.msra.mxu0 0
        %1447 = vmatprep.mubr.bf16.mxu0 0
        %1448 = vmatmul.mubr.bf16.gmra.mrb[0].mxu0 %v1413
        %v1449 = vpop.f32.mrb[0].mxu0
        %v1450 = vadd.f32 %v1398, %v1449
        %v1451 = vpop.f32.mrb[0].mxu0
        %v1452 = vpop.f32.mrb[0].mxu0
        %v1453 = vpop.f32.mrb[0].mxu0
        %1454 = vdwg.mxu0
        %v1455 = vadd.f32 %v1450, %v704
        %v1456 = vld [vmem:[%s10] sm:$0x1]
        %v1457 = vld [vmem:[%s11] sm:$0x1]
        %v1458 = vsel %vm729, %v1455, 0.0
        %1459 = vadd.xlane.f32.xlu0 %v1458
        %v1460 = vpop.xlane.xlu0 %1459
        %v1461 = vrcp.pop 32.0
        %v1462 = vmul.f32 %v1460, %v1461
        %v1463 = vsub.f32 %v1455, %v1462
        %v1464 = vmul.f32 %v1463, %v1463
        %v1465 = vsel %vm729, %v1464, 0.0
        %1466 = vadd.xlane.f32.xlu0 %v1465
        %v1467 = vpop.xlane.xlu0 %1466
        %v1468 = vmul.f32 %v1467, %v1461
        %v1469 = vadd.f32 %v1468, 1e-05
        %v1470 = vrsqrt.pop %v1469
        %v1471 = vmul.f32 %v1463, %v1470
        %v1473 = vlaneseq
        %v1474 = vshrl.u32 %v1473, 7
        %v1475 = vsub.s32 0, %v1474
        %v1476 = vrot.slane %v1456, %v1475
        %v1478 = vmul.f32 %v1471, %v1476
        %v1480 = vlaneseq
        %v1481 = vshrl.u32 %v1480, 7
        %v1482 = vsub.s32 0, %v1481
        %v1483 = vrot.slane %v1457, %v1482
        %v1485 = vadd.f32 %v1478, %v1483
        %v1486 = vpack.c.bf16 %v1485, %v1485
        %v1487 = vld [vmem:[%s12] sm:$0xf]
        %v1488 = vld [vmem:[%s12 + $0x4] sm:$0xf]
        %v1489 = vld [vmem:[%s12 + $0x8] sm:$0xf]
        %v1490 = vld [vmem:[%s12 + $0xc] sm:$0xf]
        %v1491 = vld [vmem:[%s13] sm:$0x1]
        %v1493 = vlaneseq
        %v1494 = vshrl.u32 %v1493, 7
        %v1495 = vsub.s32 0, %v1494
        %v1496 = vrot.slane %v1491, %v1495
        %v1502 = vunpack.c.l.b16 %v1487
        %v1503 = vunpack.c.l.b16 %v1488
        %v1504 = vunpack.c.l.b16 %v1489
        %v1505 = vunpack.c.l.b16 %v1490
        %v1506 = vpack.c.b16 %v1503, %v1502
        %v1507 = vpack.c.b16 %v1505, %v1504
        %v1511 = vsel %vm729, %v1486, 0
        %1513 = vmatprep.subr.bf16.mxu0 0
        %1514 = vmatpush1.bf16.msra.mxu0 %v1506
        %1515 = vmatprep.subr.bf16.mxu0 0
        %1516 = vmatpush1.bf16.msra.mxu0 %v1507
        %1517 = vmatprep.subr.bf16.mxu0 0
        %1518 = vmatpush1.bf16.msra.mxu0 0
        %1519 = vmatprep.subr.bf16.mxu0 0
        %1520 = vmatpush1.bf16.msra.mxu0 0
        %1521 = vmatprep.subr.bf16.mxu0 0
        %1522 = vmatpush1.bf16.msra.mxu0 0
        %1523 = vmatprep.subr.bf16.mxu0 0
        %1524 = vmatpush1.bf16.msra.mxu0 0
        %1525 = vmatprep.subr.bf16.mxu0 0
        %1526 = vmatpush1.bf16.msra.mxu0 0
        %1527 = vmatprep.subr.bf16.mxu0 0
        %1528 = vmatpush1.bf16.msra.mxu0 0
        %1529 = vmatprep.subr.bf16.mxu0 0
        %1530 = vmatpush1.bf16.msra.mxu0 0
        %1531 = vmatprep.subr.bf16.mxu0 0
        %1532 = vmatpush1.bf16.msra.mxu0 0
        %1533 = vmatprep.subr.bf16.mxu0 0
        %1534 = vmatpush1.bf16.msra.mxu0 0
        %1535 = vmatprep.subr.bf16.mxu0 0
        %1536 = vmatpush1.bf16.msra.mxu0 0
        %1537 = vmatprep.subr.bf16.mxu0 0
        %1538 = vmatpush1.bf16.msra.mxu0 0
        %1539 = vmatprep.subr.bf16.mxu0 0
        %1540 = vmatpush1.bf16.msra.mxu0 0
        %1541 = vmatprep.subr.bf16.mxu0 0
        %1542 = vmatpush1.bf16.msra.mxu0 0
        %1543 = vmatprep.subr.bf16.mxu0 0
        %1544 = vmatpush1.bf16.msra.mxu0 0
        %1545 = vmatprep.mubr.bf16.mxu0 0
        %1546 = vmatmul.mubr.bf16.gmra.mrb[0].mxu0 %v1511
        %v1547 = vpop.f32.mrb[0].mxu0
        %v1548 = vadd.f32 %v1496, %v1547
        %v1549 = vpop.f32.mrb[0].mxu0
        %v1550 = vpop.f32.mrb[0].mxu0
        %v1551 = vpop.f32.mrb[0].mxu0
        %1552 = vdwg.mxu0
        %v1553 = vmax.f32 %v1548, 0.0
        %v1554 = vpack.c.bf16 %v1553, %v1553
        %v1555 = vld [vmem:[%s14] sm:$0xf]
        %v1556 = vld [vmem:[%s14 + $0x4] sm:$0xf]
        %v1557 = vld [vmem:[%s14 + $0x8] sm:$0xf]
        %v1558 = vld [vmem:[%s14 + $0xc] sm:$0xf]
        %v1559 = vld [vmem:[%s14 + $0x10] sm:$0xf]
        %v1560 = vld [vmem:[%s14 + $0x14] sm:$0xf]
        %v1561 = vld [vmem:[%s14 + $0x18] sm:$0xf]
        %v1562 = vld [vmem:[%s14 + $0x1c] sm:$0xf]
        %v1563 = vld [vmem:[%s15] sm:$0x1]
        %v1565 = vlaneseq
        %v1566 = vshrl.u32 %v1565, 7
        %v1567 = vsub.s32 0, %v1566
        %v1568 = vrot.slane %v1563, %v1567
        %v1578 = vunpack.c.l.b16 %v1555
        %v1579 = vunpack.c.l.b16 %v1556
        %v1580 = vunpack.c.l.b16 %v1557
        %v1581 = vunpack.c.l.b16 %v1558
        %v1582 = vunpack.c.l.b16 %v1559
        %v1583 = vunpack.c.l.b16 %v1560
        %v1584 = vunpack.c.l.b16 %v1561
        %v1585 = vunpack.c.l.b16 %v1562
        %v1586 = vpack.c.b16 %v1579, %v1578
        %v1587 = vpack.c.b16 %v1581, %v1580
        %v1588 = vpack.c.b16 %v1583, %v1582
        %v1589 = vpack.c.b16 %v1585, %v1584
        %vm1594 = vcmask 523264
        %v1596 = vsel %vm1594, %v1554, 0
        %1598 = vmatprep.subr.bf16.mxu0 0
        %1599 = vmatpush1.bf16.msra.mxu0 %v1586
        %1600 = vmatprep.subr.bf16.mxu0 0
        %1601 = vmatpush1.bf16.msra.mxu0 %v1587
        %1602 = vmatprep.subr.bf16.mxu0 0
        %1603 = vmatpush1.bf16.msra.mxu0 %v1588
        %1604 = vmatprep.subr.bf16.mxu0 0
        %1605 = vmatpush1.bf16.msra.mxu0 %v1589
        %1606 = vmatprep.subr.bf16.mxu0 0
        %1607 = vmatpush1.bf16.msra.mxu0 0
        %1608 = vmatprep.subr.bf16.mxu0 0
        %1609 = vmatpush1.bf16.msra.mxu0 0
        %1610 = vmatprep.subr.bf16.mxu0 0
        %1611 = vmatpush1.bf16.msra.mxu0 0
        %1612 = vmatprep.subr.bf16.mxu0 0
        %1613 = vmatpush1.bf16.msra.mxu0 0
        %1614 = vmatprep.subr.bf16.mxu0 0
        %1615 = vmatpush1.bf16.msra.mxu0 0
        %1616 = vmatprep.subr.bf16.mxu0 0
        %1617 = vmatpush1.bf16.msra.mxu0 0
        %1618 = vmatprep.subr.bf16.mxu0 0
        %1619 = vmatpush1.bf16.msra.mxu0 0
        %1620 = vmatprep.subr.bf16.mxu0 0
        %1621 = vmatpush1.bf16.msra.mxu0 0
        %1622 = vmatprep.subr.bf16.mxu0 0
        %1623 = vmatpush1.bf16.msra.mxu0 0
        %1624 = vmatprep.subr.bf16.mxu0 0
        %1625 = vmatpush1.bf16.msra.mxu0 0
        %1626 = vmatprep.subr.bf16.mxu0 0
        %1627 = vmatpush1.bf16.msra.mxu0 0
        %1628 = vmatprep.subr.bf16.mxu0 0
        %1629 = vmatpush1.bf16.msra.mxu0 0
        %1630 = vmatprep.mubr.bf16.mxu0 0
        %1631 = vmatmul.mubr.bf16.gmra.mrb[0].mxu0 %v1596
        %v1632 = vpop.f32.mrb[0].mxu0
        %v1633 = vadd.f32 %v1568, %v1632
        %v1634 = vpop.f32.mrb[0].mxu0
        %v1635 = vpop.f32.mrb[0].mxu0
        %v1636 = vpop.f32.mrb[0].mxu0
        %1637 = vdwg.mxu0
        %v1638 = vadd.f32 %v1633, %v1485
        %v1639 = vld [vmem:[%s16] sm:$0x1]
        %v1640 = vld [vmem:[%s17] sm:$0x1]
        %v1641 = vsel %vm729, %v1638, 0.0
        %1642 = vadd.xlane.f32.xlu0 %v1641
        %v1643 = vpop.xlane.xlu0 %1642
        %v1644 = vmul.f32 %v1643, %v1461
        %v1645 = vsub.f32 %v1638, %v1644
        %v1646 = vmul.f32 %v1645, %v1645
        %v1647 = vsel %vm729, %v1646, 0.0
        %1648 = vadd.xlane.f32.xlu0 %v1647
        %v1649 = vpop.xlane.xlu0 %1648
        %v1650 = vmul.f32 %v1649, %v1461
        %v1651 = vadd.f32 %v1650, 1e-05
        %v1652 = vrsqrt.pop %v1651
        %v1653 = vmul.f32 %v1645, %v1652
        %v1655 = vlaneseq
        %v1656 = vshrl.u32 %v1655, 7
        %v1657 = vsub.s32 0, %v1656
        %v1658 = vrot.slane %v1639, %v1657
        %v1660 = vmul.f32 %v1653, %v1658
        %v1662 = vlaneseq
        %v1663 = vshrl.u32 %v1662, 7
        %v1664 = vsub.s32 0, %v1663
        %v1665 = vrot.slane %v1640, %v1664
        %v1667 = vadd.f32 %v1660, %v1665
        %1668 = vst.msk [vmem:[%s688] sm:$0xff] %vm729, %v1667
        %s1669 = sand.u32 %s437, 1
        %s1670 = scalar_lea.sflag [#allocation4], %s1669
        %s1671 = sand.u32 %s437, 1
        %s1672 = smul.addr %s1671, 8
        %s1673 = scalar_lea.vmem [#allocation13], %s1672
        %s1674 = sand.u32 %s463, 1
        %s1675 = scalar_lea.sflag [#allocation15], %s1674
        %s1676 = sand.u32 %s463, 1
        %s1677 = smul.addr %s1676, 32
        %s1678 = scalar_lea.vmem [#allocation14], %s1677
        // Predicated region
        $region117: #{tpu_custom_call.1} parent=91 // pred_check
          %p1679 = pneg %p447
        $region118: #{tpu_custom_call.1} parent=91 // pred_check_branch
          %1681 = sbr.rel (%p1679) target = $region120
        $region119: #{tpu_custom_call.1} parent=91 // pred_region
          %s1683 = ssub.s32 128, 128
          %1684 = vsyncadd %s1670, %s1683
          %s1685 = smul.addr %s41, 128
          %s1686 = scalar_lea.hbm %s18, %s1685
          %s1688 = sshll.u32 %s1673, 4
          %s1689 = int_to_ptr.vmem [resolvable:$true] %s1688
          %1691 = dma.vmem_to_hbm [thread:$0]  %s1689, 128, %s1686, %s1670
        $region120: #{tpu_custom_call.1} parent=91 // pred_fallthru
          _
        // Predicated region
        $region121: #{tpu_custom_call.1} parent=91 // pred_check
          %p1692 = pneg %p473
        $region122: #{tpu_custom_call.1} parent=91 // pred_check_branch
          %1694 = sbr.rel (%p1692) target = $region124
        $region123: #{tpu_custom_call.1} parent=91 // pred_region
          %s1696 = ssub.s32 512, 512
          %1697 = vsyncadd %s1675, %s1696
          %s1698 = smul.addr %s41, 128
          %s1699 = scalar_lea.hbm %s19, %s1698
          %s1700 = sshll.u32 %s1678, 4
          %s1701 = int_to_ptr.vmem [resolvable:$true] %s1700
          %1706 = dma.vmem_to_hbm [thread:$0]  %s1701, 512, %s1699, %s1675, 128, 256, 8
        $region124: #{tpu_custom_call.1} parent=91 // pred_fallthru
          _
      $region92: #{tpu_custom_call.1} parent=5 // pred_fallthru
        _
      %p1707 = scmp.le.s32.totalorder 2, %s36
      // Predicated region
      $region125: #{tpu_custom_call.1} parent=5 // pred_check
        %p1708 = pneg %p1707
      $region126: #{tpu_custom_call.1} parent=5 // pred_check_branch
        %1710 = sbr.rel (%p1708) target = $region128
      $region127: #{tpu_custom_call.1} parent=5 // pred_region
        %s1711 = ssub.s32 %s36, 2
        // Predicated region
        $region129: #{tpu_custom_call.1} parent=127 // pred_check
          %p1712 = pneg %p453
        $region130: #{tpu_custom_call.1} parent=127 // pred_check_branch
          %1714 = sbr.rel (%p1712) target = $region132
        $region131: #{tpu_custom_call.1} parent=127 // pred_region
          %s1715 = sand.u32 %s438, 1
          %s1716 = scalar_lea.sflag [#allocation4], %s1715
          %s1717 = sand.u32 %s438, 1
          %s1718 = smul.addr %s1717, 8
          %s1719 = scalar_lea.vmem [#allocation13], %s1718
          %1720 = dma.done %s1716, 128
        $region132: #{tpu_custom_call.1} parent=127 // pred_fallthru
          _
        // Predicated region
        $region133: #{tpu_custom_call.1} parent=127 // pred_check
          %p1721 = pneg %p479
        $region134: #{tpu_custom_call.1} parent=127 // pred_check_branch
          %1723 = sbr.rel (%p1721) target = $region136
        $region135: #{tpu_custom_call.1} parent=127 // pred_region
          %s1724 = sand.u32 %s464, 1
          %s1725 = scalar_lea.sflag [#allocation15], %s1724
          %s1726 = sand.u32 %s464, 1
          %s1727 = smul.addr %s1726, 32
          %s1728 = scalar_lea.vmem [#allocation14], %s1727
          %1729 = dma.done %s1725, 512
        $region136: #{tpu_custom_call.1} parent=127 // pred_fallthru
          _
      $region128: #{tpu_custom_call.1} parent=5 // pred_fallthru
        _
    $region6: #{tpu_custom_call.1} parent=1 // loop_footer
      %s40 = sadd.s32 1, %s36
    $region7: #{tpu_custom_call.1} parent=1 // loop_footer_branch
      %35 = sbr.rel target = $region3
    $region8: #{tpu_custom_call.1} parent=1 // loop_exit
      _
    %1730 = vsyncpa [#allocation3], 1
    %s1731 = scalar_lea.sflag [#allocation3], 1
    %1732 = vsyncpa %s1731, 1
    %1733 = vsyncpa [#allocation6], 1
    %1734 = vsyncpa [#allocation9], 1
    %1735 = vsyncpa [#allocation12], 1
    %1736 = vsyncpa [#allocation4], 1
    %s1737 = scalar_lea.sflag [#allocation4], 1
    %1738 = vsyncpa %s1737, 1
    %1739 = vsyncpa [#allocation15], 1
    %s1740 = scalar_lea.sflag [#allocation15], 1
    %1741 = vsyncpa %s1740, 1

</llo_original>
